<compile_context>
chip_gen: v5e
topology: v5e:2x2
jax: 0.10.0
libtpu: 0.0.40
codegen_flags: <defaults>
</compile_context>

<pallas_src>
import math

import jax
import jax.numpy as jnp
from jax import lax
from jax.experimental import pallas as pl
from jax.experimental.pallas import tpu as pltpu

_VMEM_LIMIT = 32 * 1024 * 1024  # safe scoped budget on v5e/v6e/v7x


# --------------------------------------------------------------------------
# tiling helper: largest tile <= target that is a multiple of `align` and
# divides `dim`; falls back to the FULL dim (never a pathological tiny tile).
# --------------------------------------------------------------------------
def _pick_tile(dim, target, align):
    if dim <= target:
        return dim
    t = (target // align) * align
    min_t = max(align, ((target // 4) // align) * align)
    while t >= min_t:
        if dim % t == 0:
            return t
        t -= align
    return dim  # full extent rather than a tiny tile / 30x larger grid


# --------------------------------------------------------------------------
# Fused (LayerNorm?) + tiled matmul + bias (+ ReLU) (+ residual) kernel
# --------------------------------------------------------------------------
def _make_linear_kernel(ln, relu, has_res, eps, nfeat):
    def kernel(*refs):
        idx = 0
        x_ref = refs[idx]; idx += 1
        if ln:
            g_ref, bt_ref = refs[idx], refs[idx + 1]; idx += 2
        w_ref, b_ref = refs[idx], refs[idx + 1]; idx += 2
        if has_res:
            r_ref = refs[idx]; idx += 1
        o_ref, acc_ref = refs[-2], refs[-1]

        k = pl.program_id(2)

        @pl.when(k == 0)
        def _():
            acc_ref[...] = jnp.zeros_like(acc_ref)

        x = x_ref[...]
        if ln:
            # torch.Tensor.std() is unbiased (N-1) and eps is added to std,
            # matching the annotated-transformer LayerNorm.
            xf = x.astype(jnp.float32)
            mean = jnp.mean(xf, axis=-1, keepdims=True)
            var = jnp.sum((xf - mean) ** 2, axis=-1, keepdims=True) / (nfeat - 1)
            inv = pl.reciprocal(jnp.sqrt(var) + eps, approx=False)  # per-row (EUP)
            x = g_ref[...] * ((xf - mean) * inv) + bt_ref[...]

        acc_ref[...] += jnp.dot(x.astype(w_ref.dtype), w_ref[...],
                                preferred_element_type=jnp.float32)

        @pl.when(k == pl.num_programs(2) - 1)
        def _():
            y = acc_ref[...] + b_ref[...]
            if relu:
                y = jnp.maximum(y, 0.0)
            if has_res:
                y = y + r_ref[...].astype(jnp.float32)
            o_ref[...] = y.astype(o_ref.dtype)

    return kernel


def fused_linear(x, w, b, *, gamma=None, beta=None, residual=None,
                 relu=False, eps=1e-6, out_dtype=jnp.float32):
    """y = (opt. LayerNorm(x)) @ w + b (opt. ReLU) (opt. + residual)."""
    lead = x.shape[:-1]
    K = x.shape[-1]
    N = w.shape[-1]
    x2 = x.reshape(-1, K)
    M = x2.shape[0]
    ln = gamma is not None

    # Keep the f32 x tile (double-buffered) around <=4 MiB; tn prefers
    # multiples of 256 (MXU width on v6e/v7x); LN needs the full feature axis.
    tm_target = max(8, min(512, ((4 * 1024 * 1024) // max(4 * K, 1)) // 8 * 8))
    tm = _pick_tile(M, tm_target, 8)
    tn = _pick_tile(N, 512, 256) if N % 256 == 0 else _pick_tile(N, 512, 128)
    if ln:
        tk = K  # LN statistics need every feature of the row
    else:
        tk = _pick_tile(K, 1024, 256) if K % 256 == 0 else _pick_tile(K, 1024, 128)
    assert (not ln) or tk == K
    grid = (M // tm, N // tn, K // tk)

    inputs = [x2]
    in_specs = [pl.BlockSpec((tm, tk), lambda i, j, k: (i, k))]
    if ln:
        inputs += [gamma.reshape(1, K), beta.reshape(1, K)]
        in_specs += [pl.BlockSpec((1, tk), lambda i, j, k: (0, k)),
                     pl.BlockSpec((1, tk), lambda i, j, k: (0, k))]
    # TODO(synk): for decode-sized M, pipeline_mode=pl.Buffered(3) on the w
    # spec hides exposed weight-DMA latency; left at default depth here.
    inputs += [w, b.reshape(1, N)]
    in_specs += [pl.BlockSpec((tk, tn), lambda i, j, k: (k, j)),
                 pl.BlockSpec((1, tn), lambda i, j, k: (0, j))]
    if residual is not None:
        inputs.append(residual.reshape(M, N))
        in_specs.append(pl.BlockSpec((tm, tn), lambda i, j, k: (i, j)))

    # TODO(synk): when ln=True the LN of the x tile is recomputed per N-tile;
    # caching it in VMEM scratch would require the j axis to be "arbitrary"
    # (losing megacore split on j) - skipped, it is hidden under the MXU.
    out = pl.pallas_call(
        _make_linear_kernel(ln, relu, residual is not None, eps, K),
        out_shape=jax.ShapeDtypeStruct((M, N), out_dtype),
        grid=grid,
        in_specs=in_specs,
        out_specs=pl.BlockSpec((tm, tn), lambda i, j, k: (i, j)),
        scratch_shapes=[pltpu.VMEM((tm, tn), jnp.float32)],
        compiler_params=pltpu.CompilerParams(
            dimension_semantics=("parallel", "parallel", "arbitrary"),
            vmem_limit_bytes=_VMEM_LIMIT),
    )(*inputs)
    return out.reshape(*lead, N)


# --------------------------------------------------------------------------
# Flash-style attention kernel.
#   grid = (B, Tq-blocks, Tk-blocks), all heads processed per step.
#   q/k/v are sliced straight out of the fused-projection tensors
#   ([B,T,3,H,dk] / [B,S,2,H,dk]) via squeezed BlockSpec dims -> zero XLA
#   transposes.  Online softmax over Tk blocks with m/l/acc scratch.
#   The 1/sqrt(dk) scale is folded into the query weights; the mask arrives
#   as an additive bias (0 / -1e9).
#   Output is written lane-dense as [B, Tq, H*dk].
# --------------------------------------------------------------------------
def _make_attn_kernel(H, dk):
    def kernel(q_ref, k_ref, v_ref, bias_ref, o_ref, m_ref, l_ref, acc_ref):
        ki = pl.program_id(2)

        @pl.when(ki == 0)
        def _():
            m_ref[...] = jnp.full_like(m_ref, -jnp.inf)
            l_ref[...] = jnp.zeros_like(l_ref)
            acc_ref[...] = jnp.zeros_like(acc_ref)

        qv = q_ref[...]                                   # [tq, H, dk] bf16
        kv = k_ref[...]                                   # [tk, H, dk]
        vv = v_ref[...]                                   # [tk, H, dk]
        bias = bias_ref[...].astype(jnp.float32)          # [tq or 1, tk]

        for h in range(H):
            # QK^T without any transpose (contract dk of both operands).
            s = lax.dot_general(qv[:, h, :], kv[:, h, :],
                                (((1,), (1,)), ((), ())),
                                preferred_element_type=jnp.float32) + bias   # [tq, tk]
            m_prev = m_ref[:, h:h + 1]                                       # [tq, 1]
            m_new = jnp.maximum(m_prev, jnp.max(s, axis=-1, keepdims=True))
            alpha = jnp.exp(m_prev - m_new)
            p = jnp.exp(s - m_new)                                           # [tq, tk]
            l_ref[:, h:h + 1] = alpha * l_ref[:, h:h + 1] + \
                jnp.sum(p, axis=-1, keepdims=True)
            pv = lax.dot_general(p.astype(vv.dtype), vv[:, h, :],
                                 (((1,), (0,)), ((), ())),
                                 preferred_element_type=jnp.float32)         # [tq, dk]
            sl = slice(h * dk, (h + 1) * dk)
            acc_ref[:, sl] = alpha * acc_ref[:, sl] + pv
            m_ref[:, h:h + 1] = m_new

        @pl.when(ki == pl.num_programs(2) - 1)
        def _():
            for h in range(H):
                sl = slice(h * dk, (h + 1) * dk)
                inv = pl.reciprocal(l_ref[:, h:h + 1], approx=False)
                o_ref[:, sl] = (acc_ref[:, sl] * inv).astype(o_ref.dtype)

    return kernel


def pallas_attention(q5, kv5, q_sel, k_sel, v_sel, bias, out_dtype=jnp.bfloat16):
    """q5: [B,Tq,Nq,H,dk]; kv5: [B,Tk,Nkv,H,dk]; bias: [B,Tm,Tk], Tm in {1,Tq}.

    q/k/v are selected along the third axis with q_sel/k_sel/v_sel (so the
    fused QKV tensor can be passed for all three without any transpose).
    Returns [B, Tq, H*dk] (bf16) - a free view onto [B, Tq, D].
    """
    B, Tq, _, H, dk = q5.shape
    Tk = kv5.shape[1]
    Tm = bias.shape[1]
    D = H * dk

    tq = _pick_tile(Tq, 128, 8)
    tk = _pick_tile(Tk, 256, 128)
    grid = (B, Tq // tq, Tk // tk)

    if Tm == 1:
        bias_spec = pl.BlockSpec((None, 1, tk), lambda b, qi, ki: (b, 0, ki))
    else:
        bias_spec = pl.BlockSpec((None, tq, tk), lambda b, qi, ki: (b, qi, ki))

    return pl.pallas_call(
        _make_attn_kernel(H, dk),
        out_shape=jax.ShapeDtypeStruct((B, Tq, D), out_dtype),
        grid=grid,
        in_specs=[
            pl.BlockSpec((None, tq, None, H, dk),
                         lambda b, qi, ki: (b, qi, q_sel, 0, 0)),
            pl.BlockSpec((None, tk, None, H, dk),
                         lambda b, qi, ki: (b, ki, k_sel, 0, 0)),
            pl.BlockSpec((None, tk, None, H, dk),
                         lambda b, qi, ki: (b, ki, v_sel, 0, 0)),
            bias_spec,
        ],
        out_specs=pl.BlockSpec((None, tq, D), lambda b, qi, ki: (b, qi, 0)),
        scratch_shapes=[pltpu.VMEM((tq, H), jnp.float32),   # running max m
                        pltpu.VMEM((tq, H), jnp.float32),   # running denom l
                        pltpu.VMEM((tq, D), jnp.float32)],  # accumulator
        compiler_params=pltpu.CompilerParams(
            dimension_semantics=("parallel", "parallel", "arbitrary"),
            vmem_limit_bytes=_VMEM_LIMIT),
    )(q5, kv5, kv5, bias)


# --------------------------------------------------------------------------
# FFN sublayer: LN -> W1 + ReLU -> W2 -> + residual.
# Single fused kernel while it fits a VMEM budget; otherwise two tiled
# fused_linear kernels (keeps VMEM bounded for real d_model / d_ff).
# --------------------------------------------------------------------------
def _make_ffn_kernel(eps, nfeat):
    def kernel(x_ref, g_ref, bt_ref, w1_ref, b1_ref, w2_ref, b2_ref, o_ref):
        x = x_ref[...]
        mean = jnp.mean(x, axis=-1, keepdims=True)
        var = jnp.sum((x - mean) ** 2, axis=-1, keepdims=True) / (nfeat - 1)
        inv = pl.reciprocal(jnp.sqrt(var) + eps, approx=False)
        y = g_ref[...] * ((x - mean) * inv) + bt_ref[...]
        h = jnp.dot(y.astype(w1_ref.dtype), w1_ref[...],
                    preferred_element_type=jnp.float32) + b1_ref[...]
        h = jnp.maximum(h, 0.0)
        out = jnp.dot(h.astype(w2_ref.dtype), w2_ref[...],
                      preferred_element_type=jnp.float32) + b2_ref[...]
        o_ref[...] = (x + out).astype(o_ref.dtype)
    return kernel


def pallas_ffn(x, gamma, beta, w1, b1, w2, b2, eps=1e-6):
    B, T, D = x.shape
    F = w1.shape[-1]
    M = B * T
    tm = _pick_tile(M, 256, 8)

    # single-kernel working set: double-buffered weights + f32 hidden/in/out
    wbytes = w1.dtype.itemsize
    fused_bytes = 2 * (D * F + F * D) * wbytes + tm * F * 4 + 4 * tm * D * 4
    if fused_bytes > 12 * 1024 * 1024:
        # Large d_model*d_ff: two K/N-tiled matmul kernels keep VMEM bounded.
        h = fused_linear(x, w1, b1, gamma=gamma, beta=beta, relu=True,
                         eps=eps, out_dtype=jnp.bfloat16)
        return fused_linear(h, w2, b2, residual=x, out_dtype=jnp.float32)

    x2 = x.reshape(M, D)
    out = pl.pallas_call(
        _make_ffn_kernel(eps, D),
        out_shape=jax.ShapeDtypeStruct((M, D), jnp.float32),
        grid=(M // tm,),
        in_specs=[
            pl.BlockSpec((tm, D), lambda i: (i, 0)),
            pl.BlockSpec((1, D), lambda i: (0, 0)),
            pl.BlockSpec((1, D), lambda i: (0, 0)),
            pl.BlockSpec((D, F), lambda i: (0, 0)),
            pl.BlockSpec((1, F), lambda i: (0, 0)),
            pl.BlockSpec((F, D), lambda i: (0, 0)),
            pl.BlockSpec((1, D), lambda i: (0, 0)),
        ],
        out_specs=pl.BlockSpec((tm, D), lambda i: (i, 0)),
        compiler_params=pltpu.CompilerParams(
            dimension_semantics=("parallel",),
            vmem_limit_bytes=_VMEM_LIMIT),
    )(x2, gamma.reshape(1, D), beta.reshape(1, D),
      w1, b1.reshape(1, F), w2, b2.reshape(1, D))
    return out.reshape(B, T, D)


# --------------------------------------------------------------------------
# Final (standalone) LayerNorm, tiled over rows.
# --------------------------------------------------------------------------
def _make_ln_kernel(eps, nfeat):
    def kernel(x_ref, g_ref, b_ref, o_ref):
        x = x_ref[...]
        mean = jnp.mean(x, axis=-1, keepdims=True)
        var = jnp.sum((x - mean) ** 2, axis=-1, keepdims=True) / (nfeat - 1)
        inv = pl.reciprocal(jnp.sqrt(var) + eps, approx=False)
        o_ref[...] = g_ref[...] * ((x - mean) * inv) + b_ref[...]
    return kernel


def pallas_layernorm(x, gamma, beta, eps=1e-6):
    lead = x.shape[:-1]
    D = x.shape[-1]
    x2 = x.reshape(-1, D)
    M = x2.shape[0]
    tm = _pick_tile(M, 512, 8)
    out = pl.pallas_call(
        _make_ln_kernel(eps, D),
        out_shape=jax.ShapeDtypeStruct((M, D), jnp.float32),
        grid=(M // tm,),
        in_specs=[
            pl.BlockSpec((tm, D), lambda i: (i, 0)),
            pl.BlockSpec((1, D), lambda i: (0, 0)),
            pl.BlockSpec((1, D), lambda i: (0, 0)),
        ],
        out_specs=pl.BlockSpec((tm, D), lambda i: (i, 0)),
        compiler_params=pltpu.CompilerParams(
            dimension_semantics=("parallel",),
            vmem_limit_bytes=_VMEM_LIMIT),
    )(x2, gamma.reshape(1, D), beta.reshape(1, D))
    return out.reshape(*lead, D)


# --------------------------------------------------------------------------
# Decoder glue
# --------------------------------------------------------------------------
def self_attention_sublayer(x, tgt_bias, p, n_heads):
    B, T, D = x.shape
    dk = D // n_heads
    # fused LayerNorm + QKV projection (one [D,3D] matmul), bf16 outputs
    qkv = fused_linear(x, p["self_w_qkv"], p["self_b_qkv"],
                       gamma=p["ln1_g"], beta=p["ln1_b"],
                       out_dtype=jnp.bfloat16)                        # [B,T,3D]
    qkv5 = qkv.reshape(B, T, 3, n_heads, dk)                          # free view
    ctx = pallas_attention(qkv5, qkv5, 0, 1, 2, tgt_bias)             # [B,T,D]
    # output projection fused with residual add
    return fused_linear(ctx, p["self_wo"], p["self_bo"],
                        residual=x, out_dtype=jnp.float32)


def src_attention_sublayer(x, memory, src_bias, p, n_heads):
    B, T, D = x.shape
    S = memory.shape[1]
    dk = D // n_heads
    q = fused_linear(x, p["src_wq"], p["src_bq"],
                     gamma=p["ln2_g"], beta=p["ln2_b"],
                     out_dtype=jnp.bfloat16)                          # LN fused
    kv = fused_linear(memory, p["src_w_kv"], p["src_b_kv"],
                      out_dtype=jnp.bfloat16)                         # [B,S,2D]
    q5 = q.reshape(B, T, 1, n_heads, dk)                              # free views
    kv5 = kv.reshape(B, S, 2, n_heads, dk)
    ctx = pallas_attention(q5, kv5, 0, 0, 1, src_bias)                # [B,T,D]
    return fused_linear(ctx, p["src_wo"], p["src_bo"],
                        residual=x, out_dtype=jnp.float32)


def decoder_forward(x, memory, source_mask, target_mask, layer_params, final, n_heads):
    # SublayerConnection: x + sublayer(norm(x))   (dropout = identity, eval mode)
    # TODO(synk): dropout inside SublayerConnection omitted (inference / p=0).
    # Masks converted once into additive biases (0 keep / -1e9 masked), which
    # matches masked_fill(mask==0, -1e9) and turns the in-kernel mask into
    # a single VPU add.
    tgt_bias = jnp.where(target_mask == 0, jnp.float32(-1e9), jnp.float32(0.0))
    src_bias = jnp.where(source_mask == 0, jnp.float32(-1e9), jnp.float32(0.0))
    for p in layer_params:
        x = self_attention_sublayer(x, tgt_bias, p, n_heads)
        x = src_attention_sublayer(x, memory, src_bias, p, n_heads)
        x = pallas_ffn(x, p["ln3_g"], p["ln3_b"], p["w1"], p["b1"], p["w2"], p["b2"])
    return pallas_layernorm(x, final["g"], final["b"])


# --------------------------------------------------------------------------
# Deterministic parameter init (PyTorch nn.Linear-style uniform bounds).
# Matmul weights are stored in bf16 (MXU inputs); biases / LN params in f32.
# The attention score scale 1/sqrt(dk) is folded into the query projections.
# --------------------------------------------------------------------------
def _init_linear(key, fan_in, fan_out):
    k1, k2 = jax.random.split(key)
    bound = 1.0 / math.sqrt(fan_in)
    w = jax.random.uniform(k1, (fan_in, fan_out), jnp.float32, -bound, bound)
    b = jax.random.uniform(k2, (fan_out,), jnp.float32, -bound, bound)
    return w, b


def init_decoder_params(key, n_layers, d_model, d_ff, n_heads, w_dtype=jnp.bfloat16):
    dk = d_model // n_heads
    q_scale = 1.0 / math.sqrt(dk)
    layers = []
    for _ in range(n_layers):
        keys = jax.random.split(key, 12)
        key = keys[0]
        wq, bq = _init_linear(keys[1], d_model, d_model)
        wk, bk = _init_linear(keys[2], d_model, d_model)
        wv, bv = _init_linear(keys[3], d_model, d_model)
        wo, bo = _init_linear(keys[4], d_model, d_model)
        swq, sbq = _init_linear(keys[5], d_model, d_model)
        swk, sbk = _init_linear(keys[6], d_model, d_model)
        swv, sbv = _init_linear(keys[7], d_model, d_model)
        swo, sbo = _init_linear(keys[8], d_model, d_model)
        w1, b1 = _init_linear(keys[9], d_model, d_ff)
        w2, b2 = _init_linear(keys[10], d_ff, d_model)
        # fold 1/sqrt(dk) into the query projections (free at runtime)
        wq, bq = wq * q_scale, bq * q_scale
        swq, sbq = swq * q_scale, sbq * q_scale
        layers.append({
            "self_w_qkv": jnp.concatenate([wq, wk, wv], axis=1).astype(w_dtype),
            "self_b_qkv": jnp.concatenate([bq, bk, bv]),
            "self_wo": wo.astype(w_dtype), "self_bo": bo,
            "src_wq": swq.astype(w_dtype), "src_bq": sbq,
            "src_w_kv": jnp.concatenate([swk, swv], axis=1).astype(w_dtype),
            "src_b_kv": jnp.concatenate([sbk, sbv]),
            "src_wo": swo.astype(w_dtype), "src_bo": sbo,
            "w1": w1.astype(w_dtype), "b1": b1,
            "w2": w2.astype(w_dtype), "b2": b2,
            "ln1_g": jnp.ones((d_model,), jnp.float32), "ln1_b": jnp.zeros((d_model,), jnp.float32),
            "ln2_g": jnp.ones((d_model,), jnp.float32), "ln2_b": jnp.zeros((d_model,), jnp.float32),
            "ln3_g": jnp.ones((d_model,), jnp.float32), "ln3_b": jnp.zeros((d_model,), jnp.float32),
        })
    final = {"g": jnp.ones((d_model,), jnp.float32),
             "b": jnp.zeros((d_model,), jnp.float32)}
    return layers, final


# --------------------------------------------------------------------------

if __name__ == "__main__":
    B, T, S = 2, 8, 8          # batch, target seq len, source (memory) seq len
    D, H, D_FF = 32, 4, 64     # d_model, heads, feed-forward width
    N_LAYERS = 2

    root = jax.random.PRNGKey(0)
    k_params, k_x, k_mem = jax.random.split(root, 3)

    layer_params, final_norm = init_decoder_params(k_params, N_LAYERS, D, D_FF, H)

    x = jax.random.normal(k_x, (B, T, D), jnp.float32)
    memory = jax.random.normal(k_mem, (B, S, D), jnp.float32)
    source_mask = jnp.ones((B, 1, S), jnp.float32)                    # attend to all memory
    target_mask = jnp.broadcast_to(                                   # causal mask
        jnp.tril(jnp.ones((T, T), jnp.float32))[None], (B, T, T))

    @jax.jit
    def run(x, memory, source_mask, target_mask, layer_params, final_norm):
        return decoder_forward(x, memory, source_mask, target_mask,
                               layer_params, final_norm, H)

    out = run(x, memory, source_mask, target_mask, layer_params, final_norm)
    out = jax.block_until_ready(out)
    assert out.shape == (B, T, D) and out.dtype == jnp.float32
    assert bool(jnp.all(jnp.isfinite(out)))
    print("KERNEL_OK")
</pallas_src>

<mosaic_0001>
module attributes {stable_mosaic.version = 11 : i64} {
  func.func @kernel(%arg0: i32, %arg1: i32, %arg2: i32, %arg3: memref<1x8x1x4x8xbf16, #tpu.memory_space<vmem>>, %arg4: memref<1x8x1x4x8xbf16, #tpu.memory_space<vmem>>, %arg5: memref<1x8x1x4x8xbf16, #tpu.memory_space<vmem>>, %arg6: memref<1x8x8xf32, #tpu.memory_space<vmem>>, %arg7: memref<1x8x32xbf16, #tpu.memory_space<vmem>>, %arg8: memref<8x4xf32, #tpu.memory_space<vmem>>, %arg9: memref<8x4xf32, #tpu.memory_space<vmem>>, %arg10: memref<8x32xf32, #tpu.memory_space<vmem>>) attributes {dimension_semantics = [#tpu.dimension_semantics<parallel>, #tpu.dimension_semantics<parallel>, #tpu.dimension_semantics<arbitrary>], iteration_bounds = array<i64: 2, 1, 1>, scalar_prefetch = 0 : i64, scratch_operands = 3 : i64, tpu.core_type = #tpu.core_type<tc>, window_params = [{transform_indices = @transform_0, window_bounds = array<i64: 1, 8, 1, 4, 8>}, {transform_indices = @transform_1, window_bounds = array<i64: 1, 8, 1, 4, 8>}, {transform_indices = @transform_2, window_bounds = array<i64: 1, 8, 1, 4, 8>}, {transform_indices = @transform_3, window_bounds = array<i64: 1, 8, 8>}, {transform_indices = @transform_4, window_bounds = array<i64: 1, 8, 32>}]} {
    %c0_i32 = arith.constant 0 : i32
    %0 = arith.cmpi eq, %arg2, %c0_i32 : i32
    %1 = arith.extui %0 : i1 to i32
    %c0_i32_0 = arith.constant 0 : i32
    %2 = arith.cmpi ne, %1, %c0_i32_0 : i32
    scf.if %2 {
      %cst_77 = arith.constant 0xFF800000 : f32
      %138 = vector.broadcast %cst_77 : f32 to vector<8x4xf32>
      %c0_78 = arith.constant 0 : index
      %c0_79 = arith.constant 0 : index
      %139 = vector.load %arg8[%c0_78, %c0_79] : memref<8x4xf32, #tpu.memory_space<vmem>>, vector<8x4xf32>
      tpu.vector_store %arg8[%c0_78, %c0_79], %138 {strides = array<i32>} : memref<8x4xf32, #tpu.memory_space<vmem>>, vector<8x4xf32>,
      %cst_80 = arith.constant 0.000000e+00 : f32
      %140 = vector.broadcast %cst_80 : f32 to vector<8x4xf32>
      %c0_81 = arith.constant 0 : index
      %c0_82 = arith.constant 0 : index
      %141 = vector.load %arg9[%c0_81, %c0_82] : memref<8x4xf32, #tpu.memory_space<vmem>>, vector<8x4xf32>
      tpu.vector_store %arg9[%c0_81, %c0_82], %140 {strides = array<i32>} : memref<8x4xf32, #tpu.memory_space<vmem>>, vector<8x4xf32>,
      %cst_83 = arith.constant 0.000000e+00 : f32
      %142 = vector.broadcast %cst_83 : f32 to vector<8x32xf32>
      %c0_84 = arith.constant 0 : index
      %c0_85 = arith.constant 0 : index
      %143 = vector.load %arg10[%c0_84, %c0_85] : memref<8x32xf32, #tpu.memory_space<vmem>>, vector<8x32xf32>
      tpu.vector_store %arg10[%c0_84, %c0_85], %142 {strides = array<i32>} : memref<8x32xf32, #tpu.memory_space<vmem>>, vector<8x32xf32>,
    } else {
    }
    %c0 = arith.constant 0 : index
    %c0_1 = arith.constant 0 : index
    %c0_2 = arith.constant 0 : index
    %c0_3 = arith.constant 0 : index
    %c0_4 = arith.constant 0 : index
    %3 = vector.load %arg3[%c0, %c0_1, %c0_2, %c0_3, %c0_4] : memref<1x8x1x4x8xbf16, #tpu.memory_space<vmem>>, vector<1x8x1x4x8xbf16>
    %4 = vector.shape_cast %3 : vector<1x8x1x4x8xbf16> to vector<8x4x8xbf16>
    %c0_5 = arith.constant 0 : index
    %c0_6 = arith.constant 0 : index
    %c0_7 = arith.constant 0 : index
    %c0_8 = arith.constant 0 : index
    %c0_9 = arith.constant 0 : index
    %5 = vector.load %arg4[%c0_5, %c0_6, %c0_7, %c0_8, %c0_9] : memref<1x8x1x4x8xbf16, #tpu.memory_space<vmem>>, vector<1x8x1x4x8xbf16>
    %6 = vector.shape_cast %5 : vector<1x8x1x4x8xbf16> to vector<8x4x8xbf16>
    %c0_10 = arith.constant 0 : index
    %c0_11 = arith.constant 0 : index
    %c0_12 = arith.constant 0 : index
    %c0_13 = arith.constant 0 : index
    %c0_14 = arith.constant 0 : index
    %7 = vector.load %arg5[%c0_10, %c0_11, %c0_12, %c0_13, %c0_14] : memref<1x8x1x4x8xbf16, #tpu.memory_space<vmem>>, vector<1x8x1x4x8xbf16>
    %8 = vector.shape_cast %7 : vector<1x8x1x4x8xbf16> to vector<8x4x8xbf16>
    %c0_15 = arith.constant 0 : index
    %c0_16 = arith.constant 0 : index
    %c0_17 = arith.constant 0 : index
    %9 = vector.load %arg6[%c0_15, %c0_16, %c0_17] : memref<1x8x8xf32, #tpu.memory_space<vmem>>, vector<1x8x8xf32>
    %10 = vector.shape_cast %9 : vector<1x8x8xf32> to vector<8x8xf32>
    %11 = vector.extract_strided_slice %4 {offsets = [0, 0, 0], sizes = [8, 1, 8], strides = [1, 1, 1]} : vector<8x4x8xbf16> to vector<8x1x8xbf16>
    %12 = vector.shape_cast %11 : vector<8x1x8xbf16> to vector<8x8xbf16>
    %13 = vector.extract_strided_slice %6 {offsets = [0, 0, 0], sizes = [8, 1, 8], strides = [1, 1, 1]} : vector<8x4x8xbf16> to vector<8x1x8xbf16>
    %14 = vector.shape_cast %13 : vector<8x1x8xbf16> to vector<8x8xbf16>
    %cst = arith.constant dense<0.000000e+00> : vector<8x8xf32>
    %15 = tpu.matmul %12, %14, %cst {dimension_numbers = #tpu.dot_dimension_numbers<[1], [1], [0], [0], [0, 0, 1, 0], [], []>} : vector<8x8xbf16>, vector<8x8xbf16>, vector<8x8xf32> -> vector<8x8xf32>
    %16 = arith.addf %15, %10 : vector<8x8xf32>
    %c0_18 = arith.constant 0 : index
    %c0_19 = arith.constant 0 : index
    %17 = vector.load %arg8[%c0_18, %c0_19] : memref<8x4xf32, #tpu.memory_space<vmem>>, vector<8x1xf32>
    %cst_20 = arith.constant dense<0xFF800000> : vector<8xf32>
    %18 = vector.multi_reduction <maximumf>, %16, %cst_20 [1] : vector<8x8xf32> to vector<8xf32>
    %19 = vector.shape_cast %18 : vector<8xf32> to vector<8x1xf32>
    %20 = arith.maximumf %17, %19 : vector<8x1xf32>
    %21 = arith.subf %17, %20 : vector<8x1xf32>
    %22 = math.exp %21 : vector<8x1xf32>
    %23 = vector.broadcast %20 : vector<8x1xf32> to vector<8x8xf32>
    %24 = arith.subf %16, %23 : vector<8x8xf32>
    %25 = math.exp %24 : vector<8x8xf32>
    %c0_21 = arith.constant 0 : index
    %c0_22 = arith.constant 0 : index
    %26 = vector.load %arg9[%c0_21, %c0_22] : memref<8x4xf32, #tpu.memory_space<vmem>>, vector<8x1xf32>
    %27 = arith.mulf %22, %26 : vector<8x1xf32>
    %cst_23 = arith.constant dense<0.000000e+00> : vector<8xf32>
    %28 = vector.multi_reduction <add>, %25, %cst_23 [1] : vector<8x8xf32> to vector<8xf32>
    %29 = vector.shape_cast %28 : vector<8xf32> to vector<8x1xf32>
    %30 = arith.addf %27, %29 : vector<8x1xf32>
    %c0_24 = arith.constant 0 : index
    %c0_25 = arith.constant 0 : index
    %31 = vector.load %arg9[%c0_24, %c0_25] : memref<8x4xf32, #tpu.memory_space<vmem>>, vector<8x1xf32>
    tpu.vector_store %arg9[%c0_24, %c0_25], %30 {strides = array<i32>} : memref<8x4xf32, #tpu.memory_space<vmem>>, vector<8x1xf32>,
    %32 = arith.truncf %25 : vector<8x8xf32> to vector<8x8xbf16>
    %33 = vector.extract_strided_slice %8 {offsets = [0, 0, 0], sizes = [8, 1, 8], strides = [1, 1, 1]} : vector<8x4x8xbf16> to vector<8x1x8xbf16>
    %34 = vector.shape_cast %33 : vector<8x1x8xbf16> to vector<8x8xbf16>
    %cst_26 = arith.constant dense<0.000000e+00> : vector<8x8xf32>
    %35 = tpu.matmul %32, %34, %cst_26 {dimension_numbers = #tpu.dot_dimension_numbers<[1], [0], [0], [1], [0, 0, 1, 1], [], []>} : vector<8x8xbf16>, vector<8x8xbf16>, vector<8x8xf32> -> vector<8x8xf32>
    %c0_27 = arith.constant 0 : index
    %c0_28 = arith.constant 0 : index
    %36 = vector.load %arg10[%c0_27, %c0_28] : memref<8x32xf32, #tpu.memory_space<vmem>>, vector<8x8xf32>
    %37 = vector.broadcast %22 : vector<8x1xf32> to vector<8x8xf32>
    %38 = arith.mulf %37, %36 : vector<8x8xf32>
    %39 = arith.addf %38, %35 : vector<8x8xf32>
    %c0_29 = arith.constant 0 : index
    %c0_30 = arith.constant 0 : index
    %40 = vector.load %arg10[%c0_29, %c0_30] : memref<8x32xf32, #tpu.memory_space<vmem>>, vector<8x8xf32>
    tpu.vector_store %arg10[%c0_29, %c0_30], %39 {strides = array<i32>} : memref<8x32xf32, #tpu.memory_space<vmem>>, vector<8x8xf32>,
    %c0_31 = arith.constant 0 : index
    %c0_32 = arith.constant 0 : index
    %41 = vector.load %arg8[%c0_31, %c0_32] : memref<8x4xf32, #tpu.memory_space<vmem>>, vector<8x1xf32>
    tpu.vector_store %arg8[%c0_31, %c0_32], %20 {strides = array<i32>} : memref<8x4xf32, #tpu.memory_space<vmem>>, vector<8x1xf32>,
    %42 = vector.extract_strided_slice %4 {offsets = [0, 1, 0], sizes = [8, 1, 8], strides = [1, 1, 1]} : vector<8x4x8xbf16> to vector<8x1x8xbf16>
    %43 = vector.shape_cast %42 : vector<8x1x8xbf16> to vector<8x8xbf16>
    %44 = vector.extract_strided_slice %6 {offsets = [0, 1, 0], sizes = [8, 1, 8], strides = [1, 1, 1]} : vector<8x4x8xbf16> to vector<8x1x8xbf16>
    %45 = vector.shape_cast %44 : vector<8x1x8xbf16> to vector<8x8xbf16>
    %cst_33 = arith.constant dense<0.000000e+00> : vector<8x8xf32>
    %46 = tpu.matmul %43, %45, %cst_33 {dimension_numbers = #tpu.dot_dimension_numbers<[1], [1], [0], [0], [0, 0, 1, 0], [], []>} : vector<8x8xbf16>, vector<8x8xbf16>, vector<8x8xf32> -> vector<8x8xf32>
    %47 = arith.addf %46, %10 : vector<8x8xf32>
    %c0_34 = arith.constant 0 : index
    %c1 = arith.constant 1 : index
    %48 = vector.load %arg8[%c0_34, %c1] : memref<8x4xf32, #tpu.memory_space<vmem>>, vector<8x1xf32>
    %cst_35 = arith.constant dense<0xFF800000> : vector<8xf32>
    %49 = vector.multi_reduction <maximumf>, %47, %cst_35 [1] : vector<8x8xf32> to vector<8xf32>
    %50 = vector.shape_cast %49 : vector<8xf32> to vector<8x1xf32>
    %51 = arith.maximumf %48, %50 : vector<8x1xf32>
    %52 = arith.subf %48, %51 : vector<8x1xf32>
    %53 = math.exp %52 : vector<8x1xf32>
    %54 = vector.broadcast %51 : vector<8x1xf32> to vector<8x8xf32>
    %55 = arith.subf %47, %54 : vector<8x8xf32>
    %56 = math.exp %55 : vector<8x8xf32>
    %c0_36 = arith.constant 0 : index
    %c1_37 = arith.constant 1 : index
    %57 = vector.load %arg9[%c0_36, %c1_37] : memref<8x4xf32, #tpu.memory_space<vmem>>, vector<8x1xf32>
    %58 = arith.mulf %53, %57 : vector<8x1xf32>
    %cst_38 = arith.constant dense<0.000000e+00> : vector<8xf32>
    %59 = vector.multi_reduction <add>, %56, %cst_38 [1] : vector<8x8xf32> to vector<8xf32>
    %60 = vector.shape_cast %59 : vector<8xf32> to vector<8x1xf32>
    %61 = arith.addf %58, %60 : vector<8x1xf32>
    %c0_39 = arith.constant 0 : index
    %c1_40 = arith.constant 1 : index
    %62 = vector.load %arg9[%c0_39, %c1_40] : memref<8x4xf32, #tpu.memory_space<vmem>>, vector<8x1xf32>
    tpu.vector_store %arg9[%c0_39, %c1_40], %61 {strides = array<i32>} : memref<8x4xf32, #tpu.memory_space<vmem>>, vector<8x1xf32>,
    %63 = arith.truncf %56 : vector<8x8xf32> to vector<8x8xbf16>
    %64 = vector.extract_strided_slice %8 {offsets = [0, 1, 0], sizes = [8, 1, 8], strides = [1, 1, 1]} : vector<8x4x8xbf16> to vector<8x1x8xbf16>
    %65 = vector.shape_cast %64 : vector<8x1x8xbf16> to vector<8x8xbf16>
    %cst_41 = arith.constant dense<0.000000e+00> : vector<8x8xf32>
    %66 = tpu.matmul %63, %65, %cst_41 {dimension_numbers = #tpu.dot_dimension_numbers<[1], [0], [0], [1], [0, 0, 1, 1], [], []>} : vector<8x8xbf16>, vector<8x8xbf16>, vector<8x8xf32> -> vector<8x8xf32>
    %c0_42 = arith.constant 0 : index
    %c8 = arith.constant 8 : index
    %67 = vector.load %arg10[%c0_42, %c8] : memref<8x32xf32, #tpu.memory_space<vmem>>, vector<8x8xf32>
    %68 = vector.broadcast %53 : vector<8x1xf32> to vector<8x8xf32>
    %69 = arith.mulf %68, %67 : vector<8x8xf32>
    %70 = arith.addf %69, %66 : vector<8x8xf32>
    %c0_43 = arith.constant 0 : index
    %c8_44 = arith.constant 8 : index
    %71 = vector.load %arg10[%c0_43, %c8_44] : memref<8x32xf32, #tpu.memory_space<vmem>>, vector<8x8xf32>
    tpu.vector_store %arg10[%c0_43, %c8_44], %70 {strides = array<i32>} : memref<8x32xf32, #tpu.memory_space<vmem>>, vector<8x8xf32>,
    %c0_45 = arith.constant 0 : index
    %c1_46 = arith.constant 1 : index
    %72 = vector.load %arg8[%c0_45, %c1_46] : memref<8x4xf32, #tpu.memory_space<vmem>>, vector<8x1xf32>
    tpu.vector_store %arg8[%c0_45, %c1_46], %51 {strides = array<i32>} : memref<8x4xf32, #tpu.memory_space<vmem>>, vector<8x1xf32>,
    %73 = vector.extract_strided_slice %4 {offsets = [0, 2, 0], sizes = [8, 1, 8], strides = [1, 1, 1]} : vector<8x4x8xbf16> to vector<8x1x8xbf16>
    %74 = vector.shape_cast %73 : vector<8x1x8xbf16> to vector<8x8xbf16>
    %75 = vector.extract_strided_slice %6 {offsets = [0, 2, 0], sizes = [8, 1, 8], strides = [1, 1, 1]} : vector<8x4x8xbf16> to vector<8x1x8xbf16>
    %76 = vector.shape_cast %75 : vector<8x1x8xbf16> to vector<8x8xbf16>
    %cst_47 = arith.constant dense<0.000000e+00> : vector<8x8xf32>
    %77 = tpu.matmul %74, %76, %cst_47 {dimension_numbers = #tpu.dot_dimension_numbers<[1], [1], [0], [0], [0, 0, 1, 0], [], []>} : vector<8x8xbf16>, vector<8x8xbf16>, vector<8x8xf32> -> vector<8x8xf32>
    %78 = arith.addf %77, %10 : vector<8x8xf32>
    %c0_48 = arith.constant 0 : index
    %c2 = arith.constant 2 : index
    %79 = vector.load %arg8[%c0_48, %c2] : memref<8x4xf32, #tpu.memory_space<vmem>>, vector<8x1xf32>
    %cst_49 = arith.constant dense<0xFF800000> : vector<8xf32>
    %80 = vector.multi_reduction <maximumf>, %78, %cst_49 [1] : vector<8x8xf32> to vector<8xf32>
    %81 = vector.shape_cast %80 : vector<8xf32> to vector<8x1xf32>
    %82 = arith.maximumf %79, %81 : vector<8x1xf32>
    %83 = arith.subf %79, %82 : vector<8x1xf32>
    %84 = math.exp %83 : vector<8x1xf32>
    %85 = vector.broadcast %82 : vector<8x1xf32> to vector<8x8xf32>
    %86 = arith.subf %78, %85 : vector<8x8xf32>
    %87 = math.exp %86 : vector<8x8xf32>
    %c0_50 = arith.constant 0 : index
    %c2_51 = arith.constant 2 : index
    %88 = vector.load %arg9[%c0_50, %c2_51] : memref<8x4xf32, #tpu.memory_space<vmem>>, vector<8x1xf32>
    %89 = arith.mulf %84, %88 : vector<8x1xf32>
    %cst_52 = arith.constant dense<0.000000e+00> : vector<8xf32>
    %90 = vector.multi_reduction <add>, %87, %cst_52 [1] : vector<8x8xf32> to vector<8xf32>
    %91 = vector.shape_cast %90 : vector<8xf32> to vector<8x1xf32>
    %92 = arith.addf %89, %91 : vector<8x1xf32>
    %c0_53 = arith.constant 0 : index
    %c2_54 = arith.constant 2 : index
    %93 = vector.load %arg9[%c0_53, %c2_54] : memref<8x4xf32, #tpu.memory_space<vmem>>, vector<8x1xf32>
    tpu.vector_store %arg9[%c0_53, %c2_54], %92 {strides = array<i32>} : memref<8x4xf32, #tpu.memory_space<vmem>>, vector<8x1xf32>,
    %94 = arith.truncf %87 : vector<8x8xf32> to vector<8x8xbf16>
    %95 = vector.extract_strided_slice %8 {offsets = [0, 2, 0], sizes = [8, 1, 8], strides = [1, 1, 1]} : vector<8x4x8xbf16> to vector<8x1x8xbf16>
    %96 = vector.shape_cast %95 : vector<8x1x8xbf16> to vector<8x8xbf16>
    %cst_55 = arith.constant dense<0.000000e+00> : vector<8x8xf32>
    %97 = tpu.matmul %94, %96, %cst_55 {dimension_numbers = #tpu.dot_dimension_numbers<[1], [0], [0], [1], [0, 0, 1, 1], [], []>} : vector<8x8xbf16>, vector<8x8xbf16>, vector<8x8xf32> -> vector<8x8xf32>
    %c0_56 = arith.constant 0 : index
    %c16 = arith.constant 16 : index
    %98 = vector.load %arg10[%c0_56, %c16] : memref<8x32xf32, #tpu.memory_space<vmem>>, vector<8x8xf32>
    %99 = vector.broadcast %84 : vector<8x1xf32> to vector<8x8xf32>
    %100 = arith.mulf %99, %98 : vector<8x8xf32>
    %101 = arith.addf %100, %97 : vector<8x8xf32>
    %c0_57 = arith.constant 0 : index
    %c16_58 = arith.constant 16 : index
    %102 = vector.load %arg10[%c0_57, %c16_58] : memref<8x32xf32, #tpu.memory_space<vmem>>, vector<8x8xf32>
    tpu.vector_store %arg10[%c0_57, %c16_58], %101 {strides = array<i32>} : memref<8x32xf32, #tpu.memory_space<vmem>>, vector<8x8xf32>,
    %c0_59 = arith.constant 0 : index
    %c2_60 = arith.constant 2 : index
    %103 = vector.load %arg8[%c0_59, %c2_60] : memref<8x4xf32, #tpu.memory_space<vmem>>, vector<8x1xf32>
    tpu.vector_store %arg8[%c0_59, %c2_60], %82 {strides = array<i32>} : memref<8x4xf32, #tpu.memory_space<vmem>>, vector<8x1xf32>,
    %104 = vector.extract_strided_slice %4 {offsets = [0, 3, 0], sizes = [8, 1, 8], strides = [1, 1, 1]} : vector<8x4x8xbf16> to vector<8x1x8xbf16>
    %105 = vector.shape_cast %104 : vector<8x1x8xbf16> to vector<8x8xbf16>
    %106 = vector.extract_strided_slice %6 {offsets = [0, 3, 0], sizes = [8, 1, 8], strides = [1, 1, 1]} : vector<8x4x8xbf16> to vector<8x1x8xbf16>
    %107 = vector.shape_cast %106 : vector<8x1x8xbf16> to vector<8x8xbf16>
    %cst_61 = arith.constant dense<0.000000e+00> : vector<8x8xf32>
    %108 = tpu.matmul %105, %107, %cst_61 {dimension_numbers = #tpu.dot_dimension_numbers<[1], [1], [0], [0], [0, 0, 1, 0], [], []>} : vector<8x8xbf16>, vector<8x8xbf16>, vector<8x8xf32> -> vector<8x8xf32>
    %109 = arith.addf %108, %10 : vector<8x8xf32>
    %c0_62 = arith.constant 0 : index
    %c3 = arith.constant 3 : index
    %110 = vector.load %arg8[%c0_62, %c3] : memref<8x4xf32, #tpu.memory_space<vmem>>, vector<8x1xf32>
    %cst_63 = arith.constant dense<0xFF800000> : vector<8xf32>
    %111 = vector.multi_reduction <maximumf>, %109, %cst_63 [1] : vector<8x8xf32> to vector<8xf32>
    %112 = vector.shape_cast %111 : vector<8xf32> to vector<8x1xf32>
    %113 = arith.maximumf %110, %112 : vector<8x1xf32>
    %114 = arith.subf %110, %113 : vector<8x1xf32>
    %115 = math.exp %114 : vector<8x1xf32>
    %116 = vector.broadcast %113 : vector<8x1xf32> to vector<8x8xf32>
    %117 = arith.subf %109, %116 : vector<8x8xf32>
    %118 = math.exp %117 : vector<8x8xf32>
    %c0_64 = arith.constant 0 : index
    %c3_65 = arith.constant 3 : index
    %119 = vector.load %arg9[%c0_64, %c3_65] : memref<8x4xf32, #tpu.memory_space<vmem>>, vector<8x1xf32>
    %120 = arith.mulf %115, %119 : vector<8x1xf32>
    %cst_66 = arith.constant dense<0.000000e+00> : vector<8xf32>
    %121 = vector.multi_reduction <add>, %118, %cst_66 [1] : vector<8x8xf32> to vector<8xf32>
    %122 = vector.shape_cast %121 : vector<8xf32> to vector<8x1xf32>
    %123 = arith.addf %120, %122 : vector<8x1xf32>
    %c0_67 = arith.constant 0 : index
    %c3_68 = arith.constant 3 : index
    %124 = vector.load %arg9[%c0_67, %c3_68] : memref<8x4xf32, #tpu.memory_space<vmem>>, vector<8x1xf32>
    tpu.vector_store %arg9[%c0_67, %c3_68], %123 {strides = array<i32>} : memref<8x4xf32, #tpu.memory_space<vmem>>, vector<8x1xf32>,
    %125 = arith.truncf %118 : vector<8x8xf32> to vector<8x8xbf16>
    %126 = vector.extract_strided_slice %8 {offsets = [0, 3, 0], sizes = [8, 1, 8], strides = [1, 1, 1]} : vector<8x4x8xbf16> to vector<8x1x8xbf16>
    %127 = vector.shape_cast %126 : vector<8x1x8xbf16> to vector<8x8xbf16>
    %cst_69 = arith.constant dense<0.000000e+00> : vector<8x8xf32>
    %128 = tpu.matmul %125, %127, %cst_69 {dimension_numbers = #tpu.dot_dimension_numbers<[1], [0], [0], [1], [0, 0, 1, 1], [], []>} : vector<8x8xbf16>, vector<8x8xbf16>, vector<8x8xf32> -> vector<8x8xf32>
    %c0_70 = arith.constant 0 : index
    %c24 = arith.constant 24 : index
    %129 = vector.load %arg10[%c0_70, %c24] : memref<8x32xf32, #tpu.memory_space<vmem>>, vector<8x8xf32>
    %130 = vector.broadcast %115 : vector<8x1xf32> to vector<8x8xf32>
    %131 = arith.mulf %130, %129 : vector<8x8xf32>
    %132 = arith.addf %131, %128 : vector<8x8xf32>
    %c0_71 = arith.constant 0 : index
    %c24_72 = arith.constant 24 : index
    %133 = vector.load %arg10[%c0_71, %c24_72] : memref<8x32xf32, #tpu.memory_space<vmem>>, vector<8x8xf32>
    tpu.vector_store %arg10[%c0_71, %c24_72], %132 {strides = array<i32>} : memref<8x32xf32, #tpu.memory_space<vmem>>, vector<8x8xf32>,
    %c0_73 = arith.constant 0 : index
    %c3_74 = arith.constant 3 : index
    %134 = vector.load %arg8[%c0_73, %c3_74] : memref<8x4xf32, #tpu.memory_space<vmem>>, vector<8x1xf32>
    tpu.vector_store %arg8[%c0_73, %c3_74], %113 {strides = array<i32>} : memref<8x4xf32, #tpu.memory_space<vmem>>, vector<8x1xf32>,
    %c0_i32_75 = arith.constant 0 : i32
    %135 = arith.cmpi eq, %arg2, %c0_i32_75 : i32
    %136 = arith.extui %135 : i1 to i32
    %c0_i32_76 = arith.constant 0 : i32
    %137 = arith.cmpi ne, %136, %c0_i32_76 : i32
    scf.if %137 {
      %c0_77 = arith.constant 0 : index
      %c0_78 = arith.constant 0 : index
      %138 = vector.load %arg9[%c0_77, %c0_78] : memref<8x4xf32, #tpu.memory_space<vmem>>, vector<8x1xf32>
      %139 = tpu.reciprocal %138 : vector<8x1xf32> -> vector<8x1xf32>
      %c0_79 = arith.constant 0 : index
      %c0_80 = arith.constant 0 : index
      %140 = vector.load %arg10[%c0_79, %c0_80] : memref<8x32xf32, #tpu.memory_space<vmem>>, vector<8x8xf32>
      %141 = vector.broadcast %139 : vector<8x1xf32> to vector<8x8xf32>
      %142 = arith.mulf %140, %141 : vector<8x8xf32>
      %143 = arith.truncf %142 : vector<8x8xf32> to vector<8x8xbf16>
      %c0_81 = arith.constant 0 : index
      %c0_82 = arith.constant 0 : index
      %c0_83 = arith.constant 0 : index
      %144 = vector.load %arg7[%c0_81, %c0_82, %c0_83] : memref<1x8x32xbf16, #tpu.memory_space<vmem>>, vector<1x8x8xbf16>
      %145 = vector.shape_cast %144 : vector<1x8x8xbf16> to vector<8x8xbf16>
      %146 = vector.shape_cast %143 : vector<8x8xbf16> to vector<1x8x8xbf16>
      tpu.vector_store %arg7[%c0_81, %c0_82, %c0_83], %146 {strides = array<i32>} : memref<1x8x32xbf16, #tpu.memory_space<vmem>>, vector<1x8x8xbf16>,
      %c0_84 = arith.constant 0 : index
      %c1_85 = arith.constant 1 : index
      %147 = vector.load %arg9[%c0_84, %c1_85] : memref<8x4xf32, #tpu.memory_space<vmem>>, vector<8x1xf32>
      %148 = tpu.reciprocal %147 : vector<8x1xf32> -> vector<8x1xf32>
      %c0_86 = arith.constant 0 : index
      %c8_87 = arith.constant 8 : index
      %149 = vector.load %arg10[%c0_86, %c8_87] : memref<8x32xf32, #tpu.memory_space<vmem>>, vector<8x8xf32>
      %150 = vector.broadcast %148 : vector<8x1xf32> to vector<8x8xf32>
      %151 = arith.mulf %149, %150 : vector<8x8xf32>
      %152 = arith.truncf %151 : vector<8x8xf32> to vector<8x8xbf16>
      %c0_88 = arith.constant 0 : index
      %c0_89 = arith.constant 0 : index
      %c8_90 = arith.constant 8 : index
      %153 = vector.load %arg7[%c0_88, %c0_89, %c8_90] : memref<1x8x32xbf16, #tpu.memory_space<vmem>>, vector<1x8x8xbf16>
      %154 = vector.shape_cast %153 : vector<1x8x8xbf16> to vector<8x8xbf16>
      %155 = vector.shape_cast %152 : vector<8x8xbf16> to vector<1x8x8xbf16>
      tpu.vector_store %arg7[%c0_88, %c0_89, %c8_90], %155 {strides = array<i32>} : memref<1x8x32xbf16, #tpu.memory_space<vmem>>, vector<1x8x8xbf16>,
      %c0_91 = arith.constant 0 : index
      %c2_92 = arith.constant 2 : index
      %156 = vector.load %arg9[%c0_91, %c2_92] : memref<8x4xf32, #tpu.memory_space<vmem>>, vector<8x1xf32>
      %157 = tpu.reciprocal %156 : vector<8x1xf32> -> vector<8x1xf32>
      %c0_93 = arith.constant 0 : index
      %c16_94 = arith.constant 16 : index
      %158 = vector.load %arg10[%c0_93, %c16_94] : memref<8x32xf32, #tpu.memory_space<vmem>>, vector<8x8xf32>
      %159 = vector.broadcast %157 : vector<8x1xf32> to vector<8x8xf32>
      %160 = arith.mulf %158, %159 : vector<8x8xf32>
      %161 = arith.truncf %160 : vector<8x8xf32> to vector<8x8xbf16>
      %c0_95 = arith.constant 0 : index
      %c0_96 = arith.constant 0 : index
      %c16_97 = arith.constant 16 : index
      %162 = vector.load %arg7[%c0_95, %c0_96, %c16_97] : memref<1x8x32xbf16, #tpu.memory_space<vmem>>, vector<1x8x8xbf16>
      %163 = vector.shape_cast %162 : vector<1x8x8xbf16> to vector<8x8xbf16>
      %164 = vector.shape_cast %161 : vector<8x8xbf16> to vector<1x8x8xbf16>
      tpu.vector_store %arg7[%c0_95, %c0_96, %c16_97], %164 {strides = array<i32>} : memref<1x8x32xbf16, #tpu.memory_space<vmem>>, vector<1x8x8xbf16>,
      %c0_98 = arith.constant 0 : index
      %c3_99 = arith.constant 3 : index
      %165 = vector.load %arg9[%c0_98, %c3_99] : memref<8x4xf32, #tpu.memory_space<vmem>>, vector<8x1xf32>
      %166 = tpu.reciprocal %165 : vector<8x1xf32> -> vector<8x1xf32>
      %c0_100 = arith.constant 0 : index
      %c24_101 = arith.constant 24 : index
      %167 = vector.load %arg10[%c0_100, %c24_101] : memref<8x32xf32, #tpu.memory_space<vmem>>, vector<8x8xf32>
      %168 = vector.broadcast %166 : vector<8x1xf32> to vector<8x8xf32>
      %169 = arith.mulf %167, %168 : vector<8x8xf32>
      %170 = arith.truncf %169 : vector<8x8xf32> to vector<8x8xbf16>
      %c0_102 = arith.constant 0 : index
      %c0_103 = arith.constant 0 : index
      %c24_104 = arith.constant 24 : index
      %171 = vector.load %arg7[%c0_102, %c0_103, %c24_104] : memref<1x8x32xbf16, #tpu.memory_space<vmem>>, vector<1x8x8xbf16>
      %172 = vector.shape_cast %171 : vector<1x8x8xbf16> to vector<8x8xbf16>
      %173 = vector.shape_cast %170 : vector<8x8xbf16> to vector<1x8x8xbf16>
      tpu.vector_store %arg7[%c0_102, %c0_103, %c24_104], %173 {strides = array<i32>} : memref<1x8x32xbf16, #tpu.memory_space<vmem>>, vector<1x8x8xbf16>,
    } else {
    }
    return
  }
  func.func @transform_0(%arg0: i32, %arg1: i32, %arg2: i32) -> (i32, i32, i32, i32, i32) {
    %c0_i32 = arith.constant 0 : i32
    %c0_i32_0 = arith.constant 0 : i32
    %c0_i32_1 = arith.constant 0 : i32
    %c0_i32_2 = arith.constant 0 : i32
    return %arg0, %arg1, %c0_i32, %c0_i32_0, %c0_i32_1 : i32, i32, i32, i32, i32
  }
  func.func @transform_1(%arg0: i32, %arg1: i32, %arg2: i32) -> (i32, i32, i32, i32, i32) {
    %c1_i32 = arith.constant 1 : i32
    %c0_i32 = arith.constant 0 : i32
    %c0_i32_0 = arith.constant 0 : i32
    %c0_i32_1 = arith.constant 0 : i32
    return %arg0, %arg2, %c1_i32, %c0_i32, %c0_i32_0 : i32, i32, i32, i32, i32
  }
  func.func @transform_2(%arg0: i32, %arg1: i32, %arg2: i32) -> (i32, i32, i32, i32, i32) {
    %c2_i32 = arith.constant 2 : i32
    %c0_i32 = arith.constant 0 : i32
    %c0_i32_0 = arith.constant 0 : i32
    %c0_i32_1 = arith.constant 0 : i32
    return %arg0, %arg2, %c2_i32, %c0_i32, %c0_i32_0 : i32, i32, i32, i32, i32
  }
  func.func @transform_3(%arg0: i32, %arg1: i32, %arg2: i32) -> (i32, i32, i32) {
    %c0_i32 = arith.constant 0 : i32
    return %arg0, %arg1, %arg2 : i32, i32, i32
  }
  func.func @transform_4(%arg0: i32, %arg1: i32, %arg2: i32) -> (i32, i32, i32) {
    %c0_i32 = arith.constant 0 : i32
    %c0_i32_0 = arith.constant 0 : i32
    return %arg0, %arg1, %c0_i32 : i32, i32, i32
  }
}

module attributes {stable_mosaic.version = 11 : i64} {
  func.func @kernel(%arg0: i32, %arg1: i32, %arg2: i32, %arg3: memref<16x32xf32, #tpu.memory_space<vmem>>, %arg4: memref<1x32xf32, #tpu.memory_space<vmem>>, %arg5: memref<1x32xf32, #tpu.memory_space<vmem>>, %arg6: memref<32x96xbf16, #tpu.memory_space<vmem>>, %arg7: memref<1x96xf32, #tpu.memory_space<vmem>>, %arg8: memref<16x96xbf16, #tpu.memory_space<vmem>>, %arg9: memref<16x96xf32, #tpu.memory_space<vmem>>) attributes {dimension_semantics = [#tpu.dimension_semantics<parallel>, #tpu.dimension_semantics<parallel>, #tpu.dimension_semantics<arbitrary>], iteration_bounds = array<i64: 1, 1, 1>, scalar_prefetch = 0 : i64, scratch_operands = 1 : i64, tpu.core_type = #tpu.core_type<tc>, window_params = [{transform_indices = @transform_0, window_bounds = array<i64: 16, 32>}, {transform_indices = @transform_1, window_bounds = array<i64: 1, 32>}, {transform_indices = @transform_2, window_bounds = array<i64: 1, 32>}, {transform_indices = @transform_3, window_bounds = array<i64: 32, 96>}, {transform_indices = @transform_4, window_bounds = array<i64: 1, 96>}, {transform_indices = @transform_5, window_bounds = array<i64: 16, 96>}]} {
    %c0_i32 = arith.constant 0 : i32
    %0 = arith.cmpi eq, %arg2, %c0_i32 : i32
    %1 = arith.extui %0 : i1 to i32
    %c0_i32_0 = arith.constant 0 : i32
    %2 = arith.cmpi ne, %1, %c0_i32_0 : i32
    scf.if %2 {
      %cst_19 = arith.constant 0.000000e+00 : f32
      %38 = vector.broadcast %cst_19 : f32 to vector<16x96xf32>
      %c0_20 = arith.constant 0 : index
      %c0_21 = arith.constant 0 : index
      %39 = vector.load %arg9[%c0_20, %c0_21] : memref<16x96xf32, #tpu.memory_space<vmem>>, vector<16x96xf32>
      tpu.vector_store %arg9[%c0_20, %c0_21], %38 {strides = array<i32>} : memref<16x96xf32, #tpu.memory_space<vmem>>, vector<16x96xf32>,
    } else {
    }
    %c0 = arith.constant 0 : index
    %c0_1 = arith.constant 0 : index
    %3 = vector.load %arg3[%c0, %c0_1] : memref<16x32xf32, #tpu.memory_space<vmem>>, vector<16x32xf32>
    %cst = arith.constant dense<0.000000e+00> : vector<16xf32>
    %4 = vector.multi_reduction <add>, %3, %cst [1] : vector<16x32xf32> to vector<16xf32>
    %5 = vector.shape_cast %4 : vector<16xf32> to vector<16x1xf32>
    %cst_2 = arith.constant 3.200000e+01 : f32
    %6 = vector.broadcast %cst_2 : f32 to vector<16x1xf32>
    %7 = arith.divf %5, %6 : vector<16x1xf32>
    %8 = vector.broadcast %7 : vector<16x1xf32> to vector<16x32xf32>
    %9 = arith.subf %3, %8 : vector<16x32xf32>
    %10 = arith.mulf %9, %9 : vector<16x32xf32>
    %cst_3 = arith.constant dense<0.000000e+00> : vector<16xf32>
    %11 = vector.multi_reduction <add>, %10, %cst_3 [1] : vector<16x32xf32> to vector<16xf32>
    %12 = vector.shape_cast %11 : vector<16xf32> to vector<16x1xf32>
    %cst_4 = arith.constant 3.100000e+01 : f32
    %13 = vector.broadcast %cst_4 : f32 to vector<16x1xf32>
    %14 = arith.divf %12, %13 : vector<16x1xf32>
    %15 = math.sqrt %14 : vector<16x1xf32>
    %cst_5 = arith.constant 9.99999997E-7 : f32
    %16 = vector.broadcast %cst_5 : f32 to vector<16x1xf32>
    %17 = arith.addf %15, %16 : vector<16x1xf32>
    %18 = tpu.reciprocal %17 : vector<16x1xf32> -> vector<16x1xf32>
    %c0_6 = arith.constant 0 : index
    %c0_7 = arith.constant 0 : index
    %19 = vector.load %arg4[%c0_6, %c0_7] : memref<1x32xf32, #tpu.memory_space<vmem>>, vector<1x32xf32>
    %20 = vector.broadcast %7 : vector<16x1xf32> to vector<16x32xf32>
    %21 = arith.subf %3, %20 : vector<16x32xf32>
    %22 = vector.broadcast %18 : vector<16x1xf32> to vector<16x32xf32>
    %23 = arith.mulf %21, %22 : vector<16x32xf32>
    %24 = vector.broadcast %19 : vector<1x32xf32> to vector<16x32xf32>
    %25 = arith.mulf %24, %23 : vector<16x32xf32>
    %c0_8 = arith.constant 0 : index
    %c0_9 = arith.constant 0 : index
    %26 = vector.load %arg5[%c0_8, %c0_9] : memref<1x32xf32, #tpu.memory_space<vmem>>, vector<1x32xf32>
    %27 = vector.broadcast %26 : vector<1x32xf32> to vector<16x32xf32>
    %28 = arith.addf %25, %27 : vector<16x32xf32>
    %c0_10 = arith.constant 0 : index
    %c0_11 = arith.constant 0 : index
    %29 = vector.load %arg9[%c0_10, %c0_11] : memref<16x96xf32, #tpu.memory_space<vmem>>, vector<16x96xf32>
    %30 = arith.truncf %28 : vector<16x32xf32> to vector<16x32xbf16>
    %c0_12 = arith.constant 0 : index
    %c0_13 = arith.constant 0 : index
    %31 = vector.load %arg6[%c0_12, %c0_13] : memref<32x96xbf16, #tpu.memory_space<vmem>>, vector<32x96xbf16>
    %cst_14 = arith.constant dense<0.000000e+00> : vector<16x96xf32>
    %32 = tpu.matmul %30, %31, %cst_14 {dimension_numbers = #tpu.dot_dimension_numbers<[1], [0], [0], [1], [0, 0, 1, 1], [], []>} : vector<16x32xbf16>, vector<32x96xbf16>, vector<16x96xf32> -> vector<16x96xf32>
    %33 = arith.addf %29, %32 : vector<16x96xf32>
    %c0_15 = arith.constant 0 : index
    %c0_16 = arith.constant 0 : index
    %34 = vector.load %arg9[%c0_15, %c0_16] : memref<16x96xf32, #tpu.memory_space<vmem>>, vector<16x96xf32>
    tpu.vector_store %arg9[%c0_15, %c0_16], %33 {strides = array<i32>} : memref<16x96xf32, #tpu.memory_space<vmem>>, vector<16x96xf32>,
    %c0_i32_17 = arith.constant 0 : i32
    %35 = arith.cmpi eq, %arg2, %c0_i32_17 : i32
    %36 = arith.extui %35 : i1 to i32
    %c0_i32_18 = arith.constant 0 : i32
    %37 = arith.cmpi ne, %36, %c0_i32_18 : i32
    scf.if %37 {
      %c0_19 = arith.constant 0 : index
      %c0_20 = arith.constant 0 : index
      %38 = vector.load %arg9[%c0_19, %c0_20] : memref<16x96xf32, #tpu.memory_space<vmem>>, vector<16x96xf32>
      %c0_21 = arith.constant 0 : index
      %c0_22 = arith.constant 0 : index
      %39 = vector.load %arg7[%c0_21, %c0_22] : memref<1x96xf32, #tpu.memory_space<vmem>>, vector<1x96xf32>
      %40 = vector.broadcast %39 : vector<1x96xf32> to vector<16x96xf32>
      %41 = arith.addf %38, %40 : vector<16x96xf32>
      %42 = arith.truncf %41 : vector<16x96xf32> to vector<16x96xbf16>
      %c0_23 = arith.constant 0 : index
      %c0_24 = arith.constant 0 : index
      %43 = vector.load %arg8[%c0_23, %c0_24] : memref<16x96xbf16, #tpu.memory_space<vmem>>, vector<16x96xbf16>
      tpu.vector_store %arg8[%c0_23, %c0_24], %42 {strides = array<i32>} : memref<16x96xbf16, #tpu.memory_space<vmem>>, vector<16x96xbf16>,
    } else {
    }
    return
  }
  func.func @transform_0(%arg0: i32, %arg1: i32, %arg2: i32) -> (i32, i32) {
    %c0_i32 = arith.constant 0 : i32
    return %arg0, %arg2 : i32, i32
  }
  func.func @transform_1(%arg0: i32, %arg1: i32, %arg2: i32) -> (i32, i32) {
    %c0_i32 = arith.constant 0 : i32
    %c0_i32_0 = arith.constant 0 : i32
    return %c0_i32, %arg2 : i32, i32
  }
  func.func @transform_2(%arg0: i32, %arg1: i32, %arg2: i32) -> (i32, i32) {
    %c0_i32 = arith.constant 0 : i32
    %c0_i32_0 = arith.constant 0 : i32
    return %c0_i32, %arg2 : i32, i32
  }
  func.func @transform_3(%arg0: i32, %arg1: i32, %arg2: i32) -> (i32, i32) {
    %c0_i32 = arith.constant 0 : i32
    return %arg2, %arg1 : i32, i32
  }
  func.func @transform_4(%arg0: i32, %arg1: i32, %arg2: i32) -> (i32, i32) {
    %c0_i32 = arith.constant 0 : i32
    %c0_i32_0 = arith.constant 0 : i32
    return %c0_i32, %arg1 : i32, i32
  }
  func.func @transform_5(%arg0: i32, %arg1: i32, %arg2: i32) -> (i32, i32) {
    %c0_i32 = arith.constant 0 : i32
    return %arg0, %arg1 : i32, i32
  }
}

module attributes {stable_mosaic.version = 11 : i64} {
  func.func @kernel(%arg0: i32, %arg1: i32, %arg2: i32, %arg3: memref<16x32xbf16, #tpu.memory_space<vmem>>, %arg4: memref<32x32xbf16, #tpu.memory_space<vmem>>, %arg5: memref<1x32xf32, #tpu.memory_space<vmem>>, %arg6: memref<16x32xf32, #tpu.memory_space<vmem>>, %arg7: memref<16x32xf32, #tpu.memory_space<vmem>>, %arg8: memref<16x32xf32, #tpu.memory_space<vmem>>) attributes {dimension_semantics = [#tpu.dimension_semantics<parallel>, #tpu.dimension_semantics<parallel>, #tpu.dimension_semantics<arbitrary>], iteration_bounds = array<i64: 1, 1, 1>, scalar_prefetch = 0 : i64, scratch_operands = 1 : i64, tpu.core_type = #tpu.core_type<tc>, window_params = [{transform_indices = @transform_0, window_bounds = array<i64: 16, 32>}, {transform_indices = @transform_1, window_bounds = array<i64: 32, 32>}, {transform_indices = @transform_2, window_bounds = array<i64: 1, 32>}, {transform_indices = @transform_3, window_bounds = array<i64: 16, 32>}, {transform_indices = @transform_4, window_bounds = array<i64: 16, 32>}]} {
    %c0_i32 = arith.constant 0 : i32
    %0 = arith.cmpi eq, %arg2, %c0_i32 : i32
    %1 = arith.extui %0 : i1 to i32
    %c0_i32_0 = arith.constant 0 : i32
    %2 = arith.cmpi ne, %1, %c0_i32_0 : i32
    scf.if %2 {
      %cst_10 = arith.constant 0.000000e+00 : f32
      %12 = vector.broadcast %cst_10 : f32 to vector<16x32xf32>
      %c0_11 = arith.constant 0 : index
      %c0_12 = arith.constant 0 : index
      %13 = vector.load %arg8[%c0_11, %c0_12] : memref<16x32xf32, #tpu.memory_space<vmem>>, vector<16x32xf32>
      tpu.vector_store %arg8[%c0_11, %c0_12], %12 {strides = array<i32>} : memref<16x32xf32, #tpu.memory_space<vmem>>, vector<16x32xf32>,
    } else {
    }
    %c0 = arith.constant 0 : index
    %c0_1 = arith.constant 0 : index
    %3 = vector.load %arg3[%c0, %c0_1] : memref<16x32xbf16, #tpu.memory_space<vmem>>, vector<16x32xbf16>
    %c0_2 = arith.constant 0 : index
    %c0_3 = arith.constant 0 : index
    %4 = vector.load %arg8[%c0_2, %c0_3] : memref<16x32xf32, #tpu.memory_space<vmem>>, vector<16x32xf32>
    %c0_4 = arith.constant 0 : index
    %c0_5 = arith.constant 0 : index
    %5 = vector.load %arg4[%c0_4, %c0_5] : memref<32x32xbf16, #tpu.memory_space<vmem>>, vector<32x32xbf16>
    %cst = arith.constant dense<0.000000e+00> : vector<16x32xf32>
    %6 = tpu.matmul %3, %5, %cst {dimension_numbers = #tpu.dot_dimension_numbers<[1], [0], [0], [1], [0, 0, 1, 1], [], []>} : vector<16x32xbf16>, vector<32x32xbf16>, vector<16x32xf32> -> vector<16x32xf32>
    %7 = arith.addf %4, %6 : vector<16x32xf32>
    %c0_6 = arith.constant 0 : index
    %c0_7 = arith.constant 0 : index
    %8 = vector.load %arg8[%c0_6, %c0_7] : memref<16x32xf32, #tpu.memory_space<vmem>>, vector<16x32xf32>
    tpu.vector_store %arg8[%c0_6, %c0_7], %7 {strides = array<i32>} : memref<16x32xf32, #tpu.memory_space<vmem>>, vector<16x32xf32>,
    %c0_i32_8 = arith.constant 0 : i32
    %9 = arith.cmpi eq, %arg2, %c0_i32_8 : i32
    %10 = arith.extui %9 : i1 to i32
    %c0_i32_9 = arith.constant 0 : i32
    %11 = arith.cmpi ne, %10, %c0_i32_9 : i32
    scf.if %11 {
      %c0_10 = arith.constant 0 : index
      %c0_11 = arith.constant 0 : index
      %12 = vector.load %arg8[%c0_10, %c0_11] : memref<16x32xf32, #tpu.memory_space<vmem>>, vector<16x32xf32>
      %c0_12 = arith.constant 0 : index
      %c0_13 = arith.constant 0 : index
      %13 = vector.load %arg5[%c0_12, %c0_13] : memref<1x32xf32, #tpu.memory_space<vmem>>, vector<1x32xf32>
      %14 = vector.broadcast %13 : vector<1x32xf32> to vector<16x32xf32>
      %15 = arith.addf %12, %14 : vector<16x32xf32>
      %c0_14 = arith.constant 0 : index
      %c0_15 = arith.constant 0 : index
      %16 = vector.load %arg6[%c0_14, %c0_15] : memref<16x32xf32, #tpu.memory_space<vmem>>, vector<16x32xf32>
      %17 = arith.addf %15, %16 : vector<16x32xf32>
      %c0_16 = arith.constant 0 : index
      %c0_17 = arith.constant 0 : index
      %18 = vector.load %arg7[%c0_16, %c0_17] : memref<16x32xf32, #tpu.memory_space<vmem>>, vector<16x32xf32>
      tpu.vector_store %arg7[%c0_16, %c0_17], %17 {strides = array<i32>} : memref<16x32xf32, #tpu.memory_space<vmem>>, vector<16x32xf32>,
    } else {
    }
    return
  }
  func.func @transform_0(%arg0: i32, %arg1: i32, %arg2: i32) -> (i32, i32) {
    %c0_i32 = arith.constant 0 : i32
    return %arg0, %arg2 : i32, i32
  }
  func.func @transform_1(%arg0: i32, %arg1: i32, %arg2: i32) -> (i32, i32) {
    %c0_i32 = arith.constant 0 : i32
    return %arg2, %arg1 : i32, i32
  }
  func.func @transform_2(%arg0: i32, %arg1: i32, %arg2: i32) -> (i32, i32) {
    %c0_i32 = arith.constant 0 : i32
    %c0_i32_0 = arith.constant 0 : i32
    return %c0_i32, %arg1 : i32, i32
  }
  func.func @transform_3(%arg0: i32, %arg1: i32, %arg2: i32) -> (i32, i32) {
    %c0_i32 = arith.constant 0 : i32
    return %arg0, %arg1 : i32, i32
  }
  func.func @transform_4(%arg0: i32, %arg1: i32, %arg2: i32) -> (i32, i32) {
    %c0_i32 = arith.constant 0 : i32
    return %arg0, %arg1 : i32, i32
  }
}

module attributes {stable_mosaic.version = 11 : i64} {
  func.func @kernel(%arg0: i32, %arg1: i32, %arg2: i32, %arg3: memref<16x32xf32, #tpu.memory_space<vmem>>, %arg4: memref<1x32xf32, #tpu.memory_space<vmem>>, %arg5: memref<1x32xf32, #tpu.memory_space<vmem>>, %arg6: memref<32x32xbf16, #tpu.memory_space<vmem>>, %arg7: memref<1x32xf32, #tpu.memory_space<vmem>>, %arg8: memref<16x32xbf16, #tpu.memory_space<vmem>>, %arg9: memref<16x32xf32, #tpu.memory_space<vmem>>) attributes {dimension_semantics = [#tpu.dimension_semantics<parallel>, #tpu.dimension_semantics<parallel>, #tpu.dimension_semantics<arbitrary>], iteration_bounds = array<i64: 1, 1, 1>, scalar_prefetch = 0 : i64, scratch_operands = 1 : i64, tpu.core_type = #tpu.core_type<tc>, window_params = [{transform_indices = @transform_0, window_bounds = array<i64: 16, 32>}, {transform_indices = @transform_1, window_bounds = array<i64: 1, 32>}, {transform_indices = @transform_2, window_bounds = array<i64: 1, 32>}, {transform_indices = @transform_3, window_bounds = array<i64: 32, 32>}, {transform_indices = @transform_4, window_bounds = array<i64: 1, 32>}, {transform_indices = @transform_5, window_bounds = array<i64: 16, 32>}]} {
    %c0_i32 = arith.constant 0 : i32
    %0 = arith.cmpi eq, %arg2, %c0_i32 : i32
    %1 = arith.extui %0 : i1 to i32
    %c0_i32_0 = arith.constant 0 : i32
    %2 = arith.cmpi ne, %1, %c0_i32_0 : i32
    scf.if %2 {
      %cst_19 = arith.constant 0.000000e+00 : f32
      %38 = vector.broadcast %cst_19 : f32 to vector<16x32xf32>
      %c0_20 = arith.constant 0 : index
      %c0_21 = arith.constant 0 : index
      %39 = vector.load %arg9[%c0_20, %c0_21] : memref<16x32xf32, #tpu.memory_space<vmem>>, vector<16x32xf32>
      tpu.vector_store %arg9[%c0_20, %c0_21], %38 {strides = array<i32>} : memref<16x32xf32, #tpu.memory_space<vmem>>, vector<16x32xf32>,
    } else {
    }
    %c0 = arith.constant 0 : index
    %c0_1 = arith.constant 0 : index
    %3 = vector.load %arg3[%c0, %c0_1] : memref<16x32xf32, #tpu.memory_space<vmem>>, vector<16x32xf32>
    %cst = arith.constant dense<0.000000e+00> : vector<16xf32>
    %4 = vector.multi_reduction <add>, %3, %cst [1] : vector<16x32xf32> to vector<16xf32>
    %5 = vector.shape_cast %4 : vector<16xf32> to vector<16x1xf32>
    %cst_2 = arith.constant 3.200000e+01 : f32
    %6 = vector.broadcast %cst_2 : f32 to vector<16x1xf32>
    %7 = arith.divf %5, %6 : vector<16x1xf32>
    %8 = vector.broadcast %7 : vector<16x1xf32> to vector<16x32xf32>
    %9 = arith.subf %3, %8 : vector<16x32xf32>
    %10 = arith.mulf %9, %9 : vector<16x32xf32>
    %cst_3 = arith.constant dense<0.000000e+00> : vector<16xf32>
    %11 = vector.multi_reduction <add>, %10, %cst_3 [1] : vector<16x32xf32> to vector<16xf32>
    %12 = vector.shape_cast %11 : vector<16xf32> to vector<16x1xf32>
    %cst_4 = arith.constant 3.100000e+01 : f32
    %13 = vector.broadcast %cst_4 : f32 to vector<16x1xf32>
    %14 = arith.divf %12, %13 : vector<16x1xf32>
    %15 = math.sqrt %14 : vector<16x1xf32>
    %cst_5 = arith.constant 9.99999997E-7 : f32
    %16 = vector.broadcast %cst_5 : f32 to vector<16x1xf32>
    %17 = arith.addf %15, %16 : vector<16x1xf32>
    %18 = tpu.reciprocal %17 : vector<16x1xf32> -> vector<16x1xf32>
    %c0_6 = arith.constant 0 : index
    %c0_7 = arith.constant 0 : index
    %19 = vector.load %arg4[%c0_6, %c0_7] : memref<1x32xf32, #tpu.memory_space<vmem>>, vector<1x32xf32>
    %20 = vector.broadcast %7 : vector<16x1xf32> to vector<16x32xf32>
    %21 = arith.subf %3, %20 : vector<16x32xf32>
    %22 = vector.broadcast %18 : vector<16x1xf32> to vector<16x32xf32>
    %23 = arith.mulf %21, %22 : vector<16x32xf32>
    %24 = vector.broadcast %19 : vector<1x32xf32> to vector<16x32xf32>
    %25 = arith.mulf %24, %23 : vector<16x32xf32>
    %c0_8 = arith.constant 0 : index
    %c0_9 = arith.constant 0 : index
    %26 = vector.load %arg5[%c0_8, %c0_9] : memref<1x32xf32, #tpu.memory_space<vmem>>, vector<1x32xf32>
    %27 = vector.broadcast %26 : vector<1x32xf32> to vector<16x32xf32>
    %28 = arith.addf %25, %27 : vector<16x32xf32>
    %c0_10 = arith.constant 0 : index
    %c0_11 = arith.constant 0 : index
    %29 = vector.load %arg9[%c0_10, %c0_11] : memref<16x32xf32, #tpu.memory_space<vmem>>, vector<16x32xf32>
    %30 = arith.truncf %28 : vector<16x32xf32> to vector<16x32xbf16>
    %c0_12 = arith.constant 0 : index
    %c0_13 = arith.constant 0 : index
    %31 = vector.load %arg6[%c0_12, %c0_13] : memref<32x32xbf16, #tpu.memory_space<vmem>>, vector<32x32xbf16>
    %cst_14 = arith.constant dense<0.000000e+00> : vector<16x32xf32>
    %32 = tpu.matmul %30, %31, %cst_14 {dimension_numbers = #tpu.dot_dimension_numbers<[1], [0], [0], [1], [0, 0, 1, 1], [], []>} : vector<16x32xbf16>, vector<32x32xbf16>, vector<16x32xf32> -> vector<16x32xf32>
    %33 = arith.addf %29, %32 : vector<16x32xf32>
    %c0_15 = arith.constant 0 : index
    %c0_16 = arith.constant 0 : index
    %34 = vector.load %arg9[%c0_15, %c0_16] : memref<16x32xf32, #tpu.memory_space<vmem>>, vector<16x32xf32>
    tpu.vector_store %arg9[%c0_15, %c0_16], %33 {strides = array<i32>} : memref<16x32xf32, #tpu.memory_space<vmem>>, vector<16x32xf32>,
    %c0_i32_17 = arith.constant 0 : i32
    %35 = arith.cmpi eq, %arg2, %c0_i32_17 : i32
    %36 = arith.extui %35 : i1 to i32
    %c0_i32_18 = arith.constant 0 : i32
    %37 = arith.cmpi ne, %36, %c0_i32_18 : i32
    scf.if %37 {
      %c0_19 = arith.constant 0 : index
      %c0_20 = arith.constant 0 : index
      %38 = vector.load %arg9[%c0_19, %c0_20] : memref<16x32xf32, #tpu.memory_space<vmem>>, vector<16x32xf32>
      %c0_21 = arith.constant 0 : index
      %c0_22 = arith.constant 0 : index
      %39 = vector.load %arg7[%c0_21, %c0_22] : memref<1x32xf32, #tpu.memory_space<vmem>>, vector<1x32xf32>
      %40 = vector.broadcast %39 : vector<1x32xf32> to vector<16x32xf32>
      %41 = arith.addf %38, %40 : vector<16x32xf32>
      %42 = arith.truncf %41 : vector<16x32xf32> to vector<16x32xbf16>
      %c0_23 = arith.constant 0 : index
      %c0_24 = arith.constant 0 : index
      %43 = vector.load %arg8[%c0_23, %c0_24] : memref<16x32xbf16, #tpu.memory_space<vmem>>, vector<16x32xbf16>
      tpu.vector_store %arg8[%c0_23, %c0_24], %42 {strides = array<i32>} : memref<16x32xbf16, #tpu.memory_space<vmem>>, vector<16x32xbf16>,
    } else {
    }
    return
  }
  func.func @transform_0(%arg0: i32, %arg1: i32, %arg2: i32) -> (i32, i32) {
    %c0_i32 = arith.constant 0 : i32
    return %arg0, %arg2 : i32, i32
  }
  func.func @transform_1(%arg0: i32, %arg1: i32, %arg2: i32) -> (i32, i32) {
    %c0_i32 = arith.constant 0 : i32
    %c0_i32_0 = arith.constant 0 : i32
    return %c0_i32, %arg2 : i32, i32
  }
  func.func @transform_2(%arg0: i32, %arg1: i32, %arg2: i32) -> (i32, i32) {
    %c0_i32 = arith.constant 0 : i32
    %c0_i32_0 = arith.constant 0 : i32
    return %c0_i32, %arg2 : i32, i32
  }
  func.func @transform_3(%arg0: i32, %arg1: i32, %arg2: i32) -> (i32, i32) {
    %c0_i32 = arith.constant 0 : i32
    return %arg2, %arg1 : i32, i32
  }
  func.func @transform_4(%arg0: i32, %arg1: i32, %arg2: i32) -> (i32, i32) {
    %c0_i32 = arith.constant 0 : i32
    %c0_i32_0 = arith.constant 0 : i32
    return %c0_i32, %arg1 : i32, i32
  }
  func.func @transform_5(%arg0: i32, %arg1: i32, %arg2: i32) -> (i32, i32) {
    %c0_i32 = arith.constant 0 : i32
    return %arg0, %arg1 : i32, i32
  }
}

module attributes {stable_mosaic.version = 11 : i64} {
  func.func @kernel(%arg0: i32, %arg1: i32, %arg2: i32, %arg3: memref<16x32xf32, #tpu.memory_space<vmem>>, %arg4: memref<32x64xbf16, #tpu.memory_space<vmem>>, %arg5: memref<1x64xf32, #tpu.memory_space<vmem>>, %arg6: memref<16x64xbf16, #tpu.memory_space<vmem>>, %arg7: memref<16x64xf32, #tpu.memory_space<vmem>>) attributes {dimension_semantics = [#tpu.dimension_semantics<parallel>, #tpu.dimension_semantics<parallel>, #tpu.dimension_semantics<arbitrary>], iteration_bounds = array<i64: 1, 1, 1>, scalar_prefetch = 0 : i64, scratch_operands = 1 : i64, tpu.core_type = #tpu.core_type<tc>, window_params = [{transform_indices = @transform_0, window_bounds = array<i64: 16, 32>}, {transform_indices = @transform_1, window_bounds = array<i64: 32, 64>}, {transform_indices = @transform_2, window_bounds = array<i64: 1, 64>}, {transform_indices = @transform_3, window_bounds = array<i64: 16, 64>}]} {
    %c0_i32 = arith.constant 0 : i32
    %0 = arith.cmpi eq, %arg2, %c0_i32 : i32
    %1 = arith.extui %0 : i1 to i32
    %c0_i32_0 = arith.constant 0 : i32
    %2 = arith.cmpi ne, %1, %c0_i32_0 : i32
    scf.if %2 {
      %cst_10 = arith.constant 0.000000e+00 : f32
      %13 = vector.broadcast %cst_10 : f32 to vector<16x64xf32>
      %c0_11 = arith.constant 0 : index
      %c0_12 = arith.constant 0 : index
      %14 = vector.load %arg7[%c0_11, %c0_12] : memref<16x64xf32, #tpu.memory_space<vmem>>, vector<16x64xf32>
      tpu.vector_store %arg7[%c0_11, %c0_12], %13 {strides = array<i32>} : memref<16x64xf32, #tpu.memory_space<vmem>>, vector<16x64xf32>,
    } else {
    }
    %c0 = arith.constant 0 : index
    %c0_1 = arith.constant 0 : index
    %3 = vector.load %arg3[%c0, %c0_1] : memref<16x32xf32, #tpu.memory_space<vmem>>, vector<16x32xf32>
    %c0_2 = arith.constant 0 : index
    %c0_3 = arith.constant 0 : index
    %4 = vector.load %arg7[%c0_2, %c0_3] : memref<16x64xf32, #tpu.memory_space<vmem>>, vector<16x64xf32>
    %5 = arith.truncf %3 : vector<16x32xf32> to vector<16x32xbf16>
    %c0_4 = arith.constant 0 : index
    %c0_5 = arith.constant 0 : index
    %6 = vector.load %arg4[%c0_4, %c0_5] : memref<32x64xbf16, #tpu.memory_space<vmem>>, vector<32x64xbf16>
    %cst = arith.constant dense<0.000000e+00> : vector<16x64xf32>
    %7 = tpu.matmul %5, %6, %cst {dimension_numbers = #tpu.dot_dimension_numbers<[1], [0], [0], [1], [0, 0, 1, 1], [], []>} : vector<16x32xbf16>, vector<32x64xbf16>, vector<16x64xf32> -> vector<16x64xf32>
    %8 = arith.addf %4, %7 : vector<16x64xf32>
    %c0_6 = arith.constant 0 : index
    %c0_7 = arith.constant 0 : index
    %9 = vector.load %arg7[%c0_6, %c0_7] : memref<16x64xf32, #tpu.memory_space<vmem>>, vector<16x64xf32>
    tpu.vector_store %arg7[%c0_6, %c0_7], %8 {strides = array<i32>} : memref<16x64xf32, #tpu.memory_space<vmem>>, vector<16x64xf32>,
    %c0_i32_8 = arith.constant 0 : i32
    %10 = arith.cmpi eq, %arg2, %c0_i32_8 : i32
    %11 = arith.extui %10 : i1 to i32
    %c0_i32_9 = arith.constant 0 : i32
    %12 = arith.cmpi ne, %11, %c0_i32_9 : i32
    scf.if %12 {
      %c0_10 = arith.constant 0 : index
      %c0_11 = arith.constant 0 : index
      %13 = vector.load %arg7[%c0_10, %c0_11] : memref<16x64xf32, #tpu.memory_space<vmem>>, vector<16x64xf32>
      %c0_12 = arith.constant 0 : index
      %c0_13 = arith.constant 0 : index
      %14 = vector.load %arg5[%c0_12, %c0_13] : memref<1x64xf32, #tpu.memory_space<vmem>>, vector<1x64xf32>
      %15 = vector.broadcast %14 : vector<1x64xf32> to vector<16x64xf32>
      %16 = arith.addf %13, %15 : vector<16x64xf32>
      %17 = arith.truncf %16 : vector<16x64xf32> to vector<16x64xbf16>
      %c0_14 = arith.constant 0 : index
      %c0_15 = arith.constant 0 : index
      %18 = vector.load %arg6[%c0_14, %c0_15] : memref<16x64xbf16, #tpu.memory_space<vmem>>, vector<16x64xbf16>
      tpu.vector_store %arg6[%c0_14, %c0_15], %17 {strides = array<i32>} : memref<16x64xbf16, #tpu.memory_space<vmem>>, vector<16x64xbf16>,
    } else {
    }
    return
  }
  func.func @transform_0(%arg0: i32, %arg1: i32, %arg2: i32) -> (i32, i32) {
    %c0_i32 = arith.constant 0 : i32
    return %arg0, %arg2 : i32, i32
  }
  func.func @transform_1(%arg0: i32, %arg1: i32, %arg2: i32) -> (i32, i32) {
    %c0_i32 = arith.constant 0 : i32
    return %arg2, %arg1 : i32, i32
  }
  func.func @transform_2(%arg0: i32, %arg1: i32, %arg2: i32) -> (i32, i32) {
    %c0_i32 = arith.constant 0 : i32
    %c0_i32_0 = arith.constant 0 : i32
    return %c0_i32, %arg1 : i32, i32
  }
  func.func @transform_3(%arg0: i32, %arg1: i32, %arg2: i32) -> (i32, i32) {
    %c0_i32 = arith.constant 0 : i32
    return %arg0, %arg1 : i32, i32
  }
}

module attributes {stable_mosaic.version = 11 : i64} {
  func.func @kernel(%arg0: i32, %arg1: i32, %arg2: i32, %arg3: memref<1x8x1x4x8xbf16, #tpu.memory_space<vmem>>, %arg4: memref<1x8x1x4x8xbf16, #tpu.memory_space<vmem>>, %arg5: memref<1x8x1x4x8xbf16, #tpu.memory_space<vmem>>, %arg6: memref<1x1x8xf32, #tpu.memory_space<vmem>>, %arg7: memref<1x8x32xbf16, #tpu.memory_space<vmem>>, %arg8: memref<8x4xf32, #tpu.memory_space<vmem>>, %arg9: memref<8x4xf32, #tpu.memory_space<vmem>>, %arg10: memref<8x32xf32, #tpu.memory_space<vmem>>) attributes {dimension_semantics = [#tpu.dimension_semantics<parallel>, #tpu.dimension_semantics<parallel>, #tpu.dimension_semantics<arbitrary>], iteration_bounds = array<i64: 2, 1, 1>, scalar_prefetch = 0 : i64, scratch_operands = 3 : i64, tpu.core_type = #tpu.core_type<tc>, window_params = [{transform_indices = @transform_0, window_bounds = array<i64: 1, 8, 1, 4, 8>}, {transform_indices = @transform_1, window_bounds = array<i64: 1, 8, 1, 4, 8>}, {transform_indices = @transform_2, window_bounds = array<i64: 1, 8, 1, 4, 8>}, {transform_indices = @transform_3, window_bounds = array<i64: 1, 1, 8>}, {transform_indices = @transform_4, window_bounds = array<i64: 1, 8, 32>}]} {
    %c0_i32 = arith.constant 0 : i32
    %0 = arith.cmpi eq, %arg2, %c0_i32 : i32
    %1 = arith.extui %0 : i1 to i32
    %c0_i32_0 = arith.constant 0 : i32
    %2 = arith.cmpi ne, %1, %c0_i32_0 : i32
    scf.if %2 {
      %cst_77 = arith.constant 0xFF800000 : f32
      %142 = vector.broadcast %cst_77 : f32 to vector<8x4xf32>
      %c0_78 = arith.constant 0 : index
      %c0_79 = arith.constant 0 : index
      %143 = vector.load %arg8[%c0_78, %c0_79] : memref<8x4xf32, #tpu.memory_space<vmem>>, vector<8x4xf32>
      tpu.vector_store %arg8[%c0_78, %c0_79], %142 {strides = array<i32>} : memref<8x4xf32, #tpu.memory_space<vmem>>, vector<8x4xf32>,
      %cst_80 = arith.constant 0.000000e+00 : f32
      %144 = vector.broadcast %cst_80 : f32 to vector<8x4xf32>
      %c0_81 = arith.constant 0 : index
      %c0_82 = arith.constant 0 : index
      %145 = vector.load %arg9[%c0_81, %c0_82] : memref<8x4xf32, #tpu.memory_space<vmem>>, vector<8x4xf32>
      tpu.vector_store %arg9[%c0_81, %c0_82], %144 {strides = array<i32>} : memref<8x4xf32, #tpu.memory_space<vmem>>, vector<8x4xf32>,
      %cst_83 = arith.constant 0.000000e+00 : f32
      %146 = vector.broadcast %cst_83 : f32 to vector<8x32xf32>
      %c0_84 = arith.constant 0 : index
      %c0_85 = arith.constant 0 : index
      %147 = vector.load %arg10[%c0_84, %c0_85] : memref<8x32xf32, #tpu.memory_space<vmem>>, vector<8x32xf32>
      tpu.vector_store %arg10[%c0_84, %c0_85], %146 {strides = array<i32>} : memref<8x32xf32, #tpu.memory_space<vmem>>, vector<8x32xf32>,
    } else {
    }
    %c0 = arith.constant 0 : index
    %c0_1 = arith.constant 0 : index
    %c0_2 = arith.constant 0 : index
    %c0_3 = arith.constant 0 : index
    %c0_4 = arith.constant 0 : index
    %3 = vector.load %arg3[%c0, %c0_1, %c0_2, %c0_3, %c0_4] : memref<1x8x1x4x8xbf16, #tpu.memory_space<vmem>>, vector<1x8x1x4x8xbf16>
    %4 = vector.shape_cast %3 : vector<1x8x1x4x8xbf16> to vector<8x4x8xbf16>
    %c0_5 = arith.constant 0 : index
    %c0_6 = arith.constant 0 : index
    %c0_7 = arith.constant 0 : index
    %c0_8 = arith.constant 0 : index
    %c0_9 = arith.constant 0 : index
    %5 = vector.load %arg4[%c0_5, %c0_6, %c0_7, %c0_8, %c0_9] : memref<1x8x1x4x8xbf16, #tpu.memory_space<vmem>>, vector<1x8x1x4x8xbf16>
    %6 = vector.shape_cast %5 : vector<1x8x1x4x8xbf16> to vector<8x4x8xbf16>
    %c0_10 = arith.constant 0 : index
    %c0_11 = arith.constant 0 : index
    %c0_12 = arith.constant 0 : index
    %c0_13 = arith.constant 0 : index
    %c0_14 = arith.constant 0 : index
    %7 = vector.load %arg5[%c0_10, %c0_11, %c0_12, %c0_13, %c0_14] : memref<1x8x1x4x8xbf16, #tpu.memory_space<vmem>>, vector<1x8x1x4x8xbf16>
    %8 = vector.shape_cast %7 : vector<1x8x1x4x8xbf16> to vector<8x4x8xbf16>
    %c0_15 = arith.constant 0 : index
    %c0_16 = arith.constant 0 : index
    %c0_17 = arith.constant 0 : index
    %9 = vector.load %arg6[%c0_15, %c0_16, %c0_17] : memref<1x1x8xf32, #tpu.memory_space<vmem>>, vector<1x1x8xf32>
    %10 = vector.shape_cast %9 : vector<1x1x8xf32> to vector<1x8xf32>
    %11 = vector.extract_strided_slice %4 {offsets = [0, 0, 0], sizes = [8, 1, 8], strides = [1, 1, 1]} : vector<8x4x8xbf16> to vector<8x1x8xbf16>
    %12 = vector.shape_cast %11 : vector<8x1x8xbf16> to vector<8x8xbf16>
    %13 = vector.extract_strided_slice %6 {offsets = [0, 0, 0], sizes = [8, 1, 8], strides = [1, 1, 1]} : vector<8x4x8xbf16> to vector<8x1x8xbf16>
    %14 = vector.shape_cast %13 : vector<8x1x8xbf16> to vector<8x8xbf16>
    %cst = arith.constant dense<0.000000e+00> : vector<8x8xf32>
    %15 = tpu.matmul %12, %14, %cst {dimension_numbers = #tpu.dot_dimension_numbers<[1], [1], [0], [0], [0, 0, 1, 0], [], []>} : vector<8x8xbf16>, vector<8x8xbf16>, vector<8x8xf32> -> vector<8x8xf32>
    %16 = vector.broadcast %10 : vector<1x8xf32> to vector<8x8xf32>
    %17 = arith.addf %15, %16 : vector<8x8xf32>
    %c0_18 = arith.constant 0 : index
    %c0_19 = arith.constant 0 : index
    %18 = vector.load %arg8[%c0_18, %c0_19] : memref<8x4xf32, #tpu.memory_space<vmem>>, vector<8x1xf32>
    %cst_20 = arith.constant dense<0xFF800000> : vector<8xf32>
    %19 = vector.multi_reduction <maximumf>, %17, %cst_20 [1] : vector<8x8xf32> to vector<8xf32>
    %20 = vector.shape_cast %19 : vector<8xf32> to vector<8x1xf32>
    %21 = arith.maximumf %18, %20 : vector<8x1xf32>
    %22 = arith.subf %18, %21 : vector<8x1xf32>
    %23 = math.exp %22 : vector<8x1xf32>
    %24 = vector.broadcast %21 : vector<8x1xf32> to vector<8x8xf32>
    %25 = arith.subf %17, %24 : vector<8x8xf32>
    %26 = math.exp %25 : vector<8x8xf32>
    %c0_21 = arith.constant 0 : index
    %c0_22 = arith.constant 0 : index
    %27 = vector.load %arg9[%c0_21, %c0_22] : memref<8x4xf32, #tpu.memory_space<vmem>>, vector<8x1xf32>
    %28 = arith.mulf %23, %27 : vector<8x1xf32>
    %cst_23 = arith.constant dense<0.000000e+00> : vector<8xf32>
    %29 = vector.multi_reduction <add>, %26, %cst_23 [1] : vector<8x8xf32> to vector<8xf32>
    %30 = vector.shape_cast %29 : vector<8xf32> to vector<8x1xf32>
    %31 = arith.addf %28, %30 : vector<8x1xf32>
    %c0_24 = arith.constant 0 : index
    %c0_25 = arith.constant 0 : index
    %32 = vector.load %arg9[%c0_24, %c0_25] : memref<8x4xf32, #tpu.memory_space<vmem>>, vector<8x1xf32>
    tpu.vector_store %arg9[%c0_24, %c0_25], %31 {strides = array<i32>} : memref<8x4xf32, #tpu.memory_space<vmem>>, vector<8x1xf32>,
    %33 = arith.truncf %26 : vector<8x8xf32> to vector<8x8xbf16>
    %34 = vector.extract_strided_slice %8 {offsets = [0, 0, 0], sizes = [8, 1, 8], strides = [1, 1, 1]} : vector<8x4x8xbf16> to vector<8x1x8xbf16>
    %35 = vector.shape_cast %34 : vector<8x1x8xbf16> to vector<8x8xbf16>
    %cst_26 = arith.constant dense<0.000000e+00> : vector<8x8xf32>
    %36 = tpu.matmul %33, %35, %cst_26 {dimension_numbers = #tpu.dot_dimension_numbers<[1], [0], [0], [1], [0, 0, 1, 1], [], []>} : vector<8x8xbf16>, vector<8x8xbf16>, vector<8x8xf32> -> vector<8x8xf32>
    %c0_27 = arith.constant 0 : index
    %c0_28 = arith.constant 0 : index
    %37 = vector.load %arg10[%c0_27, %c0_28] : memref<8x32xf32, #tpu.memory_space<vmem>>, vector<8x8xf32>
    %38 = vector.broadcast %23 : vector<8x1xf32> to vector<8x8xf32>
    %39 = arith.mulf %38, %37 : vector<8x8xf32>
    %40 = arith.addf %39, %36 : vector<8x8xf32>
    %c0_29 = arith.constant 0 : index
    %c0_30 = arith.constant 0 : index
    %41 = vector.load %arg10[%c0_29, %c0_30] : memref<8x32xf32, #tpu.memory_space<vmem>>, vector<8x8xf32>
    tpu.vector_store %arg10[%c0_29, %c0_30], %40 {strides = array<i32>} : memref<8x32xf32, #tpu.memory_space<vmem>>, vector<8x8xf32>,
    %c0_31 = arith.constant 0 : index
    %c0_32 = arith.constant 0 : index
    %42 = vector.load %arg8[%c0_31, %c0_32] : memref<8x4xf32, #tpu.memory_space<vmem>>, vector<8x1xf32>
    tpu.vector_store %arg8[%c0_31, %c0_32], %21 {strides = array<i32>} : memref<8x4xf32, #tpu.memory_space<vmem>>, vector<8x1xf32>,
    %43 = vector.extract_strided_slice %4 {offsets = [0, 1, 0], sizes = [8, 1, 8], strides = [1, 1, 1]} : vector<8x4x8xbf16> to vector<8x1x8xbf16>
    %44 = vector.shape_cast %43 : vector<8x1x8xbf16> to vector<8x8xbf16>
    %45 = vector.extract_strided_slice %6 {offsets = [0, 1, 0], sizes = [8, 1, 8], strides = [1, 1, 1]} : vector<8x4x8xbf16> to vector<8x1x8xbf16>
    %46 = vector.shape_cast %45 : vector<8x1x8xbf16> to vector<8x8xbf16>
    %cst_33 = arith.constant dense<0.000000e+00> : vector<8x8xf32>
    %47 = tpu.matmul %44, %46, %cst_33 {dimension_numbers = #tpu.dot_dimension_numbers<[1], [1], [0], [0], [0, 0, 1, 0], [], []>} : vector<8x8xbf16>, vector<8x8xbf16>, vector<8x8xf32> -> vector<8x8xf32>
    %48 = vector.broadcast %10 : vector<1x8xf32> to vector<8x8xf32>
    %49 = arith.addf %47, %48 : vector<8x8xf32>
    %c0_34 = arith.constant 0 : index
    %c1 = arith.constant 1 : index
    %50 = vector.load %arg8[%c0_34, %c1] : memref<8x4xf32, #tpu.memory_space<vmem>>, vector<8x1xf32>
    %cst_35 = arith.constant dense<0xFF800000> : vector<8xf32>
    %51 = vector.multi_reduction <maximumf>, %49, %cst_35 [1] : vector<8x8xf32> to vector<8xf32>
    %52 = vector.shape_cast %51 : vector<8xf32> to vector<8x1xf32>
    %53 = arith.maximumf %50, %52 : vector<8x1xf32>
    %54 = arith.subf %50, %53 : vector<8x1xf32>
    %55 = math.exp %54 : vector<8x1xf32>
    %56 = vector.broadcast %53 : vector<8x1xf32> to vector<8x8xf32>
    %57 = arith.subf %49, %56 : vector<8x8xf32>
    %58 = math.exp %57 : vector<8x8xf32>
    %c0_36 = arith.constant 0 : index
    %c1_37 = arith.constant 1 : index
    %59 = vector.load %arg9[%c0_36, %c1_37] : memref<8x4xf32, #tpu.memory_space<vmem>>, vector<8x1xf32>
    %60 = arith.mulf %55, %59 : vector<8x1xf32>
    %cst_38 = arith.constant dense<0.000000e+00> : vector<8xf32>
    %61 = vector.multi_reduction <add>, %58, %cst_38 [1] : vector<8x8xf32> to vector<8xf32>
    %62 = vector.shape_cast %61 : vector<8xf32> to vector<8x1xf32>
    %63 = arith.addf %60, %62 : vector<8x1xf32>
    %c0_39 = arith.constant 0 : index
    %c1_40 = arith.constant 1 : index
    %64 = vector.load %arg9[%c0_39, %c1_40] : memref<8x4xf32, #tpu.memory_space<vmem>>, vector<8x1xf32>
    tpu.vector_store %arg9[%c0_39, %c1_40], %63 {strides = array<i32>} : memref<8x4xf32, #tpu.memory_space<vmem>>, vector<8x1xf32>,
    %65 = arith.truncf %58 : vector<8x8xf32> to vector<8x8xbf16>
    %66 = vector.extract_strided_slice %8 {offsets = [0, 1, 0], sizes = [8, 1, 8], strides = [1, 1, 1]} : vector<8x4x8xbf16> to vector<8x1x8xbf16>
    %67 = vector.shape_cast %66 : vector<8x1x8xbf16> to vector<8x8xbf16>
    %cst_41 = arith.constant dense<0.000000e+00> : vector<8x8xf32>
    %68 = tpu.matmul %65, %67, %cst_41 {dimension_numbers = #tpu.dot_dimension_numbers<[1], [0], [0], [1], [0, 0, 1, 1], [], []>} : vector<8x8xbf16>, vector<8x8xbf16>, vector<8x8xf32> -> vector<8x8xf32>
    %c0_42 = arith.constant 0 : index
    %c8 = arith.constant 8 : index
    %69 = vector.load %arg10[%c0_42, %c8] : memref<8x32xf32, #tpu.memory_space<vmem>>, vector<8x8xf32>
    %70 = vector.broadcast %55 : vector<8x1xf32> to vector<8x8xf32>
    %71 = arith.mulf %70, %69 : vector<8x8xf32>
    %72 = arith.addf %71, %68 : vector<8x8xf32>
    %c0_43 = arith.constant 0 : index
    %c8_44 = arith.constant 8 : index
    %73 = vector.load %arg10[%c0_43, %c8_44] : memref<8x32xf32, #tpu.memory_space<vmem>>, vector<8x8xf32>
    tpu.vector_store %arg10[%c0_43, %c8_44], %72 {strides = array<i32>} : memref<8x32xf32, #tpu.memory_space<vmem>>, vector<8x8xf32>,
    %c0_45 = arith.constant 0 : index
    %c1_46 = arith.constant 1 : index
    %74 = vector.load %arg8[%c0_45, %c1_46] : memref<8x4xf32, #tpu.memory_space<vmem>>, vector<8x1xf32>
    tpu.vector_store %arg8[%c0_45, %c1_46], %53 {strides = array<i32>} : memref<8x4xf32, #tpu.memory_space<vmem>>, vector<8x1xf32>,
    %75 = vector.extract_strided_slice %4 {offsets = [0, 2, 0], sizes = [8, 1, 8], strides = [1, 1, 1]} : vector<8x4x8xbf16> to vector<8x1x8xbf16>
    %76 = vector.shape_cast %75 : vector<8x1x8xbf16> to vector<8x8xbf16>
    %77 = vector.extract_strided_slice %6 {offsets = [0, 2, 0], sizes = [8, 1, 8], strides = [1, 1, 1]} : vector<8x4x8xbf16> to vector<8x1x8xbf16>
    %78 = vector.shape_cast %77 : vector<8x1x8xbf16> to vector<8x8xbf16>
    %cst_47 = arith.constant dense<0.000000e+00> : vector<8x8xf32>
    %79 = tpu.matmul %76, %78, %cst_47 {dimension_numbers = #tpu.dot_dimension_numbers<[1], [1], [0], [0], [0, 0, 1, 0], [], []>} : vector<8x8xbf16>, vector<8x8xbf16>, vector<8x8xf32> -> vector<8x8xf32>
    %80 = vector.broadcast %10 : vector<1x8xf32> to vector<8x8xf32>
    %81 = arith.addf %79, %80 : vector<8x8xf32>
    %c0_48 = arith.constant 0 : index
    %c2 = arith.constant 2 : index
    %82 = vector.load %arg8[%c0_48, %c2] : memref<8x4xf32, #tpu.memory_space<vmem>>, vector<8x1xf32>
    %cst_49 = arith.constant dense<0xFF800000> : vector<8xf32>
    %83 = vector.multi_reduction <maximumf>, %81, %cst_49 [1] : vector<8x8xf32> to vector<8xf32>
    %84 = vector.shape_cast %83 : vector<8xf32> to vector<8x1xf32>
    %85 = arith.maximumf %82, %84 : vector<8x1xf32>
    %86 = arith.subf %82, %85 : vector<8x1xf32>
    %87 = math.exp %86 : vector<8x1xf32>
    %88 = vector.broadcast %85 : vector<8x1xf32> to vector<8x8xf32>
    %89 = arith.subf %81, %88 : vector<8x8xf32>
    %90 = math.exp %89 : vector<8x8xf32>
    %c0_50 = arith.constant 0 : index
    %c2_51 = arith.constant 2 : index
    %91 = vector.load %arg9[%c0_50, %c2_51] : memref<8x4xf32, #tpu.memory_space<vmem>>, vector<8x1xf32>
    %92 = arith.mulf %87, %91 : vector<8x1xf32>
    %cst_52 = arith.constant dense<0.000000e+00> : vector<8xf32>
    %93 = vector.multi_reduction <add>, %90, %cst_52 [1] : vector<8x8xf32> to vector<8xf32>
    %94 = vector.shape_cast %93 : vector<8xf32> to vector<8x1xf32>
    %95 = arith.addf %92, %94 : vector<8x1xf32>
    %c0_53 = arith.constant 0 : index
    %c2_54 = arith.constant 2 : index
    %96 = vector.load %arg9[%c0_53, %c2_54] : memref<8x4xf32, #tpu.memory_space<vmem>>, vector<8x1xf32>
    tpu.vector_store %arg9[%c0_53, %c2_54], %95 {strides = array<i32>} : memref<8x4xf32, #tpu.memory_space<vmem>>, vector<8x1xf32>,
    %97 = arith.truncf %90 : vector<8x8xf32> to vector<8x8xbf16>
    %98 = vector.extract_strided_slice %8 {offsets = [0, 2, 0], sizes = [8, 1, 8], strides = [1, 1, 1]} : vector<8x4x8xbf16> to vector<8x1x8xbf16>
    %99 = vector.shape_cast %98 : vector<8x1x8xbf16> to vector<8x8xbf16>
    %cst_55 = arith.constant dense<0.000000e+00> : vector<8x8xf32>
    %100 = tpu.matmul %97, %99, %cst_55 {dimension_numbers = #tpu.dot_dimension_numbers<[1], [0], [0], [1], [0, 0, 1, 1], [], []>} : vector<8x8xbf16>, vector<8x8xbf16>, vector<8x8xf32> -> vector<8x8xf32>
    %c0_56 = arith.constant 0 : index
    %c16 = arith.constant 16 : index
    %101 = vector.load %arg10[%c0_56, %c16] : memref<8x32xf32, #tpu.memory_space<vmem>>, vector<8x8xf32>
    %102 = vector.broadcast %87 : vector<8x1xf32> to vector<8x8xf32>
    %103 = arith.mulf %102, %101 : vector<8x8xf32>
    %104 = arith.addf %103, %100 : vector<8x8xf32>
    %c0_57 = arith.constant 0 : index
    %c16_58 = arith.constant 16 : index
    %105 = vector.load %arg10[%c0_57, %c16_58] : memref<8x32xf32, #tpu.memory_space<vmem>>, vector<8x8xf32>
    tpu.vector_store %arg10[%c0_57, %c16_58], %104 {strides = array<i32>} : memref<8x32xf32, #tpu.memory_space<vmem>>, vector<8x8xf32>,
    %c0_59 = arith.constant 0 : index
    %c2_60 = arith.constant 2 : index
    %106 = vector.load %arg8[%c0_59, %c2_60] : memref<8x4xf32, #tpu.memory_space<vmem>>, vector<8x1xf32>
    tpu.vector_store %arg8[%c0_59, %c2_60], %85 {strides = array<i32>} : memref<8x4xf32, #tpu.memory_space<vmem>>, vector<8x1xf32>,
    %107 = vector.extract_strided_slice %4 {offsets = [0, 3, 0], sizes = [8, 1, 8], strides = [1, 1, 1]} : vector<8x4x8xbf16> to vector<8x1x8xbf16>
    %108 = vector.shape_cast %107 : vector<8x1x8xbf16> to vector<8x8xbf16>
    %109 = vector.extract_strided_slice %6 {offsets = [0, 3, 0], sizes = [8, 1, 8], strides = [1, 1, 1]} : vector<8x4x8xbf16> to vector<8x1x8xbf16>
    %110 = vector.shape_cast %109 : vector<8x1x8xbf16> to vector<8x8xbf16>
    %cst_61 = arith.constant dense<0.000000e+00> : vector<8x8xf32>
    %111 = tpu.matmul %108, %110, %cst_61 {dimension_numbers = #tpu.dot_dimension_numbers<[1], [1], [0], [0], [0, 0, 1, 0], [], []>} : vector<8x8xbf16>, vector<8x8xbf16>, vector<8x8xf32> -> vector<8x8xf32>
    %112 = vector.broadcast %10 : vector<1x8xf32> to vector<8x8xf32>
    %113 = arith.addf %111, %112 : vector<8x8xf32>
    %c0_62 = arith.constant 0 : index
    %c3 = arith.constant 3 : index
    %114 = vector.load %arg8[%c0_62, %c3] : memref<8x4xf32, #tpu.memory_space<vmem>>, vector<8x1xf32>
    %cst_63 = arith.constant dense<0xFF800000> : vector<8xf32>
    %115 = vector.multi_reduction <maximumf>, %113, %cst_63 [1] : vector<8x8xf32> to vector<8xf32>
    %116 = vector.shape_cast %115 : vector<8xf32> to vector<8x1xf32>
    %117 = arith.maximumf %114, %116 : vector<8x1xf32>
    %118 = arith.subf %114, %117 : vector<8x1xf32>
    %119 = math.exp %118 : vector<8x1xf32>
    %120 = vector.broadcast %117 : vector<8x1xf32> to vector<8x8xf32>
    %121 = arith.subf %113, %120 : vector<8x8xf32>
    %122 = math.exp %121 : vector<8x8xf32>
    %c0_64 = arith.constant 0 : index
    %c3_65 = arith.constant 3 : index
    %123 = vector.load %arg9[%c0_64, %c3_65] : memref<8x4xf32, #tpu.memory_space<vmem>>, vector<8x1xf32>
    %124 = arith.mulf %119, %123 : vector<8x1xf32>
    %cst_66 = arith.constant dense<0.000000e+00> : vector<8xf32>
    %125 = vector.multi_reduction <add>, %122, %cst_66 [1] : vector<8x8xf32> to vector<8xf32>
    %126 = vector.shape_cast %125 : vector<8xf32> to vector<8x1xf32>
    %127 = arith.addf %124, %126 : vector<8x1xf32>
    %c0_67 = arith.constant 0 : index
    %c3_68 = arith.constant 3 : index
    %128 = vector.load %arg9[%c0_67, %c3_68] : memref<8x4xf32, #tpu.memory_space<vmem>>, vector<8x1xf32>
    tpu.vector_store %arg9[%c0_67, %c3_68], %127 {strides = array<i32>} : memref<8x4xf32, #tpu.memory_space<vmem>>, vector<8x1xf32>,
    %129 = arith.truncf %122 : vector<8x8xf32> to vector<8x8xbf16>
    %130 = vector.extract_strided_slice %8 {offsets = [0, 3, 0], sizes = [8, 1, 8], strides = [1, 1, 1]} : vector<8x4x8xbf16> to vector<8x1x8xbf16>
    %131 = vector.shape_cast %130 : vector<8x1x8xbf16> to vector<8x8xbf16>
    %cst_69 = arith.constant dense<0.000000e+00> : vector<8x8xf32>
    %132 = tpu.matmul %129, %131, %cst_69 {dimension_numbers = #tpu.dot_dimension_numbers<[1], [0], [0], [1], [0, 0, 1, 1], [], []>} : vector<8x8xbf16>, vector<8x8xbf16>, vector<8x8xf32> -> vector<8x8xf32>
    %c0_70 = arith.constant 0 : index
    %c24 = arith.constant 24 : index
    %133 = vector.load %arg10[%c0_70, %c24] : memref<8x32xf32, #tpu.memory_space<vmem>>, vector<8x8xf32>
    %134 = vector.broadcast %119 : vector<8x1xf32> to vector<8x8xf32>
    %135 = arith.mulf %134, %133 : vector<8x8xf32>
    %136 = arith.addf %135, %132 : vector<8x8xf32>
    %c0_71 = arith.constant 0 : index
    %c24_72 = arith.constant 24 : index
    %137 = vector.load %arg10[%c0_71, %c24_72] : memref<8x32xf32, #tpu.memory_space<vmem>>, vector<8x8xf32>
    tpu.vector_store %arg10[%c0_71, %c24_72], %136 {strides = array<i32>} : memref<8x32xf32, #tpu.memory_space<vmem>>, vector<8x8xf32>,
    %c0_73 = arith.constant 0 : index
    %c3_74 = arith.constant 3 : index
    %138 = vector.load %arg8[%c0_73, %c3_74] : memref<8x4xf32, #tpu.memory_space<vmem>>, vector<8x1xf32>
    tpu.vector_store %arg8[%c0_73, %c3_74], %117 {strides = array<i32>} : memref<8x4xf32, #tpu.memory_space<vmem>>, vector<8x1xf32>,
    %c0_i32_75 = arith.constant 0 : i32
    %139 = arith.cmpi eq, %arg2, %c0_i32_75 : i32
    %140 = arith.extui %139 : i1 to i32
    %c0_i32_76 = arith.constant 0 : i32
    %141 = arith.cmpi ne, %140, %c0_i32_76 : i32
    scf.if %141 {
      %c0_77 = arith.constant 0 : index
      %c0_78 = arith.constant 0 : index
      %142 = vector.load %arg9[%c0_77, %c0_78] : memref<8x4xf32, #tpu.memory_space<vmem>>, vector<8x1xf32>
      %143 = tpu.reciprocal %142 : vector<8x1xf32> -> vector<8x1xf32>
      %c0_79 = arith.constant 0 : index
      %c0_80 = arith.constant 0 : index
      %144 = vector.load %arg10[%c0_79, %c0_80] : memref<8x32xf32, #tpu.memory_space<vmem>>, vector<8x8xf32>
      %145 = vector.broadcast %143 : vector<8x1xf32> to vector<8x8xf32>
      %146 = arith.mulf %144, %145 : vector<8x8xf32>
      %147 = arith.truncf %146 : vector<8x8xf32> to vector<8x8xbf16>
      %c0_81 = arith.constant 0 : index
      %c0_82 = arith.constant 0 : index
      %c0_83 = arith.constant 0 : index
      %148 = vector.load %arg7[%c0_81, %c0_82, %c0_83] : memref<1x8x32xbf16, #tpu.memory_space<vmem>>, vector<1x8x8xbf16>
      %149 = vector.shape_cast %148 : vector<1x8x8xbf16> to vector<8x8xbf16>
      %150 = vector.shape_cast %147 : vector<8x8xbf16> to vector<1x8x8xbf16>
      tpu.vector_store %arg7[%c0_81, %c0_82, %c0_83], %150 {strides = array<i32>} : memref<1x8x32xbf16, #tpu.memory_space<vmem>>, vector<1x8x8xbf16>,
      %c0_84 = arith.constant 0 : index
      %c1_85 = arith.constant 1 : index
      %151 = vector.load %arg9[%c0_84, %c1_85] : memref<8x4xf32, #tpu.memory_space<vmem>>, vector<8x1xf32>
      %152 = tpu.reciprocal %151 : vector<8x1xf32> -> vector<8x1xf32>
      %c0_86 = arith.constant 0 : index
      %c8_87 = arith.constant 8 : index
      %153 = vector.load %arg10[%c0_86, %c8_87] : memref<8x32xf32, #tpu.memory_space<vmem>>, vector<8x8xf32>
      %154 = vector.broadcast %152 : vector<8x1xf32> to vector<8x8xf32>
      %155 = arith.mulf %153, %154 : vector<8x8xf32>
      %156 = arith.truncf %155 : vector<8x8xf32> to vector<8x8xbf16>
      %c0_88 = arith.constant 0 : index
      %c0_89 = arith.constant 0 : index
      %c8_90 = arith.constant 8 : index
      %157 = vector.load %arg7[%c0_88, %c0_89, %c8_90] : memref<1x8x32xbf16, #tpu.memory_space<vmem>>, vector<1x8x8xbf16>
      %158 = vector.shape_cast %157 : vector<1x8x8xbf16> to vector<8x8xbf16>
      %159 = vector.shape_cast %156 : vector<8x8xbf16> to vector<1x8x8xbf16>
      tpu.vector_store %arg7[%c0_88, %c0_89, %c8_90], %159 {strides = array<i32>} : memref<1x8x32xbf16, #tpu.memory_space<vmem>>, vector<1x8x8xbf16>,
      %c0_91 = arith.constant 0 : index
      %c2_92 = arith.constant 2 : index
      %160 = vector.load %arg9[%c0_91, %c2_92] : memref<8x4xf32, #tpu.memory_space<vmem>>, vector<8x1xf32>
      %161 = tpu.reciprocal %160 : vector<8x1xf32> -> vector<8x1xf32>
      %c0_93 = arith.constant 0 : index
      %c16_94 = arith.constant 16 : index
      %162 = vector.load %arg10[%c0_93, %c16_94] : memref<8x32xf32, #tpu.memory_space<vmem>>, vector<8x8xf32>
      %163 = vector.broadcast %161 : vector<8x1xf32> to vector<8x8xf32>
      %164 = arith.mulf %162, %163 : vector<8x8xf32>
      %165 = arith.truncf %164 : vector<8x8xf32> to vector<8x8xbf16>
      %c0_95 = arith.constant 0 : index
      %c0_96 = arith.constant 0 : index
      %c16_97 = arith.constant 16 : index
      %166 = vector.load %arg7[%c0_95, %c0_96, %c16_97] : memref<1x8x32xbf16, #tpu.memory_space<vmem>>, vector<1x8x8xbf16>
      %167 = vector.shape_cast %166 : vector<1x8x8xbf16> to vector<8x8xbf16>
      %168 = vector.shape_cast %165 : vector<8x8xbf16> to vector<1x8x8xbf16>
      tpu.vector_store %arg7[%c0_95, %c0_96, %c16_97], %168 {strides = array<i32>} : memref<1x8x32xbf16, #tpu.memory_space<vmem>>, vector<1x8x8xbf16>,
      %c0_98 = arith.constant 0 : index
      %c3_99 = arith.constant 3 : index
      %169 = vector.load %arg9[%c0_98, %c3_99] : memref<8x4xf32, #tpu.memory_space<vmem>>, vector<8x1xf32>
      %170 = tpu.reciprocal %169 : vector<8x1xf32> -> vector<8x1xf32>
      %c0_100 = arith.constant 0 : index
      %c24_101 = arith.constant 24 : index
      %171 = vector.load %arg10[%c0_100, %c24_101] : memref<8x32xf32, #tpu.memory_space<vmem>>, vector<8x8xf32>
      %172 = vector.broadcast %170 : vector<8x1xf32> to vector<8x8xf32>
      %173 = arith.mulf %171, %172 : vector<8x8xf32>
      %174 = arith.truncf %173 : vector<8x8xf32> to vector<8x8xbf16>
      %c0_102 = arith.constant 0 : index
      %c0_103 = arith.constant 0 : index
      %c24_104 = arith.constant 24 : index
      %175 = vector.load %arg7[%c0_102, %c0_103, %c24_104] : memref<1x8x32xbf16, #tpu.memory_space<vmem>>, vector<1x8x8xbf16>
      %176 = vector.shape_cast %175 : vector<1x8x8xbf16> to vector<8x8xbf16>
      %177 = vector.shape_cast %174 : vector<8x8xbf16> to vector<1x8x8xbf16>
      tpu.vector_store %arg7[%c0_102, %c0_103, %c24_104], %177 {strides = array<i32>} : memref<1x8x32xbf16, #tpu.memory_space<vmem>>, vector<1x8x8xbf16>,
    } else {
    }
    return
  }
  func.func @transform_0(%arg0: i32, %arg1: i32, %arg2: i32) -> (i32, i32, i32, i32, i32) {
    %c0_i32 = arith.constant 0 : i32
    %c0_i32_0 = arith.constant 0 : i32
    %c0_i32_1 = arith.constant 0 : i32
    %c0_i32_2 = arith.constant 0 : i32
    return %arg0, %arg1, %c0_i32, %c0_i32_0, %c0_i32_1 : i32, i32, i32, i32, i32
  }
  func.func @transform_1(%arg0: i32, %arg1: i32, %arg2: i32) -> (i32, i32, i32, i32, i32) {
    %c0_i32 = arith.constant 0 : i32
    %c0_i32_0 = arith.constant 0 : i32
    %c0_i32_1 = arith.constant 0 : i32
    %c0_i32_2 = arith.constant 0 : i32
    return %arg0, %arg2, %c0_i32, %c0_i32_0, %c0_i32_1 : i32, i32, i32, i32, i32
  }
  func.func @transform_2(%arg0: i32, %arg1: i32, %arg2: i32) -> (i32, i32, i32, i32, i32) {
    %c1_i32 = arith.constant 1 : i32
    %c0_i32 = arith.constant 0 : i32
    %c0_i32_0 = arith.constant 0 : i32
    %c0_i32_1 = arith.constant 0 : i32
    return %arg0, %arg2, %c1_i32, %c0_i32, %c0_i32_0 : i32, i32, i32, i32, i32
  }
  func.func @transform_3(%arg0: i32, %arg1: i32, %arg2: i32) -> (i32, i32, i32) {
    %c0_i32 = arith.constant 0 : i32
    %c0_i32_0 = arith.constant 0 : i32
    return %arg0, %c0_i32, %arg2 : i32, i32, i32
  }
  func.func @transform_4(%arg0: i32, %arg1: i32, %arg2: i32) -> (i32, i32, i32) {
    %c0_i32 = arith.constant 0 : i32
    %c0_i32_0 = arith.constant 0 : i32
    return %arg0, %arg1, %c0_i32 : i32, i32, i32
  }
}

module attributes {stable_mosaic.version = 11 : i64} {
  func.func @kernel(%arg0: i32, %arg1: memref<16x32xf32, #tpu.memory_space<vmem>>, %arg2: memref<1x32xf32, #tpu.memory_space<vmem>>, %arg3: memref<1x32xf32, #tpu.memory_space<vmem>>, %arg4: memref<32x64xbf16, #tpu.memory_space<vmem>>, %arg5: memref<1x64xf32, #tpu.memory_space<vmem>>, %arg6: memref<64x32xbf16, #tpu.memory_space<vmem>>, %arg7: memref<1x32xf32, #tpu.memory_space<vmem>>, %arg8: memref<16x32xf32, #tpu.memory_space<vmem>>) attributes {dimension_semantics = [#tpu.dimension_semantics<parallel>], iteration_bounds = array<i64: 1>, scalar_prefetch = 0 : i64, scratch_operands = 0 : i64, tpu.core_type = #tpu.core_type<tc>, window_params = [{transform_indices = @transform_0, window_bounds = array<i64: 16, 32>}, {pipeline_mode = #tpu.pipeline_mode<synchronous>, transform_indices = @transform_1, window_bounds = array<i64: 1, 32>}, {pipeline_mode = #tpu.pipeline_mode<synchronous>, transform_indices = @transform_2, window_bounds = array<i64: 1, 32>}, {pipeline_mode = #tpu.pipeline_mode<synchronous>, transform_indices = @transform_3, window_bounds = array<i64: 32, 64>}, {pipeline_mode = #tpu.pipeline_mode<synchronous>, transform_indices = @transform_4, window_bounds = array<i64: 1, 64>}, {pipeline_mode = #tpu.pipeline_mode<synchronous>, transform_indices = @transform_5, window_bounds = array<i64: 64, 32>}, {pipeline_mode = #tpu.pipeline_mode<synchronous>, transform_indices = @transform_6, window_bounds = array<i64: 1, 32>}, {transform_indices = @transform_7, window_bounds = array<i64: 16, 32>}]} {
    %c0 = arith.constant 0 : index
    %c0_0 = arith.constant 0 : index
    %0 = vector.load %arg1[%c0, %c0_0] : memref<16x32xf32, #tpu.memory_space<vmem>>, vector<16x32xf32>
    %cst = arith.constant dense<0.000000e+00> : vector<16xf32>
    %1 = vector.multi_reduction <add>, %0, %cst [1] : vector<16x32xf32> to vector<16xf32>
    %2 = vector.shape_cast %1 : vector<16xf32> to vector<16x1xf32>
    %cst_1 = arith.constant 3.200000e+01 : f32
    %3 = vector.broadcast %cst_1 : f32 to vector<16x1xf32>
    %4 = arith.divf %2, %3 : vector<16x1xf32>
    %5 = vector.broadcast %4 : vector<16x1xf32> to vector<16x32xf32>
    %6 = arith.subf %0, %5 : vector<16x32xf32>
    %7 = arith.mulf %6, %6 : vector<16x32xf32>
    %cst_2 = arith.constant dense<0.000000e+00> : vector<16xf32>
    %8 = vector.multi_reduction <add>, %7, %cst_2 [1] : vector<16x32xf32> to vector<16xf32>
    %9 = vector.shape_cast %8 : vector<16xf32> to vector<16x1xf32>
    %cst_3 = arith.constant 3.100000e+01 : f32
    %10 = vector.broadcast %cst_3 : f32 to vector<16x1xf32>
    %11 = arith.divf %9, %10 : vector<16x1xf32>
    %12 = math.sqrt %11 : vector<16x1xf32>
    %cst_4 = arith.constant 9.99999997E-7 : f32
    %13 = vector.broadcast %cst_4 : f32 to vector<16x1xf32>
    %14 = arith.addf %12, %13 : vector<16x1xf32>
    %15 = tpu.reciprocal %14 : vector<16x1xf32> -> vector<16x1xf32>
    %c0_5 = arith.constant 0 : index
    %c0_6 = arith.constant 0 : index
    %16 = vector.load %arg2[%c0_5, %c0_6] : memref<1x32xf32, #tpu.memory_space<vmem>>, vector<1x32xf32>
    %17 = vector.broadcast %4 : vector<16x1xf32> to vector<16x32xf32>
    %18 = arith.subf %0, %17 : vector<16x32xf32>
    %19 = vector.broadcast %15 : vector<16x1xf32> to vector<16x32xf32>
    %20 = arith.mulf %18, %19 : vector<16x32xf32>
    %21 = vector.broadcast %16 : vector<1x32xf32> to vector<16x32xf32>
    %22 = arith.mulf %21, %20 : vector<16x32xf32>
    %c0_7 = arith.constant 0 : index
    %c0_8 = arith.constant 0 : index
    %23 = vector.load %arg3[%c0_7, %c0_8] : memref<1x32xf32, #tpu.memory_space<vmem>>, vector<1x32xf32>
    %24 = vector.broadcast %23 : vector<1x32xf32> to vector<16x32xf32>
    %25 = arith.addf %22, %24 : vector<16x32xf32>
    %26 = arith.truncf %25 : vector<16x32xf32> to vector<16x32xbf16>
    %c0_9 = arith.constant 0 : index
    %c0_10 = arith.constant 0 : index
    %27 = vector.load %arg4[%c0_9, %c0_10] : memref<32x64xbf16, #tpu.memory_space<vmem>>, vector<32x64xbf16>
    %cst_11 = arith.constant dense<0.000000e+00> : vector<16x64xf32>
    %28 = tpu.matmul %26, %27, %cst_11 {dimension_numbers = #tpu.dot_dimension_numbers<[1], [0], [0], [1], [0, 0, 1, 1], [], []>} : vector<16x32xbf16>, vector<32x64xbf16>, vector<16x64xf32> -> vector<16x64xf32>
    %c0_12 = arith.constant 0 : index
    %c0_13 = arith.constant 0 : index
    %29 = vector.load %arg5[%c0_12, %c0_13] : memref<1x64xf32, #tpu.memory_space<vmem>>, vector<1x64xf32>
    %30 = vector.broadcast %29 : vector<1x64xf32> to vector<16x64xf32>
    %31 = arith.addf %28, %30 : vector<16x64xf32>
    %cst_14 = arith.constant 0.000000e+00 : f32
    %32 = vector.broadcast %cst_14 : f32 to vector<16x64xf32>
    %33 = arith.maximumf %31, %32 : vector<16x64xf32>
    %34 = arith.truncf %33 : vector<16x64xf32> to vector<16x64xbf16>
    %c0_15 = arith.constant 0 : index
    %c0_16 = arith.constant 0 : index
    %35 = vector.load %arg6[%c0_15, %c0_16] : memref<64x32xbf16, #tpu.memory_space<vmem>>, vector<64x32xbf16>
    %cst_17 = arith.constant dense<0.000000e+00> : vector<16x32xf32>
    %36 = tpu.matmul %34, %35, %cst_17 {dimension_numbers = #tpu.dot_dimension_numbers<[1], [0], [0], [1], [0, 0, 1, 1], [], []>} : vector<16x64xbf16>, vector<64x32xbf16>, vector<16x32xf32> -> vector<16x32xf32>
    %c0_18 = arith.constant 0 : index
    %c0_19 = arith.constant 0 : index
    %37 = vector.load %arg7[%c0_18, %c0_19] : memref<1x32xf32, #tpu.memory_space<vmem>>, vector<1x32xf32>
    %38 = vector.broadcast %37 : vector<1x32xf32> to vector<16x32xf32>
    %39 = arith.addf %36, %38 : vector<16x32xf32>
    %40 = arith.addf %0, %39 : vector<16x32xf32>
    %c0_20 = arith.constant 0 : index
    %c0_21 = arith.constant 0 : index
    %41 = vector.load %arg8[%c0_20, %c0_21] : memref<16x32xf32, #tpu.memory_space<vmem>>, vector<16x32xf32>
    tpu.vector_store %arg8[%c0_20, %c0_21], %40 {strides = array<i32>} : memref<16x32xf32, #tpu.memory_space<vmem>>, vector<16x32xf32>,
    return
  }
  func.func @transform_0(%arg0: i32) -> (i32, i32) {
    %c0_i32 = arith.constant 0 : i32
    %c0_i32_0 = arith.constant 0 : i32
    return %arg0, %c0_i32 : i32, i32
  }
  func.func @transform_1(%arg0: i32) -> (i32, i32) {
    %c0_i32 = arith.constant 0 : i32
    %c0_i32_0 = arith.constant 0 : i32
    %c0_i32_1 = arith.constant 0 : i32
    return %c0_i32, %c0_i32_0 : i32, i32
  }
  func.func @transform_2(%arg0: i32) -> (i32, i32) {
    %c0_i32 = arith.constant 0 : i32
    %c0_i32_0 = arith.constant 0 : i32
    %c0_i32_1 = arith.constant 0 : i32
    return %c0_i32, %c0_i32_0 : i32, i32
  }
  func.func @transform_3(%arg0: i32) -> (i32, i32) {
    %c0_i32 = arith.constant 0 : i32
    %c0_i32_0 = arith.constant 0 : i32
    %c0_i32_1 = arith.constant 0 : i32
    return %c0_i32, %c0_i32_0 : i32, i32
  }
  func.func @transform_4(%arg0: i32) -> (i32, i32) {
    %c0_i32 = arith.constant 0 : i32
    %c0_i32_0 = arith.constant 0 : i32
    %c0_i32_1 = arith.constant 0 : i32
    return %c0_i32, %c0_i32_0 : i32, i32
  }
  func.func @transform_5(%arg0: i32) -> (i32, i32) {
    %c0_i32 = arith.constant 0 : i32
    %c0_i32_0 = arith.constant 0 : i32
    %c0_i32_1 = arith.constant 0 : i32
    return %c0_i32, %c0_i32_0 : i32, i32
  }
  func.func @transform_6(%arg0: i32) -> (i32, i32) {
    %c0_i32 = arith.constant 0 : i32
    %c0_i32_0 = arith.constant 0 : i32
    %c0_i32_1 = arith.constant 0 : i32
    return %c0_i32, %c0_i32_0 : i32, i32
  }
  func.func @transform_7(%arg0: i32) -> (i32, i32) {
    %c0_i32 = arith.constant 0 : i32
    %c0_i32_0 = arith.constant 0 : i32
    return %arg0, %c0_i32 : i32, i32
  }
}

module attributes {stable_mosaic.version = 11 : i64} {
  func.func @kernel(%arg0: i32, %arg1: memref<16x32xf32, #tpu.memory_space<vmem>>, %arg2: memref<1x32xf32, #tpu.memory_space<vmem>>, %arg3: memref<1x32xf32, #tpu.memory_space<vmem>>, %arg4: memref<16x32xf32, #tpu.memory_space<vmem>>) attributes {dimension_semantics = [#tpu.dimension_semantics<parallel>], iteration_bounds = array<i64: 1>, scalar_prefetch = 0 : i64, scratch_operands = 0 : i64, tpu.core_type = #tpu.core_type<tc>, window_params = [{transform_indices = @transform_0, window_bounds = array<i64: 16, 32>}, {pipeline_mode = #tpu.pipeline_mode<synchronous>, transform_indices = @transform_1, window_bounds = array<i64: 1, 32>}, {pipeline_mode = #tpu.pipeline_mode<synchronous>, transform_indices = @transform_2, window_bounds = array<i64: 1, 32>}, {transform_indices = @transform_3, window_bounds = array<i64: 16, 32>}]} {
    %c0 = arith.constant 0 : index
    %c0_0 = arith.constant 0 : index
    %0 = vector.load %arg1[%c0, %c0_0] : memref<16x32xf32, #tpu.memory_space<vmem>>, vector<16x32xf32>
    %cst = arith.constant dense<0.000000e+00> : vector<16xf32>
    %1 = vector.multi_reduction <add>, %0, %cst [1] : vector<16x32xf32> to vector<16xf32>
    %2 = vector.shape_cast %1 : vector<16xf32> to vector<16x1xf32>
    %cst_1 = arith.constant 3.200000e+01 : f32
    %3 = vector.broadcast %cst_1 : f32 to vector<16x1xf32>
    %4 = arith.divf %2, %3 : vector<16x1xf32>
    %5 = vector.broadcast %4 : vector<16x1xf32> to vector<16x32xf32>
    %6 = arith.subf %0, %5 : vector<16x32xf32>
    %7 = arith.mulf %6, %6 : vector<16x32xf32>
    %cst_2 = arith.constant dense<0.000000e+00> : vector<16xf32>
    %8 = vector.multi_reduction <add>, %7, %cst_2 [1] : vector<16x32xf32> to vector<16xf32>
    %9 = vector.shape_cast %8 : vector<16xf32> to vector<16x1xf32>
    %cst_3 = arith.constant 3.100000e+01 : f32
    %10 = vector.broadcast %cst_3 : f32 to vector<16x1xf32>
    %11 = arith.divf %9, %10 : vector<16x1xf32>
    %12 = math.sqrt %11 : vector<16x1xf32>
    %cst_4 = arith.constant 9.99999997E-7 : f32
    %13 = vector.broadcast %cst_4 : f32 to vector<16x1xf32>
    %14 = arith.addf %12, %13 : vector<16x1xf32>
    %15 = tpu.reciprocal %14 : vector<16x1xf32> -> vector<16x1xf32>
    %c0_5 = arith.constant 0 : index
    %c0_6 = arith.constant 0 : index
    %16 = vector.load %arg2[%c0_5, %c0_6] : memref<1x32xf32, #tpu.memory_space<vmem>>, vector<1x32xf32>
    %17 = vector.broadcast %4 : vector<16x1xf32> to vector<16x32xf32>
    %18 = arith.subf %0, %17 : vector<16x32xf32>
    %19 = vector.broadcast %15 : vector<16x1xf32> to vector<16x32xf32>
    %20 = arith.mulf %18, %19 : vector<16x32xf32>
    %21 = vector.broadcast %16 : vector<1x32xf32> to vector<16x32xf32>
    %22 = arith.mulf %21, %20 : vector<16x32xf32>
    %c0_7 = arith.constant 0 : index
    %c0_8 = arith.constant 0 : index
    %23 = vector.load %arg3[%c0_7, %c0_8] : memref<1x32xf32, #tpu.memory_space<vmem>>, vector<1x32xf32>
    %24 = vector.broadcast %23 : vector<1x32xf32> to vector<16x32xf32>
    %25 = arith.addf %22, %24 : vector<16x32xf32>
    %c0_9 = arith.constant 0 : index
    %c0_10 = arith.constant 0 : index
    %26 = vector.load %arg4[%c0_9, %c0_10] : memref<16x32xf32, #tpu.memory_space<vmem>>, vector<16x32xf32>
    tpu.vector_store %arg4[%c0_9, %c0_10], %25 {strides = array<i32>} : memref<16x32xf32, #tpu.memory_space<vmem>>, vector<16x32xf32>,
    return
  }
  func.func @transform_0(%arg0: i32) -> (i32, i32) {
    %c0_i32 = arith.constant 0 : i32
    %c0_i32_0 = arith.constant 0 : i32
    return %arg0, %c0_i32 : i32, i32
  }
  func.func @transform_1(%arg0: i32) -> (i32, i32) {
    %c0_i32 = arith.constant 0 : i32
    %c0_i32_0 = arith.constant 0 : i32
    %c0_i32_1 = arith.constant 0 : i32
    return %c0_i32, %c0_i32_0 : i32, i32
  }
  func.func @transform_2(%arg0: i32) -> (i32, i32) {
    %c0_i32 = arith.constant 0 : i32
    %c0_i32_0 = arith.constant 0 : i32
    %c0_i32_1 = arith.constant 0 : i32
    return %c0_i32, %c0_i32_0 : i32, i32
  }
  func.func @transform_3(%arg0: i32) -> (i32, i32) {
    %c0_i32 = arith.constant 0 : i32
    %c0_i32_0 = arith.constant 0 : i32
    return %arg0, %c0_i32 : i32, i32
  }
}

</mosaic_0001>

<llo_original>
// kernel: run.17
$region0: #{run.17}
  #allocation0 [shape = 'u32[]', space=smem, size = 0x4, offset = 0x4, fixed_abs, tag = 'smem constant byte address 0x4 - core index']
  #allocation1 [shape = 'u32[72,128]{1,0:T(1,128)}', space=vmem, size = 0x9000, scoped, tag = 'internal scratch']
  #allocation2 [shape = 'f32[16,96]{1,0:T(8,128)}', space=vmem, size = 0x2000, scoped, tag = 'scratch operand']
  %s0 = inlined_call_operand.vmem [shape: f32[16,32], index: 0, kind: input, shape index: {}]
  %s1 = inlined_call_operand.vmem [shape: f32[1,32], index: 1, kind: input, shape index: {}]
  %s2 = inlined_call_operand.vmem [shape: f32[1,32], index: 2, kind: input, shape index: {}]
  %s3 = inlined_call_operand.vmem [shape: bf16[32,96], index: 3, kind: input, shape index: {}]
  %s4 = inlined_call_operand.vmem [shape: f32[1,96], index: 4, kind: input, shape index: {}]
  %s5 = inlined_call_operand.vmem [shape: bf16[16,96], index: 5, kind: output, shape index: {}]
  %s6 = sld [smem:[#allocation0]]
  $region38: #{run.17} parent=0
    _
  %s8 = ssub.s32 1, %s6
  %s9 = scalar_select 0, %s8, %s6
  // Predicated region
  $region2: #{run.17} parent=0 // pred_check
    _
  $region3: #{run.17} parent=0 // pred_check_branch
    %11 = sbr.rel (0) target = $region5
  $region4: #{run.17} parent=0 // pred_region
    _
  $region5: #{run.17} parent=0 // pred_fallthru
    _
  // Predicated region
  $region6: #{run.17} parent=0 // pred_check
    _
  $region7: #{run.17} parent=0 // pred_check_branch
    %13 = sbr.rel (0) target = $region9
  $region8: #{run.17} parent=0 // pred_region
    _
  $region9: #{run.17} parent=0 // pred_fallthru
    _
  // Predicated region
  $region10: #{run.17} parent=0 // pred_check
    _
  $region11: #{run.17} parent=0 // pred_check_branch
    %15 = sbr.rel (0) target = $region13
  $region12: #{run.17} parent=0 // pred_region
    _
  $region13: #{run.17} parent=0 // pred_fallthru
    _
  // Predicated region
  $region14: #{run.17} parent=0 // pred_check
    _
  $region15: #{run.17} parent=0 // pred_check_branch
    %17 = sbr.rel (0) target = $region17
  $region16: #{run.17} parent=0 // pred_region
    _
  $region17: #{run.17} parent=0 // pred_fallthru
    _
  // Predicated region
  $region18: #{run.17} parent=0 // pred_check
    _
  $region19: #{run.17} parent=0 // pred_check_branch
    %19 = sbr.rel (0) target = $region21
  $region20: #{run.17} parent=0 // pred_region
    _
  $region21: #{run.17} parent=0 // pred_fallthru
    _
  %p21 = scmp.eq.s32.totalorder 0, 0
  // Predicated region
  $region22: #{run.17} parent=0 // pred_check
    %p22 = pneg %p21
  $region23: #{run.17} parent=0 // pred_check_branch
    %24 = sbr.rel (%p22) target = $region25
  $region24: #{run.17} parent=0 // pred_region
    %vm25 = vcmask 785408
    %26 = vst.msk [vmem:[#allocation2] sm:$0xff] %vm25, 0.0
    %27 = vst.msk [vmem:[#allocation2 + $0x8] sm:$0xff] %vm25, 0.0
  $region25: #{run.17} parent=0 // pred_fallthru
    _
  %v28 = vld [vmem:[%s0] sm:$0xff]
  %v29 = vld [vmem:[%s0 + $0x8] sm:$0xff]
  %vm30 = vcmask 261120
  %v31 = vsel %vm30, %v28, 0.0
  %32 = vadd.xlane.f32.xlu0 %v31
  %v33 = vpop.xlane.xlu0 %32
  %v34 = vsel %vm30, %v29, 0.0
  %35 = vadd.xlane.f32.xlu0 %v34
  %v36 = vpop.xlane.xlu0 %35
  %v37 = vrcp.pop 32.0
  %v38 = vmul.f32 32.0, %v37
  %v39 = vsub.f32 1.0, %v38
  %v40 = vmul.f32 %v37, %v39
  %v41 = vadd.f32 %v37, %v40
  %vm42 = vweird.f32 %v37
  %v43 = vsel %vm42, %v37, %v41
  %v44 = vmul.f32 %v33, %v43
  %v45 = vmul.f32 %v36, %v43
  %v46 = vsub.f32 %v28, %v44
  %v47 = vsub.f32 %v29, %v45
  %v48 = vmul.f32 %v46, %v46
  %v49 = vmul.f32 %v47, %v47
  %v50 = vsel %vm30, %v48, 0.0
  %51 = vadd.xlane.f32.xlu0 %v50
  %v52 = vpop.xlane.xlu0 %51
  %v53 = vsel %vm30, %v49, 0.0
  %54 = vadd.xlane.f32.xlu0 %v53
  %v55 = vpop.xlane.xlu0 %54
  %v56 = vrcp.pop 31.0
  %v57 = vmul.f32 31.0, %v56
  %v58 = vsub.f32 1.0, %v57
  %v59 = vmul.f32 %v56, %v58
  %v60 = vadd.f32 %v56, %v59
  %vm61 = vweird.f32 %v56
  %v62 = vsel %vm61, %v56, %v60
  %v63 = vmul.f32 %v52, %v62
  %v64 = vmul.f32 %v55, %v62
  %v65 = vrsqrt.pop %v63
  %v66 = vmul.f32 %v65, %v63
  %v67 = vmul.f32 %v66, %v65
  %v68 = vmul.f32 0.5, %v67
  %v69 = vsub.f32 1.5, %v68
  %v70 = vmul.f32 %v65, %v69
  %v71 = vmul.f32 %v63, %v70
  %vm72 = vcmp.eq.f32.partialorder %v63, inf
  %v73 = vsel %vm72, %v63, %v71
  %vm74 = vcmp.eq.f32.partialorder %v63, 0.0
  %v75 = vand.u32 %v63, 2147483648
  %v76 = vsel %vm74, %v75, %v73
  %v77 = vrsqrt.pop %v64
  %v78 = vmul.f32 %v77, %v64
  %v79 = vmul.f32 %v78, %v77
  %v80 = vmul.f32 0.5, %v79
  %v81 = vsub.f32 1.5, %v80
  %v82 = vmul.f32 %v77, %v81
  %v83 = vmul.f32 %v64, %v82
  %vm84 = vcmp.eq.f32.partialorder %v64, inf
  %v85 = vsel %vm84, %v64, %v83
  %vm86 = vcmp.eq.f32.partialorder %v64, 0.0
  %v87 = vand.u32 %v64, 2147483648
  %v88 = vsel %vm86, %v87, %v85
  %v89 = vadd.f32 %v76, 1e-06
  %v90 = vadd.f32 %v88, 1e-06
  %v91 = vrcp.pop %v89
  %v92 = vmul.f32 %v89, %v91
  %v93 = vsub.f32 1.0, %v92
  %v94 = vmul.f32 %v91, %v93
  %v95 = vadd.f32 %v91, %v94
  %vm96 = vweird.f32 %v89
  %vm97 = vweird.f32 %v91
  %vm98 = vmor %vm96, %vm97
  %v99 = vsel %vm98, %v91, %v95
  %v100 = vand.u32 2147483647, %v89
  %vm101 = vcmp.eq.f32.partialorder %v100, 8.507059e+37
  %v102 = vand.u32 %v89, 2147483648
  %v103 = vor.u32 1.1754944e-38, %v102
  %v104 = vsel %vm101, %v103, %v99
  %v105 = vrcp.pop %v90
  %v106 = vmul.f32 %v90, %v105
  %v107 = vsub.f32 1.0, %v106
  %v108 = vmul.f32 %v105, %v107
  %v109 = vadd.f32 %v105, %v108
  %vm110 = vweird.f32 %v90
  %vm111 = vweird.f32 %v105
  %vm112 = vmor %vm110, %vm111
  %v113 = vsel %vm112, %v105, %v109
  %v114 = vand.u32 2147483647, %v90
  %vm115 = vcmp.eq.f32.partialorder %v114, 8.507059e+37
  %v116 = vand.u32 %v90, 2147483648
  %v117 = vor.u32 1.1754944e-38, %v116
  %v118 = vsel %vm115, %v117, %v113
  %v119 = vld [vmem:[%s1] sm:$0x1]
  %v120 = vmul.f32 %v46, %v104
  %v121 = vmul.f32 %v47, %v118
  %v123 = vperm.slane %v119, 0
  %v125 = vmul.f32 %v123, %v120
  %v126 = vmul.f32 %v123, %v121
  %v127 = vld [vmem:[%s2] sm:$0x1]
  %v129 = vperm.slane %v127, 0
  %v131 = vadd.f32 %v125, %v129
  %v132 = vadd.f32 %v126, %v129
  %v133 = vld [vmem:[#allocation2] sm:$0xff]
  %v134 = vld [vmem:[#allocation2 + $0x8] sm:$0xff]
  %v135 = vpack.c.bf16 %v132, %v131
  %v136 = vld [vmem:[%s3] sm:$0xf]
  %v137 = vld [vmem:[%s3 + $0x4] sm:$0xf]
  %v138 = vld [vmem:[%s3 + $0x8] sm:$0xf]
  %v139 = vld [vmem:[%s3 + $0xc] sm:$0xf]
  %v144 = vunpack.c.l.b16 %v136
  %v145 = vunpack.c.l.b16 %v137
  %v146 = vunpack.c.l.b16 %v138
  %v147 = vunpack.c.l.b16 %v139
  %v148 = vpack.c.b16 %v145, %v144
  %v149 = vpack.c.b16 %v147, %v146
  %v153 = vsel %vm30, %v135, 0
  %155 = vmatpush.bf16.msra.mxu0 0
  %156 = vmatpush.bf16.msra.mxu0 0
  %157 = vmatpush.bf16.msra.mxu0 0
  %158 = vmatpush.bf16.msra.mxu0 0
  %159 = vmatpush.bf16.msra.mxu0 0
  %160 = vmatpush.bf16.msra.mxu0 0
  %161 = vmatpush.bf16.msra.mxu0 %v149
  %162 = vmatpush.bf16.msra.mxu0 %v148
  %163 = vmatmul.bf16.gmra.mxu0 %v153
  %v164 = vpop.f32.mrf.mxu0
  %v165 = vadd.f32 0.0, %v164
  %v166 = vpop.f32.mrf.mxu0
  %v167 = vadd.f32 0.0, %v166
  %168 = vdwg.mxu0
  %v169 = vadd.f32 %v133, %v165
  %v170 = vadd.f32 %v134, %v167
  %vm171 = vcmask 785408
  %172 = vst.msk [vmem:[#allocation2] sm:$0xff] %vm171, %v169
  %173 = vst.msk [vmem:[#allocation2 + $0x8] sm:$0xff] %vm171, %v170
  // Predicated region
  $region26: #{run.17} parent=0 // pred_check
    %p174 = pneg %p21
  $region27: #{run.17} parent=0 // pred_check_branch
    %176 = sbr.rel (%p174) target = $region29
  $region28: #{run.17} parent=0 // pred_region
    %v177 = vld [vmem:[#allocation2] sm:$0xff]
    %v178 = vld [vmem:[#allocation2 + $0x8] sm:$0xff]
    %v179 = vld [vmem:[%s4] sm:$0x1]
    %v181 = vperm.slane %v179, 0
    %v183 = vadd.f32 %v177, %v181
    %v184 = vadd.f32 %v178, %v181
    %v185 = vpack.c.bf16 %v183, %v183
    %v186 = vpack.c.bf16 %v184, %v184
    %vm187 = vcmask 781312
    %188 = vst.msk [vmem:[%s5] sm:$0xf] %vm187, %v185
    %189 = vst.msk [vmem:[%s5 + $0x4] sm:$0xf] %vm187, %v186
  $region29: #{run.17} parent=0 // pred_fallthru
    _
  // Predicated region
  $region30: #{run.17} parent=0 // pred_check
    _
  $region31: #{run.17} parent=0 // pred_check_branch
    %191 = sbr.rel (0) target = $region33
  $region32: #{run.17} parent=0 // pred_region
    _
  $region33: #{run.17} parent=0 // pred_fallthru
    _
  // Predicated region
  $region34: #{run.17} parent=0 // pred_check
    _
  $region35: #{run.17} parent=0 // pred_check_branch
    %193 = sbr.rel (0) target = $region37
  $region36: #{run.17} parent=0 // pred_region
    _
  $region37: #{run.17} parent=0 // pred_fallthru
    _

// kernel: run.19
$region0: #{run.19}
  #allocation0 [shape = 'u32[]', space=smem, size = 0x4, offset = 0x4, fixed_abs, tag = 'smem constant byte address 0x4 - core index']
  #allocation1 [shape = 'u32[72,128]{1,0:T(1,128)}', space=vmem, size = 0x9000, scoped, tag = 'internal scratch']
  #allocation2 [shape = 'f32[16,32]{1,0:T(8,128)}', space=vmem, size = 0x2000, scoped, tag = 'scratch operand']
  %s0 = inlined_call_operand.vmem [shape: bf16[16,32], index: 0, kind: input, shape index: {}]
  %s1 = inlined_call_operand.vmem [shape: bf16[32,32], index: 1, kind: input, shape index: {}]
  %s2 = inlined_call_operand.vmem [shape: f32[1,32], index: 2, kind: input, shape index: {}]
  %s3 = inlined_call_operand.vmem [shape: f32[16,32], index: 3, kind: input, shape index: {}]
  %s4 = inlined_call_operand.vmem [shape: f32[16,32], index: 4, kind: output, shape index: {}]
  %s5 = sld [smem:[#allocation0]]
  $region34: #{run.19} parent=0
    _
  %s7 = ssub.s32 1, %s5
  %s8 = scalar_select 0, %s7, %s5
  // Predicated region
  $region2: #{run.19} parent=0 // pred_check
    _
  $region3: #{run.19} parent=0 // pred_check_branch
    %10 = sbr.rel (0) target = $region5
  $region4: #{run.19} parent=0 // pred_region
    _
  $region5: #{run.19} parent=0 // pred_fallthru
    _
  // Predicated region
  $region6: #{run.19} parent=0 // pred_check
    _
  $region7: #{run.19} parent=0 // pred_check_branch
    %12 = sbr.rel (0) target = $region9
  $region8: #{run.19} parent=0 // pred_region
    _
  $region9: #{run.19} parent=0 // pred_fallthru
    _
  // Predicated region
  $region10: #{run.19} parent=0 // pred_check
    _
  $region11: #{run.19} parent=0 // pred_check_branch
    %14 = sbr.rel (0) target = $region13
  $region12: #{run.19} parent=0 // pred_region
    _
  $region13: #{run.19} parent=0 // pred_fallthru
    _
  // Predicated region
  $region14: #{run.19} parent=0 // pred_check
    _
  $region15: #{run.19} parent=0 // pred_check_branch
    %16 = sbr.rel (0) target = $region17
  $region16: #{run.19} parent=0 // pred_region
    _
  $region17: #{run.19} parent=0 // pred_fallthru
    _
  %p18 = scmp.eq.s32.totalorder 0, 0
  // Predicated region
  $region18: #{run.19} parent=0 // pred_check
    %p19 = pneg %p18
  $region19: #{run.19} parent=0 // pred_check_branch
    %21 = sbr.rel (%p19) target = $region21
  $region20: #{run.19} parent=0 // pred_region
    %vm22 = vcmask 261120
    %23 = vst.msk [vmem:[#allocation2] sm:$0xff] %vm22, 0.0
    %24 = vst.msk [vmem:[#allocation2 + $0x8] sm:$0xff] %vm22, 0.0
  $region21: #{run.19} parent=0 // pred_fallthru
    _
  %v25 = vld [vmem:[%s0] sm:$0xf]
  %v26 = vld [vmem:[%s0 + $0x4] sm:$0xf]
  %v27 = vld [vmem:[#allocation2] sm:$0xff]
  %v28 = vld [vmem:[#allocation2 + $0x8] sm:$0xff]
  %v29 = vld [vmem:[%s1] sm:$0xf]
  %v30 = vld [vmem:[%s1 + $0x4] sm:$0xf]
  %v31 = vld [vmem:[%s1 + $0x8] sm:$0xf]
  %v32 = vld [vmem:[%s1 + $0xc] sm:$0xf]
  %v35 = vunpack.c.l.b16 %v25
  %v36 = vunpack.c.l.b16 %v26
  %v37 = vpack.c.b16 %v36, %v35
  %v42 = vunpack.c.l.b16 %v29
  %v43 = vunpack.c.l.b16 %v30
  %v44 = vunpack.c.l.b16 %v31
  %v45 = vunpack.c.l.b16 %v32
  %v46 = vpack.c.b16 %v43, %v42
  %v47 = vpack.c.b16 %v45, %v44
  %vm50 = vcmask 261120
  %v52 = vsel %vm50, %v37, 0
  %54 = vmatpush.bf16.msra.mxu0 0
  %55 = vmatpush.bf16.msra.mxu0 0
  %56 = vmatpush.bf16.msra.mxu0 0
  %57 = vmatpush.bf16.msra.mxu0 0
  %58 = vmatpush.bf16.msra.mxu0 0
  %59 = vmatpush.bf16.msra.mxu0 0
  %60 = vmatpush.bf16.msra.mxu0 %v47
  %61 = vmatpush.bf16.msra.mxu0 %v46
  %62 = vmatmul.bf16.gmra.mxu0 %v52
  %v63 = vpop.f32.mrf.mxu0
  %v64 = vadd.f32 0.0, %v63
  %v65 = vpop.f32.mrf.mxu0
  %v66 = vadd.f32 0.0, %v65
  %67 = vdwg.mxu0
  %v68 = vadd.f32 %v27, %v64
  %v69 = vadd.f32 %v28, %v66
  %70 = vst.msk [vmem:[#allocation2] sm:$0xff] %vm50, %v68
  %71 = vst.msk [vmem:[#allocation2 + $0x8] sm:$0xff] %vm50, %v69
  // Predicated region
  $region22: #{run.19} parent=0 // pred_check
    %p72 = pneg %p18
  $region23: #{run.19} parent=0 // pred_check_branch
    %74 = sbr.rel (%p72) target = $region25
  $region24: #{run.19} parent=0 // pred_region
    %v75 = vld [vmem:[#allocation2] sm:$0xff]
    %v76 = vld [vmem:[#allocation2 + $0x8] sm:$0xff]
    %v77 = vld [vmem:[%s2] sm:$0x1]
    %v79 = vperm.slane %v77, 0
    %v81 = vadd.f32 %v75, %v79
    %v82 = vadd.f32 %v76, %v79
    %v83 = vld [vmem:[%s3] sm:$0xff]
    %v84 = vld [vmem:[%s3 + $0x8] sm:$0xff]
    %v85 = vadd.f32 %v81, %v83
    %v86 = vadd.f32 %v82, %v84
    %87 = vst.msk [vmem:[%s4] sm:$0xff] %vm50, %v85
    %88 = vst.msk [vmem:[%s4 + $0x8] sm:$0xff] %vm50, %v86
  $region25: #{run.19} parent=0 // pred_fallthru
    _
  // Predicated region
  $region26: #{run.19} parent=0 // pred_check
    _
  $region27: #{run.19} parent=0 // pred_check_branch
    %90 = sbr.rel (0) target = $region29
  $region28: #{run.19} parent=0 // pred_region
    _
  $region29: #{run.19} parent=0 // pred_fallthru
    _
  // Predicated region
  $region30: #{run.19} parent=0 // pred_check
    _
  $region31: #{run.19} parent=0 // pred_check_branch
    %92 = sbr.rel (0) target = $region33
  $region32: #{run.19} parent=0 // pred_region
    _
  $region33: #{run.19} parent=0 // pred_fallthru
    _

// kernel: run.20
$region0: #{run.20}
  #allocation0 [shape = 'u32[]', space=smem, size = 0x4, offset = 0x4, fixed_abs, tag = 'smem constant byte address 0x4 - core index']
  #allocation1 [shape = 'u32[72,128]{1,0:T(1,128)}', space=vmem, size = 0x9000, scoped, tag = 'internal scratch']
  #allocation2 [shape = 'f32[16,32]{1,0:T(8,128)}', space=vmem, size = 0x2000, scoped, tag = 'scratch operand']
  %s0 = inlined_call_operand.vmem [shape: f32[16,32], index: 0, kind: input, shape index: {}]
  %s1 = inlined_call_operand.vmem [shape: f32[1,32], index: 1, kind: input, shape index: {}]
  %s2 = inlined_call_operand.vmem [shape: f32[1,32], index: 2, kind: input, shape index: {}]
  %s3 = inlined_call_operand.vmem [shape: bf16[32,32], index: 3, kind: input, shape index: {}]
  %s4 = inlined_call_operand.vmem [shape: f32[1,32], index: 4, kind: input, shape index: {}]
  %s5 = inlined_call_operand.vmem [shape: bf16[16,32], index: 5, kind: output, shape index: {}]
  %s6 = sld [smem:[#allocation0]]
  $region38: #{run.20} parent=0
    _
  %s8 = ssub.s32 1, %s6
  %s9 = scalar_select 0, %s8, %s6
  // Predicated region
  $region2: #{run.20} parent=0 // pred_check
    _
  $region3: #{run.20} parent=0 // pred_check_branch
    %11 = sbr.rel (0) target = $region5
  $region4: #{run.20} parent=0 // pred_region
    _
  $region5: #{run.20} parent=0 // pred_fallthru
    _
  // Predicated region
  $region6: #{run.20} parent=0 // pred_check
    _
  $region7: #{run.20} parent=0 // pred_check_branch
    %13 = sbr.rel (0) target = $region9
  $region8: #{run.20} parent=0 // pred_region
    _
  $region9: #{run.20} parent=0 // pred_fallthru
    _
  // Predicated region
  $region10: #{run.20} parent=0 // pred_check
    _
  $region11: #{run.20} parent=0 // pred_check_branch
    %15 = sbr.rel (0) target = $region13
  $region12: #{run.20} parent=0 // pred_region
    _
  $region13: #{run.20} parent=0 // pred_fallthru
    _
  // Predicated region
  $region14: #{run.20} parent=0 // pred_check
    _
  $region15: #{run.20} parent=0 // pred_check_branch
    %17 = sbr.rel (0) target = $region17
  $region16: #{run.20} parent=0 // pred_region
    _
  $region17: #{run.20} parent=0 // pred_fallthru
    _
  // Predicated region
  $region18: #{run.20} parent=0 // pred_check
    _
  $region19: #{run.20} parent=0 // pred_check_branch
    %19 = sbr.rel (0) target = $region21
  $region20: #{run.20} parent=0 // pred_region
    _
  $region21: #{run.20} parent=0 // pred_fallthru
    _
  %p21 = scmp.eq.s32.totalorder 0, 0
  // Predicated region
  $region22: #{run.20} parent=0 // pred_check
    %p22 = pneg %p21
  $region23: #{run.20} parent=0 // pred_check_branch
    %24 = sbr.rel (%p22) target = $region25
  $region24: #{run.20} parent=0 // pred_region
    %vm25 = vcmask 261120
    %26 = vst.msk [vmem:[#allocation2] sm:$0xff] %vm25, 0.0
    %27 = vst.msk [vmem:[#allocation2 + $0x8] sm:$0xff] %vm25, 0.0
  $region25: #{run.20} parent=0 // pred_fallthru
    _
  %v28 = vld [vmem:[%s0] sm:$0xff]
  %v29 = vld [vmem:[%s0 + $0x8] sm:$0xff]
  %vm30 = vcmask 261120
  %v31 = vsel %vm30, %v28, 0.0
  %32 = vadd.xlane.f32.xlu0 %v31
  %v33 = vpop.xlane.xlu0 %32
  %v34 = vsel %vm30, %v29, 0.0
  %35 = vadd.xlane.f32.xlu0 %v34
  %v36 = vpop.xlane.xlu0 %35
  %v37 = vrcp.pop 32.0
  %v38 = vmul.f32 32.0, %v37
  %v39 = vsub.f32 1.0, %v38
  %v40 = vmul.f32 %v37, %v39
  %v41 = vadd.f32 %v37, %v40
  %vm42 = vweird.f32 %v37
  %v43 = vsel %vm42, %v37, %v41
  %v44 = vmul.f32 %v33, %v43
  %v45 = vmul.f32 %v36, %v43
  %v46 = vsub.f32 %v28, %v44
  %v47 = vsub.f32 %v29, %v45
  %v48 = vmul.f32 %v46, %v46
  %v49 = vmul.f32 %v47, %v47
  %v50 = vsel %vm30, %v48, 0.0
  %51 = vadd.xlane.f32.xlu0 %v50
  %v52 = vpop.xlane.xlu0 %51
  %v53 = vsel %vm30, %v49, 0.0
  %54 = vadd.xlane.f32.xlu0 %v53
  %v55 = vpop.xlane.xlu0 %54
  %v56 = vrcp.pop 31.0
  %v57 = vmul.f32 31.0, %v56
  %v58 = vsub.f32 1.0, %v57
  %v59 = vmul.f32 %v56, %v58
  %v60 = vadd.f32 %v56, %v59
  %vm61 = vweird.f32 %v56
  %v62 = vsel %vm61, %v56, %v60
  %v63 = vmul.f32 %v52, %v62
  %v64 = vmul.f32 %v55, %v62
  %v65 = vrsqrt.pop %v63
  %v66 = vmul.f32 %v65, %v63
  %v67 = vmul.f32 %v66, %v65
  %v68 = vmul.f32 0.5, %v67
  %v69 = vsub.f32 1.5, %v68
  %v70 = vmul.f32 %v65, %v69
  %v71 = vmul.f32 %v63, %v70
  %vm72 = vcmp.eq.f32.partialorder %v63, inf
  %v73 = vsel %vm72, %v63, %v71
  %vm74 = vcmp.eq.f32.partialorder %v63, 0.0
  %v75 = vand.u32 %v63, 2147483648
  %v76 = vsel %vm74, %v75, %v73
  %v77 = vrsqrt.pop %v64
  %v78 = vmul.f32 %v77, %v64
  %v79 = vmul.f32 %v78, %v77
  %v80 = vmul.f32 0.5, %v79
  %v81 = vsub.f32 1.5, %v80
  %v82 = vmul.f32 %v77, %v81
  %v83 = vmul.f32 %v64, %v82
  %vm84 = vcmp.eq.f32.partialorder %v64, inf
  %v85 = vsel %vm84, %v64, %v83
  %vm86 = vcmp.eq.f32.partialorder %v64, 0.0
  %v87 = vand.u32 %v64, 2147483648
  %v88 = vsel %vm86, %v87, %v85
  %v89 = vadd.f32 %v76, 1e-06
  %v90 = vadd.f32 %v88, 1e-06
  %v91 = vrcp.pop %v89
  %v92 = vmul.f32 %v89, %v91
  %v93 = vsub.f32 1.0, %v92
  %v94 = vmul.f32 %v91, %v93
  %v95 = vadd.f32 %v91, %v94
  %vm96 = vweird.f32 %v89
  %vm97 = vweird.f32 %v91
  %vm98 = vmor %vm96, %vm97
  %v99 = vsel %vm98, %v91, %v95
  %v100 = vand.u32 2147483647, %v89
  %vm101 = vcmp.eq.f32.partialorder %v100, 8.507059e+37
  %v102 = vand.u32 %v89, 2147483648
  %v103 = vor.u32 1.1754944e-38, %v102
  %v104 = vsel %vm101, %v103, %v99
  %v105 = vrcp.pop %v90
  %v106 = vmul.f32 %v90, %v105
  %v107 = vsub.f32 1.0, %v106
  %v108 = vmul.f32 %v105, %v107
  %v109 = vadd.f32 %v105, %v108
  %vm110 = vweird.f32 %v90
  %vm111 = vweird.f32 %v105
  %vm112 = vmor %vm110, %vm111
  %v113 = vsel %vm112, %v105, %v109
  %v114 = vand.u32 2147483647, %v90
  %vm115 = vcmp.eq.f32.partialorder %v114, 8.507059e+37
  %v116 = vand.u32 %v90, 2147483648
  %v117 = vor.u32 1.1754944e-38, %v116
  %v118 = vsel %vm115, %v117, %v113
  %v119 = vld [vmem:[%s1] sm:$0x1]
  %v120 = vmul.f32 %v46, %v104
  %v121 = vmul.f32 %v47, %v118
  %v123 = vperm.slane %v119, 0
  %v125 = vmul.f32 %v123, %v120
  %v126 = vmul.f32 %v123, %v121
  %v127 = vld [vmem:[%s2] sm:$0x1]
  %v129 = vperm.slane %v127, 0
  %v131 = vadd.f32 %v125, %v129
  %v132 = vadd.f32 %v126, %v129
  %v133 = vld [vmem:[#allocation2] sm:$0xff]
  %v134 = vld [vmem:[#allocation2 + $0x8] sm:$0xff]
  %v135 = vpack.c.bf16 %v132, %v131
  %v136 = vld [vmem:[%s3] sm:$0xf]
  %v137 = vld [vmem:[%s3 + $0x4] sm:$0xf]
  %v138 = vld [vmem:[%s3 + $0x8] sm:$0xf]
  %v139 = vld [vmem:[%s3 + $0xc] sm:$0xf]
  %v144 = vunpack.c.l.b16 %v136
  %v145 = vunpack.c.l.b16 %v137
  %v146 = vunpack.c.l.b16 %v138
  %v147 = vunpack.c.l.b16 %v139
  %v148 = vpack.c.b16 %v145, %v144
  %v149 = vpack.c.b16 %v147, %v146
  %v153 = vsel %vm30, %v135, 0
  %155 = vmatpush.bf16.msra.mxu0 0
  %156 = vmatpush.bf16.msra.mxu0 0
  %157 = vmatpush.bf16.msra.mxu0 0
  %158 = vmatpush.bf16.msra.mxu0 0
  %159 = vmatpush.bf16.msra.mxu0 0
  %160 = vmatpush.bf16.msra.mxu0 0
  %161 = vmatpush.bf16.msra.mxu0 %v149
  %162 = vmatpush.bf16.msra.mxu0 %v148
  %163 = vmatmul.bf16.gmra.mxu0 %v153
  %v164 = vpop.f32.mrf.mxu0
  %v165 = vadd.f32 0.0, %v164
  %v166 = vpop.f32.mrf.mxu0
  %v167 = vadd.f32 0.0, %v166
  %168 = vdwg.mxu0
  %v169 = vadd.f32 %v133, %v165
  %v170 = vadd.f32 %v134, %v167
  %171 = vst.msk [vmem:[#allocation2] sm:$0xff] %vm30, %v169
  %172 = vst.msk [vmem:[#allocation2 + $0x8] sm:$0xff] %vm30, %v170
  // Predicated region
  $region26: #{run.20} parent=0 // pred_check
    %p173 = pneg %p21
  $region27: #{run.20} parent=0 // pred_check_branch
    %175 = sbr.rel (%p173) target = $region29
  $region28: #{run.20} parent=0 // pred_region
    %v176 = vld [vmem:[#allocation2] sm:$0xff]
    %v177 = vld [vmem:[#allocation2 + $0x8] sm:$0xff]
    %v178 = vld [vmem:[%s4] sm:$0x1]
    %v180 = vperm.slane %v178, 0
    %v182 = vadd.f32 %v176, %v180
    %v183 = vadd.f32 %v177, %v180
    %v184 = vpack.c.bf16 %v182, %v182
    %v185 = vpack.c.bf16 %v183, %v183
    %vm186 = vcmask 257024
    %187 = vst.msk [vmem:[%s5] sm:$0xf] %vm186, %v184
    %188 = vst.msk [vmem:[%s5 + $0x4] sm:$0xf] %vm186, %v185
  $region29: #{run.20} parent=0 // pred_fallthru
    _
  // Predicated region
  $region30: #{run.20} parent=0 // pred_check
    _
  $region31: #{run.20} parent=0 // pred_check_branch
    %190 = sbr.rel (0) target = $region33
  $region32: #{run.20} parent=0 // pred_region
    _
  $region33: #{run.20} parent=0 // pred_fallthru
    _
  // Predicated region
  $region34: #{run.20} parent=0 // pred_check
    _
  $region35: #{run.20} parent=0 // pred_check_branch
    %192 = sbr.rel (0) target = $region37
  $region36: #{run.20} parent=0 // pred_region
    _
  $region37: #{run.20} parent=0 // pred_fallthru
    _

// kernel: run.21
$region0: #{run.21}
  #allocation0 [shape = 'u32[]', space=smem, size = 0x4, offset = 0x4, fixed_abs, tag = 'smem constant byte address 0x4 - core index']
  #allocation1 [shape = 'u32[72,128]{1,0:T(1,128)}', space=vmem, size = 0x9000, scoped, tag = 'internal scratch']
  #allocation2 [shape = 'f32[16,64]{1,0:T(8,128)}', space=vmem, size = 0x2000, scoped, tag = 'scratch operand']
  %s0 = inlined_call_operand.vmem [shape: f32[16,32], index: 0, kind: input, shape index: {}]
  %s1 = inlined_call_operand.vmem [shape: bf16[32,64], index: 1, kind: input, shape index: {}]
  %s2 = inlined_call_operand.vmem [shape: f32[1,64], index: 2, kind: input, shape index: {}]
  %s3 = inlined_call_operand.vmem [shape: bf16[16,64], index: 3, kind: output, shape index: {}]
  %s4 = sld [smem:[#allocation0]]
  $region30: #{run.21} parent=0
    _
  %s6 = ssub.s32 1, %s4
  %s7 = scalar_select 0, %s6, %s4
  // Predicated region
  $region2: #{run.21} parent=0 // pred_check
    _
  $region3: #{run.21} parent=0 // pred_check_branch
    %9 = sbr.rel (0) target = $region5
  $region4: #{run.21} parent=0 // pred_region
    _
  $region5: #{run.21} parent=0 // pred_fallthru
    _
  // Predicated region
  $region6: #{run.21} parent=0 // pred_check
    _
  $region7: #{run.21} parent=0 // pred_check_branch
    %11 = sbr.rel (0) target = $region9
  $region8: #{run.21} parent=0 // pred_region
    _
  $region9: #{run.21} parent=0 // pred_fallthru
    _
  // Predicated region
  $region10: #{run.21} parent=0 // pred_check
    _
  $region11: #{run.21} parent=0 // pred_check_branch
    %13 = sbr.rel (0) target = $region13
  $region12: #{run.21} parent=0 // pred_region
    _
  $region13: #{run.21} parent=0 // pred_fallthru
    _
  %p15 = scmp.eq.s32.totalorder 0, 0
  // Predicated region
  $region14: #{run.21} parent=0 // pred_check
    %p16 = pneg %p15
  $region15: #{run.21} parent=0 // pred_check_branch
    %18 = sbr.rel (%p16) target = $region17
  $region16: #{run.21} parent=0 // pred_region
    %vm19 = vcmask 523264
    %20 = vst.msk [vmem:[#allocation2] sm:$0xff] %vm19, 0.0
    %21 = vst.msk [vmem:[#allocation2 + $0x8] sm:$0xff] %vm19, 0.0
  $region17: #{run.21} parent=0 // pred_fallthru
    _
  %v22 = vld [vmem:[%s0] sm:$0xff]
  %v23 = vld [vmem:[%s0 + $0x8] sm:$0xff]
  %v24 = vld [vmem:[#allocation2] sm:$0xff]
  %v25 = vld [vmem:[#allocation2 + $0x8] sm:$0xff]
  %v26 = vpack.c.bf16 %v23, %v22
  %v27 = vld [vmem:[%s1] sm:$0xf]
  %v28 = vld [vmem:[%s1 + $0x4] sm:$0xf]
  %v29 = vld [vmem:[%s1 + $0x8] sm:$0xf]
  %v30 = vld [vmem:[%s1 + $0xc] sm:$0xf]
  %v35 = vunpack.c.l.b16 %v27
  %v36 = vunpack.c.l.b16 %v28
  %v37 = vunpack.c.l.b16 %v29
  %v38 = vunpack.c.l.b16 %v30
  %v39 = vpack.c.b16 %v36, %v35
  %v40 = vpack.c.b16 %v38, %v37
  %vm43 = vcmask 261120
  %v45 = vsel %vm43, %v26, 0
  %47 = vmatpush.bf16.msra.mxu0 0
  %48 = vmatpush.bf16.msra.mxu0 0
  %49 = vmatpush.bf16.msra.mxu0 0
  %50 = vmatpush.bf16.msra.mxu0 0
  %51 = vmatpush.bf16.msra.mxu0 0
  %52 = vmatpush.bf16.msra.mxu0 0
  %53 = vmatpush.bf16.msra.mxu0 %v40
  %54 = vmatpush.bf16.msra.mxu0 %v39
  %55 = vmatmul.bf16.gmra.mxu0 %v45
  %v56 = vpop.f32.mrf.mxu0
  %v57 = vadd.f32 0.0, %v56
  %v58 = vpop.f32.mrf.mxu0
  %v59 = vadd.f32 0.0, %v58
  %60 = vdwg.mxu0
  %v61 = vadd.f32 %v24, %v57
  %v62 = vadd.f32 %v25, %v59
  %vm63 = vcmask 523264
  %64 = vst.msk [vmem:[#allocation2] sm:$0xff] %vm63, %v61
  %65 = vst.msk [vmem:[#allocation2 + $0x8] sm:$0xff] %vm63, %v62
  // Predicated region
  $region18: #{run.21} parent=0 // pred_check
    %p66 = pneg %p15
  $region19: #{run.21} parent=0 // pred_check_branch
    %68 = sbr.rel (%p66) target = $region21
  $region20: #{run.21} parent=0 // pred_region
    %v69 = vld [vmem:[#allocation2] sm:$0xff]
    %v70 = vld [vmem:[#allocation2 + $0x8] sm:$0xff]
    %v71 = vld [vmem:[%s2] sm:$0x1]
    %v73 = vperm.slane %v71, 0
    %v75 = vadd.f32 %v69, %v73
    %v76 = vadd.f32 %v70, %v73
    %v77 = vpack.c.bf16 %v75, %v75
    %v78 = vpack.c.bf16 %v76, %v76
    %vm79 = vcmask 519168
    %80 = vst.msk [vmem:[%s3] sm:$0xf] %vm79, %v77
    %81 = vst.msk [vmem:[%s3 + $0x4] sm:$0xf] %vm79, %v78
  $region21: #{run.21} parent=0 // pred_fallthru
    _
  // Predicated region
  $region22: #{run.21} parent=0 // pred_check
    _
  $region23: #{run.21} parent=0 // pred_check_branch
    %83 = sbr.rel (0) target = $region25
  $region24: #{run.21} parent=0 // pred_region
    _
  $region25: #{run.21} parent=0 // pred_fallthru
    _
  // Predicated region
  $region26: #{run.21} parent=0 // pred_check
    _
  $region27: #{run.21} parent=0 // pred_check_branch
    %85 = sbr.rel (0) target = $region29
  $region28: #{run.21} parent=0 // pred_region
    _
  $region29: #{run.21} parent=0 // pred_fallthru
    _

// kernel: run.18
$region0: #{run.18}
  #allocation0 [shape = 'u32[]', space=smem, size = 0x4, offset = 0x4, fixed_abs, tag = 'smem constant byte address 0x4 - core index']
  #allocation1 [shape = 'u32[72,128]{1,0:T(1,128)}', space=vmem, size = 0x9000, scoped, tag = 'internal scratch']
  #allocation2 [shape = 'f32[8,4]{1,0:T(8,128)}', space=vmem, size = 0x1000, scoped, tag = 'scratch operand']
  #allocation3 [shape = 'f32[8,4]{1,0:T(8,128)}', space=vmem, size = 0x1000, scoped, tag = 'scratch operand']
  #allocation4 [shape = 'f32[8,32]{1,0:T(8,128)}', space=vmem, size = 0x1000, scoped, tag = 'scratch operand']
  %s0 = inlined_call_operand.vmem [shape: bf16[2,8,3,4,8], index: 0, kind: input, shape index: {}, may-alias: {0,1,2}]
  %s1 = inlined_call_operand.vmem [shape: bf16[2,8,3,4,8], index: 1, kind: input, shape index: {}, may-alias: {0,1,2}]
  %s2 = inlined_call_operand.vmem [shape: bf16[2,8,3,4,8], index: 2, kind: input, shape index: {}, may-alias: {0,1,2}]
  %s3 = inlined_call_operand.vmem [shape: f32[2,8,8], index: 3, kind: input, shape index: {}]
  %s4 = inlined_call_operand.vmem [shape: bf16[2,8,32], index: 4, kind: output, shape index: {}]
  %s5 = sld [smem:[#allocation0]]
  $region180: #{run.18} parent=0
    _
  %s7 = ssub.s32 1, %s5
  %s8 = scalar_select 0, %s7, %s5
  $region1: #{run.18} parent=0
    #allocation5 [shape = 'u8[16384]{0}', space=vmem, size = 0x4000, scoped, tag = 'input window, operand 0']
    #allocation6 [shape = 'u8[16384]{0}', space=vmem, size = 0x4000, scoped, tag = 'input window, operand 1']
    #allocation7 [shape = 'u8[16384]{0}', space=vmem, size = 0x4000, scoped, tag = 'input window, operand 2']
    loop: start=0, step=1, limit=4
    $region2: #{run.18} parent=1 // loop_pre_header
      _
    $region3: #{run.18} parent=1 // loop_header
      %s10 = sphi 0, %s14
      %p11 = scmp.ge.s32.totalorder %s10, 4
      %s17 = sphi 0, %s36
      %s18 = sphi 0, %s32
      %s19 = sphi 0, %s28
      %s20 = sphi 0, %s17
      %s21 = sphi 0, %s18
      %s22 = sphi 0, %s19
      %s23 = sphi 0, %s20
      %s24 = sphi 0, %s21
      %s25 = sphi 0, %s22
      %s41 = sphi 0, %s43
      %s44 = sphi 0, %s41
      %s45 = sphi 0, %s44
      %s61 = sphi 0, %s45
      %s69 = sphi 0, %s71
      %s72 = sphi 0, %s69
      %s73 = sphi 0, %s72
      %s89 = sphi 0, %s73
      %s97 = sphi 0, %s99
      %s100 = sphi 0, %s97
      %s101 = sphi 0, %s100
      %s117 = sphi 0, %s101
      %s127 = sphi 0, %s129
      %s130 = sphi 0, %s127
      %s131 = sphi 0, %s130
      %s147 = sphi 0, %s131
      %s155 = sphi 0, %s157
      %s158 = sphi 0, %s155
      %s159 = sphi 0, %s158
      %s175 = sphi 0, %s159
    $region4: #{run.18} parent=1 // loop_header_branch
      %13 = sbr.rel (%p11) target = $region8
    $region5: #{run.18} parent=1 // loop_body
      %s15 = ssub.s32 %s10, 1
      %s16 = ssub.s32 %s10, 2
      %s26 = sadd.s32 1, %s19
      %p27 = scmp.ge.s32.totalorder %s26, 1
      %s28 = scalar_select %p27, 0, %s26
      %s29 = sadd.s32 1, %s18
      %s30 = scalar_select %p27, %s29, %s18
      %p31 = scmp.ge.s32.totalorder %s30, 1
      %s32 = scalar_select %p31, 0, %s30
      %s33 = sadd.s32 1, %s17
      %s34 = scalar_select %p31, %s33, %s17
      %p35 = scmp.ge.s32.totalorder %s34, 2
      %s36 = scalar_select %p35, 0, %s34
      %s37 = ssub.s32 %s17, %s36
      %s38 = ssub.s32 %s18, %s32
      %s39 = sor.u32 %s37, %s38
      %p40 = scmp.eq.s32.totalorder %s39, 0
      %s42 = sadd.s32 %s41, 1
      %s43 = scalar_select %p40, %s41, %s42
      %p46 = pneg %p40
      %p47 = scmp.eq.s32.totalorder %s10, 1
      %p48 = por %p46, %p47
      %p49 = scmp.ne.s32.totalorder %s41, %s44
      %p50 = scmp.eq.s32.totalorder %s10, 0
      %p51 = por %p49, %p50
      %p52 = scmp.ne.s32.totalorder %s41, %s44
      %p53 = scmp.eq.s32.totalorder %s15, 1
      %p54 = por %p52, %p53
      %p55 = scmp.ne.s32.totalorder %s44, %s45
      %p56 = scmp.eq.s32.totalorder %s15, 0
      %p57 = por %p55, %p56
      %p58 = scmp.ne.s32.totalorder %s44, %s45
      %p59 = scmp.eq.s32.totalorder %s16, 1
      %p60 = por %p58, %p59
      %p62 = scmp.ne.s32.totalorder %s45, %s61
      %p63 = scmp.eq.s32.totalorder %s16, 0
      %p64 = por %p62, %p63
      %s65 = ssub.s32 %s17, %s36
      %s66 = ssub.s32 %s19, %s28
      %s67 = sor.u32 %s65, %s66
      %p68 = scmp.eq.s32.totalorder %s67, 0
      %s70 = sadd.s32 %s69, 1
      %s71 = scalar_select %p68, %s69, %s70
      %p74 = pneg %p68
      %p75 = scmp.eq.s32.totalorder %s10, 1
      %p76 = por %p74, %p75
      %p77 = scmp.ne.s32.totalorder %s69, %s72
      %p78 = scmp.eq.s32.totalorder %s10, 0
      %p79 = por %p77, %p78
      %p80 = scmp.ne.s32.totalorder %s69, %s72
      %p81 = scmp.eq.s32.totalorder %s15, 1
      %p82 = por %p80, %p81
      %p83 = scmp.ne.s32.totalorder %s72, %s73
      %p84 = scmp.eq.s32.totalorder %s15, 0
      %p85 = por %p83, %p84
      %p86 = scmp.ne.s32.totalorder %s72, %s73
      %p87 = scmp.eq.s32.totalorder %s16, 1
      %p88 = por %p86, %p87
      %p90 = scmp.ne.s32.totalorder %s73, %s89
      %p91 = scmp.eq.s32.totalorder %s16, 0
      %p92 = por %p90, %p91
      %s93 = ssub.s32 %s17, %s36
      %s94 = ssub.s32 %s19, %s28
      %s95 = sor.u32 %s93, %s94
      %p96 = scmp.eq.s32.totalorder %s95, 0
      %s98 = sadd.s32 %s97, 1
      %s99 = scalar_select %p96, %s97, %s98
      %p102 = pneg %p96
      %p103 = scmp.eq.s32.totalorder %s10, 1
      %p104 = por %p102, %p103
      %p105 = scmp.ne.s32.totalorder %s97, %s100
      %p106 = scmp.eq.s32.totalorder %s10, 0
      %p107 = por %p105, %p106
      %p108 = scmp.ne.s32.totalorder %s97, %s100
      %p109 = scmp.eq.s32.totalorder %s15, 1
      %p110 = por %p108, %p109
      %p111 = scmp.ne.s32.totalorder %s100, %s101
      %p112 = scmp.eq.s32.totalorder %s15, 0
      %p113 = por %p111, %p112
      %p114 = scmp.ne.s32.totalorder %s100, %s101
      %p115 = scmp.eq.s32.totalorder %s16, 1
      %p116 = por %p114, %p115
      %p118 = scmp.ne.s32.totalorder %s101, %s117
      %p119 = scmp.eq.s32.totalorder %s16, 0
      %p120 = por %p118, %p119
      %s121 = ssub.s32 %s17, %s36
      %s122 = ssub.s32 %s18, %s32
      %s123 = sor.u32 %s121, %s122
      %s124 = ssub.s32 %s19, %s28
      %s125 = sor.u32 %s123, %s124
      %p126 = scmp.eq.s32.totalorder %s125, 0
      %s128 = sadd.s32 %s127, 1
      %s129 = scalar_select %p126, %s127, %s128
      %p132 = pneg %p126
      %p133 = scmp.eq.s32.totalorder %s10, 1
      %p134 = por %p132, %p133
      %p135 = scmp.ne.s32.totalorder %s127, %s130
      %p136 = scmp.eq.s32.totalorder %s10, 0
      %p137 = por %p135, %p136
      %p138 = scmp.ne.s32.totalorder %s127, %s130
      %p139 = scmp.eq.s32.totalorder %s15, 1
      %p140 = por %p138, %p139
      %p141 = scmp.ne.s32.totalorder %s130, %s131
      %p142 = scmp.eq.s32.totalorder %s15, 0
      %p143 = por %p141, %p142
      %p144 = scmp.ne.s32.totalorder %s130, %s131
      %p145 = scmp.eq.s32.totalorder %s16, 1
      %p146 = por %p144, %p145
      %p148 = scmp.ne.s32.totalorder %s131, %s147
      %p149 = scmp.eq.s32.totalorder %s16, 0
      %p150 = por %p148, %p149
      %s151 = ssub.s32 %s17, %s36
      %s152 = ssub.s32 %s18, %s32
      %s153 = sor.u32 %s151, %s152
      %p154 = scmp.eq.s32.totalorder %s153, 0
      %s156 = sadd.s32 %s155, 1
      %s157 = scalar_select %p154, %s155, %s156
      %p160 = pneg %p154
      %p161 = scmp.eq.s32.totalorder %s10, 1
      %p162 = por %p160, %p161
      %p163 = scmp.ne.s32.totalorder %s155, %s158
      %p164 = scmp.eq.s32.totalorder %s10, 0
      %p165 = por %p163, %p164
      %p166 = scmp.ne.s32.totalorder %s155, %s158
      %p167 = scmp.eq.s32.totalorder %s15, 1
      %p168 = por %p166, %p167
      %p169 = scmp.ne.s32.totalorder %s158, %s159
      %p170 = scmp.eq.s32.totalorder %s15, 0
      %p171 = por %p169, %p170
      %p172 = scmp.ne.s32.totalorder %s158, %s159
      %p173 = scmp.eq.s32.totalorder %s16, 1
      %p174 = por %p172, %p173
      %p176 = scmp.ne.s32.totalorder %s159, %s175
      %p177 = scmp.eq.s32.totalorder %s16, 0
      %p178 = por %p176, %p177
      %p179 = scmp.le.s32.totalorder 1, %s10
      %p180 = scmp.lt.s32.totalorder %s10, 3
      %p181 = pnand %p179, %p180
      %p182 = pneg %p181
      // Predicated region
      $region9: #{run.18} parent=5 // pred_check
        _
      $region10: #{run.18} parent=5 // pred_check_branch
        %184 = sbr.rel (%p181) target = $region12
      $region11: #{run.18} parent=5 // pred_region
        %s185 = ssub.s32 %s10, 1
      $region12: #{run.18} parent=5 // pred_fallthru
        _
      %p186 = scmp.lt.s32.totalorder %s10, 2
      // Predicated region
      $region13: #{run.18} parent=5 // pred_check
        %p187 = pneg %p186
      $region14: #{run.18} parent=5 // pred_check_branch
        %189 = sbr.rel (%p187) target = $region16
      $region15: #{run.18} parent=5 // pred_region
        // Predicated region
        $region17: #{run.18} parent=15 // pred_check
          %p190 = pneg %p51
        $region18: #{run.18} parent=15 // pred_check_branch
          %192 = sbr.rel (%p190) target = $region20
        $region19: #{run.18} parent=15 // pred_region
          %s193 = sand.u32 %s41, 1
          %s194 = sand.u32 %s41, 1
          %s195 = smul.addr %s194, 16
          %s196 = scalar_lea.vmem [#allocation5], %s195
          %s197 = smul.u32 8, %s18
          %s198 = smul.addr %s197, 3
          %s199 = smul.addr %s17, 24
          %s200 = sadd.s32 %s198, %s199
          %s201 = smul.addr %s200, 2
          %s202 = scalar_lea.vmem %s0, %s201
          // Predicated region
          $region21: #{run.18} parent=19 // pred_check
            _
          $region22: #{run.18} parent=19 // pred_check_branch
            %204 = sbr.rel (0) target = $region24
          $region23: #{run.18} parent=19 // pred_region
            // Predicated region
            $region25: #{run.18} parent=23 // pred_check
              _
            $region26: #{run.18} parent=23 // pred_check_branch
              %206 = sbr.rel target = $region28
            $region27: #{run.18} parent=23 // pred_region
              // Predicated region
              $region40: #{run.18} parent=27 // pred_check
                _
              $region41: #{run.18} parent=27 // pred_check_branch
                %236 = sbr.rel (0) target = $region43
              $region42: #{run.18} parent=27 // pred_region
                loop: start=0, step=1, limit=1
                $region44: #{run.18} parent=42 // loop_pre_header
                  _
                $region45: #{run.18} parent=42 // loop_header
                  %s238 = sphi 0, %s242
                  %p239 = scmp.ge.s32.totalorder %s238, 1
                  %s243 = sphi %s202, %s202
                  %s244 = sphi %s196, %s196
                $region46: #{run.18} parent=42 // loop_header_branch
                  %241 = sbr.rel (%p239) target = $region50
                $region47: #{run.18} parent=42 // loop_body
                  _
                $region48: #{run.18} parent=42 // loop_footer
                  %s242 = sadd.s32 1, %s238
                $region49: #{run.18} parent=42 // loop_footer_branch
                  %237 = sbr.rel target = $region45
                $region50: #{run.18} parent=42 // loop_exit
                  _
                %s246 = ssub.s32 4, 1
                loop: start=0, step=1, limit=1
                $region51: #{run.18} parent=42 // loop_pre_header
                  _
                $region52: #{run.18} parent=42 // loop_header
                  %s248 = sphi 0, %s252
                  %p249 = scmp.ge.s32.totalorder %s248, 1
                  %s253 = sphi %s202, %s202
                  %s254 = sphi %s196, %s196
                $region53: #{run.18} parent=42 // loop_header_branch
                  %251 = sbr.rel (%p249) target = $region57
                $region54: #{run.18} parent=42 // loop_body
                  %v255 = vld [vmem:[%s253] sm:%s246]
                  %256 = vst [vmem:[%s254] sm:%s246] %v255
                  %v257 = vld [vmem:[%s253 + $0x6] sm:%s246]
                  %258 = vst [vmem:[%s254 + $0x2] sm:%s246] %v257
                  %v259 = vld [vmem:[%s253 + $0xc] sm:%s246]
                  %260 = vst [vmem:[%s254 + $0x4] sm:%s246] %v259
                  %v261 = vld [vmem:[%s253 + $0x12] sm:%s246]
                  %262 = vst [vmem:[%s254 + $0x6] sm:%s246] %v261
                  %v263 = vld [vmem:[%s253 + $0x18] sm:%s246]
                  %264 = vst [vmem:[%s254 + $0x8] sm:%s246] %v263
                  %v265 = vld [vmem:[%s253 + $0x1e] sm:%s246]
                  %266 = vst [vmem:[%s254 + $0xa] sm:%s246] %v265
                  %v267 = vld [vmem:[%s253 + $0x24] sm:%s246]
                  %268 = vst [vmem:[%s254 + $0xc] sm:%s246] %v267
                  %v269 = vld [vmem:[%s253 + $0x2a] sm:%s246]
                  %270 = vst [vmem:[%s254 + $0xe] sm:%s246] %v269
                $region55: #{run.18} parent=42 // loop_footer
                  %s252 = sadd.s32 1, %s248
                $region56: #{run.18} parent=42 // loop_footer_branch
                  %247 = sbr.rel target = $region52
                $region57: #{run.18} parent=42 // loop_exit
                  _
              $region43: #{run.18} parent=27 // pred_fallthru
                _
            $region28: #{run.18} parent=23 // pred_fallthru
              _
            // Predicated region
            $region29: #{run.18} parent=23 // pred_check
              _
            $region30: #{run.18} parent=23 // pred_check_branch
              %208 = sbr.rel (0) target = $region32
            $region31: #{run.18} parent=23 // pred_region
              %s210 = ssub.s32 4, 1
              loop: start=0, step=1, limit=1
              $region33: #{run.18} parent=31 // loop_pre_header
                _
              $region34: #{run.18} parent=31 // loop_header
                %s212 = sphi 0, %s216
                %p213 = scmp.ge.s32.totalorder %s212, 1
                %s217 = sphi %s202, %s202
                %s218 = sphi %s196, %s196
              $region35: #{run.18} parent=31 // loop_header_branch
                %215 = sbr.rel (%p213) target = $region39
              $region36: #{run.18} parent=31 // loop_body
                %v219 = vld [vmem:[%s217] sm:%s210]
                %220 = vst [vmem:[%s218] sm:%s210] %v219
                %v221 = vld [vmem:[%s217 + $0x6] sm:%s210]
                %222 = vst [vmem:[%s218 + $0x2] sm:%s210] %v221
                %v223 = vld [vmem:[%s217 + $0xc] sm:%s210]
                %224 = vst [vmem:[%s218 + $0x4] sm:%s210] %v223
                %v225 = vld [vmem:[%s217 + $0x12] sm:%s210]
                %226 = vst [vmem:[%s218 + $0x6] sm:%s210] %v225
                %v227 = vld [vmem:[%s217 + $0x18] sm:%s210]
                %228 = vst [vmem:[%s218 + $0x8] sm:%s210] %v227
                %v229 = vld [vmem:[%s217 + $0x1e] sm:%s210]
                %230 = vst [vmem:[%s218 + $0xa] sm:%s210] %v229
                %v231 = vld [vmem:[%s217 + $0x24] sm:%s210]
                %232 = vst [vmem:[%s218 + $0xc] sm:%s210] %v231
                %v233 = vld [vmem:[%s217 + $0x2a] sm:%s210]
                %234 = vst [vmem:[%s218 + $0xe] sm:%s210] %v233
              $region37: #{run.18} parent=31 // loop_footer
                %s216 = sadd.s32 1, %s212
              $region38: #{run.18} parent=31 // loop_footer_branch
                %211 = sbr.rel target = $region34
              $region39: #{run.18} parent=31 // loop_exit
                _
            $region32: #{run.18} parent=23 // pred_fallthru
              _
          $region24: #{run.18} parent=19 // pred_fallthru
            _
          %271 = vnop
        $region20: #{run.18} parent=15 // pred_fallthru
          _
        // Predicated region
        $region58: #{run.18} parent=15 // pred_check
          %p272 = pneg %p79
        $region59: #{run.18} parent=15 // pred_check_branch
          %274 = sbr.rel (%p272) target = $region61
        $region60: #{run.18} parent=15 // pred_region
          %s275 = sand.u32 %s69, 1
          %s276 = sand.u32 %s69, 1
          %s277 = smul.addr %s276, 16
          %s278 = scalar_lea.vmem [#allocation6], %s277
          %s279 = smul.u32 8, %s19
          %s280 = smul.addr %s279, 3
          %s281 = sadd.s32 1, %s280
          %s282 = smul.addr %s17, 24
          %s283 = sadd.s32 %s281, %s282
          %s284 = smul.addr %s283, 2
          %s285 = scalar_lea.vmem %s1, %s284
          // Predicated region
          $region62: #{run.18} parent=60 // pred_check
            _
          $region63: #{run.18} parent=60 // pred_check_branch
            %287 = sbr.rel (0) target = $region65
          $region64: #{run.18} parent=60 // pred_region
            // Predicated region
            $region66: #{run.18} parent=64 // pred_check
              _
            $region67: #{run.18} parent=64 // pred_check_branch
              %289 = sbr.rel target = $region69
            $region68: #{run.18} parent=64 // pred_region
              // Predicated region
              $region81: #{run.18} parent=68 // pred_check
                _
              $region82: #{run.18} parent=68 // pred_check_branch
                %319 = sbr.rel (0) target = $region84
              $region83: #{run.18} parent=68 // pred_region
                loop: start=0, step=1, limit=1
                $region85: #{run.18} parent=83 // loop_pre_header
                  _
                $region86: #{run.18} parent=83 // loop_header
                  %s321 = sphi 0, %s325
                  %p322 = scmp.ge.s32.totalorder %s321, 1
                  %s326 = sphi %s285, %s285
                  %s327 = sphi %s278, %s278
                $region87: #{run.18} parent=83 // loop_header_branch
                  %324 = sbr.rel (%p322) target = $region91
                $region88: #{run.18} parent=83 // loop_body
                  _
                $region89: #{run.18} parent=83 // loop_footer
                  %s325 = sadd.s32 1, %s321
                $region90: #{run.18} parent=83 // loop_footer_branch
                  %320 = sbr.rel target = $region86
                $region91: #{run.18} parent=83 // loop_exit
                  _
                %s329 = ssub.s32 4, 1
                loop: start=0, step=1, limit=1
                $region92: #{run.18} parent=83 // loop_pre_header
                  _
                $region93: #{run.18} parent=83 // loop_header
                  %s331 = sphi 0, %s335
                  %p332 = scmp.ge.s32.totalorder %s331, 1
                  %s336 = sphi %s285, %s285
                  %s337 = sphi %s278, %s278
                $region94: #{run.18} parent=83 // loop_header_branch
                  %334 = sbr.rel (%p332) target = $region98
                $region95: #{run.18} parent=83 // loop_body
                  %v338 = vld [vmem:[%s336] sm:%s329]
                  %339 = vst [vmem:[%s337] sm:%s329] %v338
                  %v340 = vld [vmem:[%s336 + $0x6] sm:%s329]
                  %341 = vst [vmem:[%s337 + $0x2] sm:%s329] %v340
                  %v342 = vld [vmem:[%s336 + $0xc] sm:%s329]
                  %343 = vst [vmem:[%s337 + $0x4] sm:%s329] %v342
                  %v344 = vld [vmem:[%s336 + $0x12] sm:%s329]
                  %345 = vst [vmem:[%s337 + $0x6] sm:%s329] %v344
                  %v346 = vld [vmem:[%s336 + $0x18] sm:%s329]
                  %347 = vst [vmem:[%s337 + $0x8] sm:%s329] %v346
                  %v348 = vld [vmem:[%s336 + $0x1e] sm:%s329]
                  %349 = vst [vmem:[%s337 + $0xa] sm:%s329] %v348
                  %v350 = vld [vmem:[%s336 + $0x24] sm:%s329]
                  %351 = vst [vmem:[%s337 + $0xc] sm:%s329] %v350
                  %v352 = vld [vmem:[%s336 + $0x2a] sm:%s329]
                  %353 = vst [vmem:[%s337 + $0xe] sm:%s329] %v352
                $region96: #{run.18} parent=83 // loop_footer
                  %s335 = sadd.s32 1, %s331
                $region97: #{run.18} parent=83 // loop_footer_branch
                  %330 = sbr.rel target = $region93
                $region98: #{run.18} parent=83 // loop_exit
                  _
              $region84: #{run.18} parent=68 // pred_fallthru
                _
            $region69: #{run.18} parent=64 // pred_fallthru
              _
            // Predicated region
            $region70: #{run.18} parent=64 // pred_check
              _
            $region71: #{run.18} parent=64 // pred_check_branch
              %291 = sbr.rel (0) target = $region73
            $region72: #{run.18} parent=64 // pred_region
              %s293 = ssub.s32 4, 1
              loop: start=0, step=1, limit=1
              $region74: #{run.18} parent=72 // loop_pre_header
                _
              $region75: #{run.18} parent=72 // loop_header
                %s295 = sphi 0, %s299
                %p296 = scmp.ge.s32.totalorder %s295, 1
                %s300 = sphi %s285, %s285
                %s301 = sphi %s278, %s278
              $region76: #{run.18} parent=72 // loop_header_branch
                %298 = sbr.rel (%p296) target = $region80
              $region77: #{run.18} parent=72 // loop_body
                %v302 = vld [vmem:[%s300] sm:%s293]
                %303 = vst [vmem:[%s301] sm:%s293] %v302
                %v304 = vld [vmem:[%s300 + $0x6] sm:%s293]
                %305 = vst [vmem:[%s301 + $0x2] sm:%s293] %v304
                %v306 = vld [vmem:[%s300 + $0xc] sm:%s293]
                %307 = vst [vmem:[%s301 + $0x4] sm:%s293] %v306
                %v308 = vld [vmem:[%s300 + $0x12] sm:%s293]
                %309 = vst [vmem:[%s301 + $0x6] sm:%s293] %v308
                %v310 = vld [vmem:[%s300 + $0x18] sm:%s293]
                %311 = vst [vmem:[%s301 + $0x8] sm:%s293] %v310
                %v312 = vld [vmem:[%s300 + $0x1e] sm:%s293]
                %313 = vst [vmem:[%s301 + $0xa] sm:%s293] %v312
                %v314 = vld [vmem:[%s300 + $0x24] sm:%s293]
                %315 = vst [vmem:[%s301 + $0xc] sm:%s293] %v314
                %v316 = vld [vmem:[%s300 + $0x2a] sm:%s293]
                %317 = vst [vmem:[%s301 + $0xe] sm:%s293] %v316
              $region78: #{run.18} parent=72 // loop_footer
                %s299 = sadd.s32 1, %s295
              $region79: #{run.18} parent=72 // loop_footer_branch
                %294 = sbr.rel target = $region75
              $region80: #{run.18} parent=72 // loop_exit
                _
            $region73: #{run.18} parent=64 // pred_fallthru
              _
          $region65: #{run.18} parent=60 // pred_fallthru
            _
          %354 = vnop
        $region61: #{run.18} parent=15 // pred_fallthru
          _
        // Predicated region
        $region99: #{run.18} parent=15 // pred_check
          %p355 = pneg %p107
        $region100: #{run.18} parent=15 // pred_check_branch
          %357 = sbr.rel (%p355) target = $region102
        $region101: #{run.18} parent=15 // pred_region
          %s358 = sand.u32 %s97, 1
          %s359 = sand.u32 %s97, 1
          %s360 = smul.addr %s359, 16
          %s361 = scalar_lea.vmem [#allocation7], %s360
          %s362 = smul.u32 8, %s19
          %s363 = smul.addr %s362, 3
          %s364 = sadd.s32 2, %s363
          %s365 = smul.addr %s17, 24
          %s366 = sadd.s32 %s364, %s365
          %s367 = smul.addr %s366, 2
          %s368 = scalar_lea.vmem %s2, %s367
          // Predicated region
          $region103: #{run.18} parent=101 // pred_check
            _
          $region104: #{run.18} parent=101 // pred_check_branch
            %370 = sbr.rel (0) target = $region106
          $region105: #{run.18} parent=101 // pred_region
            // Predicated region
            $region107: #{run.18} parent=105 // pred_check
              _
            $region108: #{run.18} parent=105 // pred_check_branch
              %372 = sbr.rel target = $region110
            $region109: #{run.18} parent=105 // pred_region
              // Predicated region
              $region122: #{run.18} parent=109 // pred_check
                _
              $region123: #{run.18} parent=109 // pred_check_branch
                %402 = sbr.rel (0) target = $region125
              $region124: #{run.18} parent=109 // pred_region
                loop: start=0, step=1, limit=1
                $region126: #{run.18} parent=124 // loop_pre_header
                  _
                $region127: #{run.18} parent=124 // loop_header
                  %s404 = sphi 0, %s408
                  %p405 = scmp.ge.s32.totalorder %s404, 1
                  %s409 = sphi %s368, %s368
                  %s410 = sphi %s361, %s361
                $region128: #{run.18} parent=124 // loop_header_branch
                  %407 = sbr.rel (%p405) target = $region132
                $region129: #{run.18} parent=124 // loop_body
                  _
                $region130: #{run.18} parent=124 // loop_footer
                  %s408 = sadd.s32 1, %s404
                $region131: #{run.18} parent=124 // loop_footer_branch
                  %403 = sbr.rel target = $region127
                $region132: #{run.18} parent=124 // loop_exit
                  _
                %s412 = ssub.s32 4, 1
                loop: start=0, step=1, limit=1
                $region133: #{run.18} parent=124 // loop_pre_header
                  _
                $region134: #{run.18} parent=124 // loop_header
                  %s414 = sphi 0, %s418
                  %p415 = scmp.ge.s32.totalorder %s414, 1
                  %s419 = sphi %s368, %s368
                  %s420 = sphi %s361, %s361
                $region135: #{run.18} parent=124 // loop_header_branch
                  %417 = sbr.rel (%p415) target = $region139
                $region136: #{run.18} parent=124 // loop_body
                  %v421 = vld [vmem:[%s419] sm:%s412]
                  %422 = vst [vmem:[%s420] sm:%s412] %v421
                  %v423 = vld [vmem:[%s419 + $0x6] sm:%s412]
                  %424 = vst [vmem:[%s420 + $0x2] sm:%s412] %v423
                  %v425 = vld [vmem:[%s419 + $0xc] sm:%s412]
                  %426 = vst [vmem:[%s420 + $0x4] sm:%s412] %v425
                  %v427 = vld [vmem:[%s419 + $0x12] sm:%s412]
                  %428 = vst [vmem:[%s420 + $0x6] sm:%s412] %v427
                  %v429 = vld [vmem:[%s419 + $0x18] sm:%s412]
                  %430 = vst [vmem:[%s420 + $0x8] sm:%s412] %v429
                  %v431 = vld [vmem:[%s419 + $0x1e] sm:%s412]
                  %432 = vst [vmem:[%s420 + $0xa] sm:%s412] %v431
                  %v433 = vld [vmem:[%s419 + $0x24] sm:%s412]
                  %434 = vst [vmem:[%s420 + $0xc] sm:%s412] %v433
                  %v435 = vld [vmem:[%s419 + $0x2a] sm:%s412]
                  %436 = vst [vmem:[%s420 + $0xe] sm:%s412] %v435
                $region137: #{run.18} parent=124 // loop_footer
                  %s418 = sadd.s32 1, %s414
                $region138: #{run.18} parent=124 // loop_footer_branch
                  %413 = sbr.rel target = $region134
                $region139: #{run.18} parent=124 // loop_exit
                  _
              $region125: #{run.18} parent=109 // pred_fallthru
                _
            $region110: #{run.18} parent=105 // pred_fallthru
              _
            // Predicated region
            $region111: #{run.18} parent=105 // pred_check
              _
            $region112: #{run.18} parent=105 // pred_check_branch
              %374 = sbr.rel (0) target = $region114
            $region113: #{run.18} parent=105 // pred_region
              %s376 = ssub.s32 4, 1
              loop: start=0, step=1, limit=1
              $region115: #{run.18} parent=113 // loop_pre_header
                _
              $region116: #{run.18} parent=113 // loop_header
                %s378 = sphi 0, %s382
                %p379 = scmp.ge.s32.totalorder %s378, 1
                %s383 = sphi %s368, %s368
                %s384 = sphi %s361, %s361
              $region117: #{run.18} parent=113 // loop_header_branch
                %381 = sbr.rel (%p379) target = $region121
              $region118: #{run.18} parent=113 // loop_body
                %v385 = vld [vmem:[%s383] sm:%s376]
                %386 = vst [vmem:[%s384] sm:%s376] %v385
                %v387 = vld [vmem:[%s383 + $0x6] sm:%s376]
                %388 = vst [vmem:[%s384 + $0x2] sm:%s376] %v387
                %v389 = vld [vmem:[%s383 + $0xc] sm:%s376]
                %390 = vst [vmem:[%s384 + $0x4] sm:%s376] %v389
                %v391 = vld [vmem:[%s383 + $0x12] sm:%s376]
                %392 = vst [vmem:[%s384 + $0x6] sm:%s376] %v391
                %v393 = vld [vmem:[%s383 + $0x18] sm:%s376]
                %394 = vst [vmem:[%s384 + $0x8] sm:%s376] %v393
                %v395 = vld [vmem:[%s383 + $0x1e] sm:%s376]
                %396 = vst [vmem:[%s384 + $0xa] sm:%s376] %v395
                %v397 = vld [vmem:[%s383 + $0x24] sm:%s376]
                %398 = vst [vmem:[%s384 + $0xc] sm:%s376] %v397
                %v399 = vld [vmem:[%s383 + $0x2a] sm:%s376]
                %400 = vst [vmem:[%s384 + $0xe] sm:%s376] %v399
              $region119: #{run.18} parent=113 // loop_footer
                %s382 = sadd.s32 1, %s378
              $region120: #{run.18} parent=113 // loop_footer_branch
                %377 = sbr.rel target = $region116
              $region121: #{run.18} parent=113 // loop_exit
                _
            $region114: #{run.18} parent=105 // pred_fallthru
              _
          $region106: #{run.18} parent=101 // pred_fallthru
            _
          %437 = vnop
        $region102: #{run.18} parent=15 // pred_fallthru
          _
        // Predicated region
        $region140: #{run.18} parent=15 // pred_check
          %p438 = pneg %p137
        $region141: #{run.18} parent=15 // pred_check_branch
          %440 = sbr.rel (%p438) target = $region143
        $region142: #{run.18} parent=15 // pred_region
          %p441 = scmp.lt.s32.totalorder %s17, 1
          %s442 = scalar_select %p441, %s17, 1
          %p443 = scmp.lt.s32.totalorder %s18, 0
          %s444 = scalar_select %p443, %s18, 0
          %p445 = scmp.lt.s32.totalorder %s19, 0
          %s446 = scalar_select %p445, %s19, 0
          %s447 = sadd.s32 %s446, %s444
          %s448 = sadd.s32 %s447, %s442
          %s449 = smul.addr %s448, 8
          %s450 = scalar_lea.vmem %s3, %s449
        $region143: #{run.18} parent=15 // pred_fallthru
          _
      $region16: #{run.18} parent=5 // pred_fallthru
        _
      %p451 = scmp.le.s32.totalorder 1, %s10
      %p452 = scmp.lt.s32.totalorder %s10, 3
      %p453 = pnand %p451, %p452
      %p454 = pneg %p453
      // Predicated region
      $region144: #{run.18} parent=5 // pred_check
        _
      $region145: #{run.18} parent=5 // pred_check_branch
        %456 = sbr.rel (%p453) target = $region147
      $region146: #{run.18} parent=5 // pred_region
        %s457 = ssub.s32 %s10, 1
        %s458 = sand.u32 %s44, 1
        %s459 = sand.u32 %s44, 1
        %s460 = smul.addr %s459, 16
        %s461 = scalar_lea.vmem [#allocation5], %s460
        // Predicated region
        $region148: #{run.18} parent=146 // pred_check
          %p462 = pneg %p57
        $region149: #{run.18} parent=146 // pred_check_branch
          %464 = sbr.rel (%p462) target = $region151
        $region150: #{run.18} parent=146 // pred_region
          _
        $region151: #{run.18} parent=146 // pred_fallthru
          _
        %s465 = sand.u32 %s72, 1
        %s466 = sand.u32 %s72, 1
        %s467 = smul.addr %s466, 16
        %s468 = scalar_lea.vmem [#allocation6], %s467
        // Predicated region
        $region152: #{run.18} parent=146 // pred_check
          %p469 = pneg %p85
        $region153: #{run.18} parent=146 // pred_check_branch
          %471 = sbr.rel (%p469) target = $region155
        $region154: #{run.18} parent=146 // pred_region
          _
        $region155: #{run.18} parent=146 // pred_fallthru
          _
        %s472 = sand.u32 %s100, 1
        %s473 = sand.u32 %s100, 1
        %s474 = smul.addr %s473, 16
        %s475 = scalar_lea.vmem [#allocation7], %s474
        // Predicated region
        $region156: #{run.18} parent=146 // pred_check
          %p476 = pneg %p113
        $region157: #{run.18} parent=146 // pred_check_branch
          %478 = sbr.rel (%p476) target = $region159
        $region158: #{run.18} parent=146 // pred_region
          _
        $region159: #{run.18} parent=146 // pred_fallthru
          _
        %s479 = sand.u32 %s44, 1
        %s480 = sand.u32 %s44, 1
        %s481 = smul.addr %s480, 16
        %s482 = scalar_lea.vmem [#allocation5], %s481
        %p483 = pneg %p57
        %p484 = pneg %p54
        %s485 = sand.u32 %s72, 1
        %s486 = sand.u32 %s72, 1
        %s487 = smul.addr %s486, 16
        %s488 = scalar_lea.vmem [#allocation6], %s487
        %p489 = pneg %p85
        %p490 = pneg %p82
        %s491 = sand.u32 %s100, 1
        %s492 = sand.u32 %s100, 1
        %s493 = smul.addr %s492, 16
        %s494 = scalar_lea.vmem [#allocation7], %s493
        %p495 = pneg %p113
        %p496 = pneg %p110
        %p497 = scmp.lt.s32.totalorder %s20, 1
        %s498 = scalar_select %p497, %s20, 1
        %p499 = scmp.lt.s32.totalorder %s21, 0
        %s500 = scalar_select %p499, %s21, 0
        %p501 = scmp.lt.s32.totalorder %s22, 0
        %s502 = scalar_select %p501, %s22, 0
        %s503 = sadd.s32 %s502, %s500
        %s504 = sadd.s32 %s503, %s498
        %s505 = smul.addr %s504, 8
        %s506 = scalar_lea.vmem %s3, %s505
        %p507 = pneg %p143
        %p508 = pneg %p140
        %p509 = pneg %p171
        %p510 = pneg %p168
        %p511 = scmp.lt.s32.totalorder %s20, 1
        %s512 = scalar_select %p511, %s20, 1
        %p513 = scmp.lt.s32.totalorder %s21, 0
        %s514 = scalar_select %p513, %s21, 0
        %s515 = sadd.s32 %s514, %s512
        %s516 = smul.addr %s515, 4
        %s517 = scalar_lea.vmem %s4, %s516
        %s518 = smul.u32 8, %s21
        %s519 = smul.u32 8, %s22
        %s520 = smul.u32 8, %s22
        %p521 = scmp.lt.s32.totalorder %s20, 1
        %s522 = scalar_select %p521, %s20, 1
        %p523 = scmp.lt.s32.totalorder %s21, 0
        %s524 = scalar_select %p523, %s21, 0
        %p525 = scmp.lt.s32.totalorder %s22, 0
        %s526 = scalar_select %p525, %s22, 0
        %s527 = sadd.s32 %s526, %s524
        %s528 = sadd.s32 %s527, %s522
        %s529 = smul.addr %s528, 8
        %s530 = scalar_lea.vmem %s3, %s529
        %p531 = scmp.lt.s32.totalorder %s20, 1
        %s532 = scalar_select %p531, %s20, 1
        %p533 = scmp.lt.s32.totalorder %s21, 0
        %s534 = scalar_select %p533, %s21, 0
        %s535 = sadd.s32 %s534, %s532
        %s536 = smul.addr %s535, 4
        %s537 = scalar_lea.vmem %s4, %s536
        %p539 = scmp.eq.s32.totalorder %s22, 0
        // Predicated region
        $region160: #{run.18} parent=146 // pred_check
          %p540 = pneg %p539
        $region161: #{run.18} parent=146 // pred_check_branch
          %542 = sbr.rel (%p540) target = $region163
        $region162: #{run.18} parent=146 // pred_region
          %vm543 = vcmask 31744
          %544 = vst.msk [vmem:[#allocation2] sm:$0xff] %vm543, -inf
          %545 = vst.msk [vmem:[#allocation3] sm:$0xff] %vm543, 0.0
          %vm546 = vcmask 261120
          %547 = vst.msk [vmem:[#allocation4] sm:$0xff] %vm546, 0.0
        $region163: #{run.18} parent=146 // pred_fallthru
          _
        %v548 = vld [vmem:[%s461] sm:$0x3]
        %v549 = vld [vmem:[%s461 + $0x2] sm:$0x3]
        %v550 = vld [vmem:[%s461 + $0x4] sm:$0x3]
        %v551 = vld [vmem:[%s461 + $0x6] sm:$0x3]
        %v552 = vld [vmem:[%s461 + $0x8] sm:$0x3]
        %v553 = vld [vmem:[%s461 + $0xa] sm:$0x3]
        %v554 = vld [vmem:[%s461 + $0xc] sm:$0x3]
        %v555 = vld [vmem:[%s461 + $0xe] sm:$0x3]
        %v556 = vld [vmem:[%s468] sm:$0x3]
        %v557 = vld [vmem:[%s468 + $0x2] sm:$0x3]
        %v558 = vld [vmem:[%s468 + $0x4] sm:$0x3]
        %v559 = vld [vmem:[%s468 + $0x6] sm:$0x3]
        %v560 = vld [vmem:[%s468 + $0x8] sm:$0x3]
        %v561 = vld [vmem:[%s468 + $0xa] sm:$0x3]
        %v562 = vld [vmem:[%s468 + $0xc] sm:$0x3]
        %v563 = vld [vmem:[%s468 + $0xe] sm:$0x3]
        %v564 = vld [vmem:[%s475] sm:$0x3]
        %v565 = vld [vmem:[%s475 + $0x2] sm:$0x3]
        %v566 = vld [vmem:[%s475 + $0x4] sm:$0x3]
        %v567 = vld [vmem:[%s475 + $0x6] sm:$0x3]
        %v568 = vld [vmem:[%s475 + $0x8] sm:$0x3]
        %v569 = vld [vmem:[%s475 + $0xa] sm:$0x3]
        %v570 = vld [vmem:[%s475 + $0xc] sm:$0x3]
        %v571 = vld [vmem:[%s475 + $0xe] sm:$0x3]
        %v572 = vld [vmem:[%s530] sm:$0xff]
        %574 = vst [vmem:[#allocation1] ss:$4 sm:$0xff] %v548
        %v575 = vld.sshfl [vmem:[#allocation1] sm:$0xff pattern:$0x73625140]
        %s578 = scalar_lea.vmem [#allocation1], 32
        %579 = vst [vmem:[%s578] ss:$4 sm:$0xff] %v549
        %v580 = vld.sshfl [vmem:[#allocation1 + $0x20] sm:$0xff pattern:$0x73625140]
        %583 = vst [vmem:[#allocation1] ss:$4 sm:$0xff] %v550
        %v584 = vld.sshfl [vmem:[#allocation1] sm:$0xff pattern:$0x73625140]
        %587 = vst [vmem:[%s578] ss:$4 sm:$0xff] %v551
        %v588 = vld.sshfl [vmem:[#allocation1 + $0x20] sm:$0xff pattern:$0x73625140]
        %591 = vst [vmem:[#allocation1] ss:$4 sm:$0xff] %v552
        %v592 = vld.sshfl [vmem:[#allocation1] sm:$0xff pattern:$0x73625140]
        %595 = vst [vmem:[%s578] ss:$4 sm:$0xff] %v553
        %v596 = vld.sshfl [vmem:[#allocation1 + $0x20] sm:$0xff pattern:$0x73625140]
        %599 = vst [vmem:[#allocation1] ss:$4 sm:$0xff] %v554
        %v600 = vld.sshfl [vmem:[#allocation1] sm:$0xff pattern:$0x73625140]
        %603 = vst [vmem:[%s578] ss:$4 sm:$0xff] %v555
        %v604 = vld.sshfl [vmem:[#allocation1 + $0x20] sm:$0xff pattern:$0x73625140]
        %v606 = vunpack.c.l.b16 %v575
        %v607 = vunpack.c.l.b16 %v580
        %v608 = vunpack.c.l.b16 %v584
        %v609 = vunpack.c.l.b16 %v588
        %v610 = vunpack.c.l.b16 %v592
        %v611 = vunpack.c.l.b16 %v596
        %v612 = vunpack.c.l.b16 %v600
        %v613 = vunpack.c.l.b16 %v604
        %v614 = vrot.slane %v607, 7
        %vm615 = vcmask 1041409
        %v616 = vsel %vm615, %v614, %v606
        %v617 = vrot.slane %v608, 6
        %vm618 = vcmask 1042434
        %v619 = vsel %vm618, %v617, %v616
        %v620 = vrot.slane %v609, 5
        %vm621 = vcmask 1043459
        %v622 = vsel %vm621, %v620, %v619
        %v623 = vrot.slane %v610, 4
        %vm624 = vcmask 1044484
        %v625 = vsel %vm624, %v623, %v622
        %v626 = vrot.slane %v611, 3
        %vm627 = vcmask 1045509
        %v628 = vsel %vm627, %v626, %v625
        %v629 = vrot.slane %v612, 2
        %vm630 = vcmask 1046534
        %v631 = vsel %vm630, %v629, %v628
        %v632 = vrot.slane %v613, 1
        %vm633 = vcmask 1047559
        %v634 = vsel %vm633, %v632, %v631
        %v635 = vpack.c.b16 %v634, %v634
        %637 = vst [vmem:[#allocation1] ss:$4 sm:$0xff] %v556
        %v638 = vld.sshfl [vmem:[#allocation1] sm:$0xff pattern:$0x73625140]
        %s641 = scalar_lea.vmem [#allocation1], 32
        %642 = vst [vmem:[%s641] ss:$4 sm:$0xff] %v557
        %v643 = vld.sshfl [vmem:[#allocation1 + $0x20] sm:$0xff pattern:$0x73625140]
        %646 = vst [vmem:[#allocation1] ss:$4 sm:$0xff] %v558
        %v647 = vld.sshfl [vmem:[#allocation1] sm:$0xff pattern:$0x73625140]
        %650 = vst [vmem:[%s641] ss:$4 sm:$0xff] %v559
        %v651 = vld.sshfl [vmem:[#allocation1 + $0x20] sm:$0xff pattern:$0x73625140]
        %654 = vst [vmem:[#allocation1] ss:$4 sm:$0xff] %v560
        %v655 = vld.sshfl [vmem:[#allocation1] sm:$0xff pattern:$0x73625140]
        %658 = vst [vmem:[%s641] ss:$4 sm:$0xff] %v561
        %v659 = vld.sshfl [vmem:[#allocation1 + $0x20] sm:$0xff pattern:$0x73625140]
        %662 = vst [vmem:[#allocation1] ss:$4 sm:$0xff] %v562
        %v663 = vld.sshfl [vmem:[#allocation1] sm:$0xff pattern:$0x73625140]
        %666 = vst [vmem:[%s641] ss:$4 sm:$0xff] %v563
        %v667 = vld.sshfl [vmem:[#allocation1 + $0x20] sm:$0xff pattern:$0x73625140]
        %v669 = vunpack.c.l.b16 %v638
        %v670 = vunpack.c.l.b16 %v643
        %v671 = vunpack.c.l.b16 %v647
        %v672 = vunpack.c.l.b16 %v651
        %v673 = vunpack.c.l.b16 %v655
        %v674 = vunpack.c.l.b16 %v659
        %v675 = vunpack.c.l.b16 %v663
        %v676 = vunpack.c.l.b16 %v667
        %v677 = vrot.slane %v670, 7
        %v678 = vsel %vm615, %v677, %v669
        %v679 = vrot.slane %v671, 6
        %v680 = vsel %vm618, %v679, %v678
        %v681 = vrot.slane %v672, 5
        %v682 = vsel %vm621, %v681, %v680
        %v683 = vrot.slane %v673, 4
        %v684 = vsel %vm624, %v683, %v682
        %v685 = vrot.slane %v674, 3
        %v686 = vsel %vm627, %v685, %v684
        %v687 = vrot.slane %v675, 2
        %v688 = vsel %vm630, %v687, %v686
        %v689 = vrot.slane %v676, 1
        %v690 = vsel %vm633, %v689, %v688
        %v691 = vpack.c.b16 %v690, %v690
        %vm692 = vcmask 64512
        %v694 = vsel %vm692, %v635, 0
        %v697 = vsel %vm692, %v691, 0
        %699 = vmatpush.bf16.xpose.msra.mxu0 0
        %700 = vmatpush.bf16.xpose.msra.mxu0 0
        %701 = vmatpush.bf16.xpose.msra.mxu0 0
        %702 = vmatpush.bf16.xpose.msra.mxu0 0
        %703 = vmatpush.bf16.xpose.msra.mxu0 0
        %704 = vmatpush.bf16.xpose.msra.mxu0 0
        %705 = vmatpush.bf16.xpose.msra.mxu0 0
        %706 = vmatpush.bf16.xpose.msra.mxu0 %v697
        %707 = vmatmul.bf16.gmra.mxu0 %v694
        %v708 = vpop.f32.mrf.mxu0
        %v709 = vadd.f32 %v572, %v708
        %v710 = vpop.f32.mrf.mxu0
        %711 = vdwg.mxu0
        %v712 = vld [vmem:[#allocation2] sm:$0xff]
        %v713 = vsel %vm692, %v709, -inf
        %714 = vmax.xlane.f32.xlu0 %v713
        %v715 = vpop.xlane.xlu0 %714
        %v716 = vmax.f32 %v712, %v715
        %v717 = vsub.f32 %v712, %v716
        %v718 = vmul.f32 %v717, 1.442695
        %v719 = vpow.pop %v718
        %721 = vset.pattern.permute.xlu0 0
        %722 = vperm.xlu0 %721, %v716
        %v723 = vpop.permute.xlu0 %722
        %v725 = vsub.f32 %v709, %v723
        %v726 = vmul.f32 %v725, 1.442695
        %v727 = vpow.pop %v726
        %v728 = vld [vmem:[#allocation3] sm:$0xff]
        %v729 = vmul.f32 %v719, %v728
        %v730 = vsel %vm692, %v727, 0.0
        %731 = vadd.xlane.f32.xlu0 %v730
        %v732 = vpop.xlane.xlu0 %731
        %v733 = vadd.f32 %v729, %v732
        %vm734 = vcmask 7168
        %735 = vst.msk [vmem:[#allocation3] sm:$0xff] %vm734, %v733
        %v736 = vpack.c.bf16 %v727, %v727
        %738 = vst [vmem:[#allocation1] ss:$4 sm:$0xff] %v564
        %v739 = vld.sshfl [vmem:[#allocation1] sm:$0xff pattern:$0x73625140]
        %s742 = scalar_lea.vmem [#allocation1], 32
        %743 = vst [vmem:[%s742] ss:$4 sm:$0xff] %v565
        %v744 = vld.sshfl [vmem:[#allocation1 + $0x20] sm:$0xff pattern:$0x73625140]
        %747 = vst [vmem:[#allocation1] ss:$4 sm:$0xff] %v566
        %v748 = vld.sshfl [vmem:[#allocation1] sm:$0xff pattern:$0x73625140]
        %751 = vst [vmem:[%s742] ss:$4 sm:$0xff] %v567
        %v752 = vld.sshfl [vmem:[#allocation1 + $0x20] sm:$0xff pattern:$0x73625140]
        %755 = vst [vmem:[#allocation1] ss:$4 sm:$0xff] %v568
        %v756 = vld.sshfl [vmem:[#allocation1] sm:$0xff pattern:$0x73625140]
        %759 = vst [vmem:[%s742] ss:$4 sm:$0xff] %v569
        %v760 = vld.sshfl [vmem:[#allocation1 + $0x20] sm:$0xff pattern:$0x73625140]
        %763 = vst [vmem:[#allocation1] ss:$4 sm:$0xff] %v570
        %v764 = vld.sshfl [vmem:[#allocation1] sm:$0xff pattern:$0x73625140]
        %767 = vst [vmem:[%s742] ss:$4 sm:$0xff] %v571
        %v768 = vld.sshfl [vmem:[#allocation1 + $0x20] sm:$0xff pattern:$0x73625140]
        %v770 = vunpack.c.l.b16 %v739
        %v771 = vunpack.c.l.b16 %v744
        %v772 = vunpack.c.l.b16 %v748
        %v773 = vunpack.c.l.b16 %v752
        %v774 = vunpack.c.l.b16 %v756
        %v775 = vunpack.c.l.b16 %v760
        %v776 = vunpack.c.l.b16 %v764
        %v777 = vunpack.c.l.b16 %v768
        %v778 = vrot.slane %v771, 7
        %v779 = vsel %vm615, %v778, %v770
        %v780 = vrot.slane %v772, 6
        %v781 = vsel %vm618, %v780, %v779
        %v782 = vrot.slane %v773, 5
        %v783 = vsel %vm621, %v782, %v781
        %v784 = vrot.slane %v774, 4
        %v785 = vsel %vm624, %v784, %v783
        %v786 = vrot.slane %v775, 3
        %v787 = vsel %vm627, %v786, %v785
        %v788 = vrot.slane %v776, 2
        %v789 = vsel %vm630, %v788, %v787
        %v790 = vrot.slane %v777, 1
        %v791 = vsel %vm633, %v790, %v789
        %v792 = vpack.c.b16 %v791, %v791
        %v794 = vsel %vm692, %v736, 0
        %vm796 = vcmask 1043456
        %v798 = vsel %vm796, %v792, 0
        %800 = vmatpush.bf16.msra.mxu0 0
        %801 = vmatpush.bf16.msra.mxu0 0
        %802 = vmatpush.bf16.msra.mxu0 0
        %803 = vmatpush.bf16.msra.mxu0 0
        %804 = vmatpush.bf16.msra.mxu0 0
        %805 = vmatpush.bf16.msra.mxu0 0
        %806 = vmatpush.bf16.msra.mxu0 0
        %807 = vmatpush.bf16.msra.mxu0 %v798
        %808 = vmatmul.bf16.gmra.mxu0 %v794
        %v809 = vpop.f32.mrf.mxu0
        %v810 = vadd.f32 0.0, %v809
        %v811 = vpop.f32.mrf.mxu0
        %812 = vdwg.mxu0
        %v813 = vld [vmem:[#allocation4] sm:$0xff]
        %815 = vset.pattern.permute.xlu0 0
        %816 = vperm.xlu0 %815, %v719
        %v817 = vpop.permute.xlu0 %816
        %v819 = vmul.f32 %v817, %v813
        %v820 = vadd.f32 %v819, %v810
        %821 = vst.msk [vmem:[#allocation4] sm:$0xff] %vm692, %v820
        %822 = vst.msk [vmem:[#allocation2] sm:$0xff] %vm734, %v716
        %823 = vst [vmem:[#allocation1] ss:$4 sm:$0xff] %v548
        %v824 = vld.sshfl [vmem:[#allocation1] sm:$0xff pattern:$0x73625140]
        %s826 = scalar_lea.vmem [#allocation1], 32
        %827 = vst [vmem:[%s826] ss:$4 sm:$0xff] %v549
        %v828 = vld.sshfl [vmem:[#allocation1 + $0x20] sm:$0xff pattern:$0x73625140]
        %830 = vst [vmem:[#allocation1] ss:$4 sm:$0xff] %v550
        %v831 = vld.sshfl [vmem:[#allocation1] sm:$0xff pattern:$0x73625140]
        %833 = vst [vmem:[%s826] ss:$4 sm:$0xff] %v551
        %v834 = vld.sshfl [vmem:[#allocation1 + $0x20] sm:$0xff pattern:$0x73625140]
        %836 = vst [vmem:[#allocation1] ss:$4 sm:$0xff] %v552
        %v837 = vld.sshfl [vmem:[#allocation1] sm:$0xff pattern:$0x73625140]
        %839 = vst [vmem:[%s826] ss:$4 sm:$0xff] %v553
        %v840 = vld.sshfl [vmem:[#allocation1 + $0x20] sm:$0xff pattern:$0x73625140]
        %842 = vst [vmem:[#allocation1] ss:$4 sm:$0xff] %v554
        %v843 = vld.sshfl [vmem:[#allocation1] sm:$0xff pattern:$0x73625140]
        %845 = vst [vmem:[%s826] ss:$4 sm:$0xff] %v555
        %v846 = vld.sshfl [vmem:[#allocation1 + $0x20] sm:$0xff pattern:$0x73625140]
        %v848 = vunpack.c.l.b16 %v824
        %v849 = vunpack.c.l.b16 %v828
        %v850 = vunpack.c.l.b16 %v831
        %v851 = vunpack.c.l.b16 %v834
        %v852 = vunpack.c.l.b16 %v837
        %v853 = vunpack.c.l.b16 %v840
        %v854 = vunpack.c.l.b16 %v843
        %v855 = vunpack.c.l.b16 %v846
        %v856 = vrot.slane %v848, 1
        %v857 = vsel %vm615, %v849, %v856
        %v858 = vrot.slane %v850, 7
        %v859 = vsel %vm618, %v858, %v857
        %v860 = vrot.slane %v851, 6
        %v861 = vsel %vm621, %v860, %v859
        %v862 = vrot.slane %v852, 5
        %v863 = vsel %vm624, %v862, %v861
        %v864 = vrot.slane %v853, 4
        %v865 = vsel %vm627, %v864, %v863
        %v866 = vrot.slane %v854, 3
        %v867 = vsel %vm630, %v866, %v865
        %v868 = vrot.slane %v855, 2
        %v869 = vsel %vm633, %v868, %v867
        %v870 = vpack.c.b16 %v869, %v869
        %871 = vst [vmem:[#allocation1] ss:$4 sm:$0xff] %v556
        %v872 = vld.sshfl [vmem:[#allocation1] sm:$0xff pattern:$0x73625140]
        %s874 = scalar_lea.vmem [#allocation1], 32
        %875 = vst [vmem:[%s874] ss:$4 sm:$0xff] %v557
        %v876 = vld.sshfl [vmem:[#allocation1 + $0x20] sm:$0xff pattern:$0x73625140]
        %878 = vst [vmem:[#allocation1] ss:$4 sm:$0xff] %v558
        %v879 = vld.sshfl [vmem:[#allocation1] sm:$0xff pattern:$0x73625140]
        %881 = vst [vmem:[%s874] ss:$4 sm:$0xff] %v559
        %v882 = vld.sshfl [vmem:[#allocation1 + $0x20] sm:$0xff pattern:$0x73625140]
        %884 = vst [vmem:[#allocation1] ss:$4 sm:$0xff] %v560
        %v885 = vld.sshfl [vmem:[#allocation1] sm:$0xff pattern:$0x73625140]
        %887 = vst [vmem:[%s874] ss:$4 sm:$0xff] %v561
        %v888 = vld.sshfl [vmem:[#allocation1 + $0x20] sm:$0xff pattern:$0x73625140]
        %890 = vst [vmem:[#allocation1] ss:$4 sm:$0xff] %v562
        %v891 = vld.sshfl [vmem:[#allocation1] sm:$0xff pattern:$0x73625140]
        %893 = vst [vmem:[%s874] ss:$4 sm:$0xff] %v563
        %v894 = vld.sshfl [vmem:[#allocation1 + $0x20] sm:$0xff pattern:$0x73625140]
        %v896 = vunpack.c.l.b16 %v872
        %v897 = vunpack.c.l.b16 %v876
        %v898 = vunpack.c.l.b16 %v879
        %v899 = vunpack.c.l.b16 %v882
        %v900 = vunpack.c.l.b16 %v885
        %v901 = vunpack.c.l.b16 %v888
        %v902 = vunpack.c.l.b16 %v891
        %v903 = vunpack.c.l.b16 %v894
        %v904 = vrot.slane %v896, 1
        %v905 = vsel %vm615, %v897, %v904
        %v906 = vrot.slane %v898, 7
        %v907 = vsel %vm618, %v906, %v905
        %v908 = vrot.slane %v899, 6
        %v909 = vsel %vm621, %v908, %v907
        %v910 = vrot.slane %v900, 5
        %v911 = vsel %vm624, %v910, %v909
        %v912 = vrot.slane %v901, 4
        %v913 = vsel %vm627, %v912, %v911
        %v914 = vrot.slane %v902, 3
        %v915 = vsel %vm630, %v914, %v913
        %v916 = vrot.slane %v903, 2
        %v917 = vsel %vm633, %v916, %v915
        %v918 = vpack.c.b16 %v917, %v917
        %v920 = vsel %vm692, %v870, 0
        %v923 = vsel %vm692, %v918, 0
        %925 = vmatpush.bf16.xpose.msra.mxu0 0
        %926 = vmatpush.bf16.xpose.msra.mxu0 0
        %927 = vmatpush.bf16.xpose.msra.mxu0 0
        %928 = vmatpush.bf16.xpose.msra.mxu0 0
        %929 = vmatpush.bf16.xpose.msra.mxu0 0
        %930 = vmatpush.bf16.xpose.msra.mxu0 0
        %931 = vmatpush.bf16.xpose.msra.mxu0 0
        %932 = vmatpush.bf16.xpose.msra.mxu0 %v923
        %933 = vmatmul.bf16.gmra.mxu0 %v920
        %v934 = vpop.f32.mrf.mxu0
        %v935 = vadd.f32 %v572, %v934
        %v936 = vpop.f32.mrf.mxu0
        %937 = vdwg.mxu0
        %v938 = vld [vmem:[#allocation2] sm:$0xff]
        %v939 = vsel %vm692, %v935, -inf
        %940 = vmax.xlane.f32.xlu0 %v939
        %v941 = vpop.xlane.xlu0 %940
        %v942 = vmax.f32 %v938, %v941
        %v943 = vsub.f32 %v938, %v942
        %v944 = vmul.f32 %v943, 1.442695
        %v945 = vpow.pop %v944
        %947 = vset.pattern.permute.xlu0 1
        %948 = vperm.xlu0 %947, %v942
        %v949 = vpop.permute.xlu0 %948
        %v951 = vsub.f32 %v935, %v949
        %v952 = vmul.f32 %v951, 1.442695
        %v953 = vpow.pop %v952
        %v954 = vld [vmem:[#allocation3] sm:$0xff]
        %v955 = vmul.f32 %v945, %v954
        %v956 = vsel %vm692, %v953, 0.0
        %957 = vadd.xlane.f32.xlu0 %v956
        %v958 = vpop.xlane.xlu0 %957
        %v959 = vadd.f32 %v955, %v958
        %vm960 = vcmask 15368
        %961 = vst.msk [vmem:[#allocation3] sm:$0xff] %vm960, %v959
        %v962 = vpack.c.bf16 %v953, %v953
        %963 = vst [vmem:[#allocation1] ss:$4 sm:$0xff] %v564
        %v964 = vld.sshfl [vmem:[#allocation1] sm:$0xff pattern:$0x73625140]
        %s966 = scalar_lea.vmem [#allocation1], 32
        %967 = vst [vmem:[%s966] ss:$4 sm:$0xff] %v565
        %v968 = vld.sshfl [vmem:[#allocation1 + $0x20] sm:$0xff pattern:$0x73625140]
        %970 = vst [vmem:[#allocation1] ss:$4 sm:$0xff] %v566
        %v971 = vld.sshfl [vmem:[#allocation1] sm:$0xff pattern:$0x73625140]
        %973 = vst [vmem:[%s966] ss:$4 sm:$0xff] %v567
        %v974 = vld.sshfl [vmem:[#allocation1 + $0x20] sm:$0xff pattern:$0x73625140]
        %976 = vst [vmem:[#allocation1] ss:$4 sm:$0xff] %v568
        %v977 = vld.sshfl [vmem:[#allocation1] sm:$0xff pattern:$0x73625140]
        %979 = vst [vmem:[%s966] ss:$4 sm:$0xff] %v569
        %v980 = vld.sshfl [vmem:[#allocation1 + $0x20] sm:$0xff pattern:$0x73625140]
        %982 = vst [vmem:[#allocation1] ss:$4 sm:$0xff] %v570
        %v983 = vld.sshfl [vmem:[#allocation1] sm:$0xff pattern:$0x73625140]
        %985 = vst [vmem:[%s966] ss:$4 sm:$0xff] %v571
        %v986 = vld.sshfl [vmem:[#allocation1 + $0x20] sm:$0xff pattern:$0x73625140]
        %v988 = vunpack.c.l.b16 %v964
        %v989 = vunpack.c.l.b16 %v968
        %v990 = vunpack.c.l.b16 %v971
        %v991 = vunpack.c.l.b16 %v974
        %v992 = vunpack.c.l.b16 %v977
        %v993 = vunpack.c.l.b16 %v980
        %v994 = vunpack.c.l.b16 %v983
        %v995 = vunpack.c.l.b16 %v986
        %v996 = vrot.slane %v988, 1
        %v997 = vsel %vm615, %v989, %v996
        %v998 = vrot.slane %v990, 7
        %v999 = vsel %vm618, %v998, %v997
        %v1000 = vrot.slane %v991, 6
        %v1001 = vsel %vm621, %v1000, %v999
        %v1002 = vrot.slane %v992, 5
        %v1003 = vsel %vm624, %v1002, %v1001
        %v1004 = vrot.slane %v993, 4
        %v1005 = vsel %vm627, %v1004, %v1003
        %v1006 = vrot.slane %v994, 3
        %v1007 = vsel %vm630, %v1006, %v1005
        %v1008 = vrot.slane %v995, 2
        %v1009 = vsel %vm633, %v1008, %v1007
        %v1010 = vpack.c.b16 %v1009, %v1009
        %v1012 = vsel %vm692, %v962, 0
        %v1015 = vsel %vm796, %v1010, 0
        %1017 = vmatpush.bf16.msra.mxu0 0
        %1018 = vmatpush.bf16.msra.mxu0 0
        %1019 = vmatpush.bf16.msra.mxu0 0
        %1020 = vmatpush.bf16.msra.mxu0 0
        %1021 = vmatpush.bf16.msra.mxu0 0
        %1022 = vmatpush.bf16.msra.mxu0 0
        %1023 = vmatpush.bf16.msra.mxu0 0
        %1024 = vmatpush.bf16.msra.mxu0 %v1015
        %1025 = vmatmul.bf16.gmra.mxu0 %v1012
        %v1026 = vpop.f32.mrf.mxu0
        %v1027 = vadd.f32 0.0, %v1026
        %v1028 = vpop.f32.mrf.mxu0
        %1029 = vdwg.mxu0
        %v1030 = vld [vmem:[#allocation4] sm:$0xff]
        %1032 = vset.pattern.permute.xlu0 1
        %1033 = vperm.xlu0 %1032, %v945
        %v1034 = vpop.permute.xlu0 %1033
        %v1036 = vmul.f32 %v1034, %v1030
        %1038 = vrot.lane.b32.xlu0 %v1027, 8
        %v1039 = vpop.permute.xlu0 %1038
        %v1041 = vadd.f32 %v1036, %v1039
        %vm1042 = vcmask 130112
        %1043 = vst.msk [vmem:[#allocation4] sm:$0xff] %vm1042, %v1041
        %1044 = vst.msk [vmem:[#allocation2] sm:$0xff] %vm960, %v942
        %1045 = vst [vmem:[#allocation1] ss:$4 sm:$0xff] %v548
        %v1046 = vld.sshfl [vmem:[#allocation1] sm:$0xff pattern:$0x73625140]
        %s1048 = scalar_lea.vmem [#allocation1], 32
        %1049 = vst [vmem:[%s1048] ss:$4 sm:$0xff] %v549
        %v1050 = vld.sshfl [vmem:[#allocation1 + $0x20] sm:$0xff pattern:$0x73625140]
        %1052 = vst [vmem:[#allocation1] ss:$4 sm:$0xff] %v550
        %v1053 = vld.sshfl [vmem:[#allocation1] sm:$0xff pattern:$0x73625140]
        %1055 = vst [vmem:[%s1048] ss:$4 sm:$0xff] %v551
        %v1056 = vld.sshfl [vmem:[#allocation1 + $0x20] sm:$0xff pattern:$0x73625140]
        %1058 = vst [vmem:[#allocation1] ss:$4 sm:$0xff] %v552
        %v1059 = vld.sshfl [vmem:[#allocation1] sm:$0xff pattern:$0x73625140]
        %1061 = vst [vmem:[%s1048] ss:$4 sm:$0xff] %v553
        %v1062 = vld.sshfl [vmem:[#allocation1 + $0x20] sm:$0xff pattern:$0x73625140]
        %1064 = vst [vmem:[#allocation1] ss:$4 sm:$0xff] %v554
        %v1065 = vld.sshfl [vmem:[#allocation1] sm:$0xff pattern:$0x73625140]
        %1067 = vst [vmem:[%s1048] ss:$4 sm:$0xff] %v555
        %v1068 = vld.sshfl [vmem:[#allocation1 + $0x20] sm:$0xff pattern:$0x73625140]
        %v1070 = vunpack.c.l.b16 %v1046
        %v1071 = vunpack.c.l.b16 %v1050
        %v1072 = vunpack.c.l.b16 %v1053
        %v1073 = vunpack.c.l.b16 %v1056
        %v1074 = vunpack.c.l.b16 %v1059
        %v1075 = vunpack.c.l.b16 %v1062
        %v1076 = vunpack.c.l.b16 %v1065
        %v1077 = vunpack.c.l.b16 %v1068
        %v1078 = vrot.slane %v1070, 2
        %v1079 = vrot.slane %v1071, 1
        %v1080 = vsel %vm615, %v1079, %v1078
        %v1081 = vsel %vm618, %v1072, %v1080
        %v1082 = vrot.slane %v1073, 7
        %v1083 = vsel %vm621, %v1082, %v1081
        %v1084 = vrot.slane %v1074, 6
        %v1085 = vsel %vm624, %v1084, %v1083
        %v1086 = vrot.slane %v1075, 5
        %v1087 = vsel %vm627, %v1086, %v1085
        %v1088 = vrot.slane %v1076, 4
        %v1089 = vsel %vm630, %v1088, %v1087
        %v1090 = vrot.slane %v1077, 3
        %v1091 = vsel %vm633, %v1090, %v1089
        %v1092 = vpack.c.b16 %v1091, %v1091
        %1093 = vst [vmem:[#allocation1] ss:$4 sm:$0xff] %v556
        %v1094 = vld.sshfl [vmem:[#allocation1] sm:$0xff pattern:$0x73625140]
        %s1096 = scalar_lea.vmem [#allocation1], 32
        %1097 = vst [vmem:[%s1096] ss:$4 sm:$0xff] %v557
        %v1098 = vld.sshfl [vmem:[#allocation1 + $0x20] sm:$0xff pattern:$0x73625140]
        %1100 = vst [vmem:[#allocation1] ss:$4 sm:$0xff] %v558
        %v1101 = vld.sshfl [vmem:[#allocation1] sm:$0xff pattern:$0x73625140]
        %1103 = vst [vmem:[%s1096] ss:$4 sm:$0xff] %v559
        %v1104 = vld.sshfl [vmem:[#allocation1 + $0x20] sm:$0xff pattern:$0x73625140]
        %1106 = vst [vmem:[#allocation1] ss:$4 sm:$0xff] %v560
        %v1107 = vld.sshfl [vmem:[#allocation1] sm:$0xff pattern:$0x73625140]
        %1109 = vst [vmem:[%s1096] ss:$4 sm:$0xff] %v561
        %v1110 = vld.sshfl [vmem:[#allocation1 + $0x20] sm:$0xff pattern:$0x73625140]
        %1112 = vst [vmem:[#allocation1] ss:$4 sm:$0xff] %v562
        %v1113 = vld.sshfl [vmem:[#allocation1] sm:$0xff pattern:$0x73625140]
        %1115 = vst [vmem:[%s1096] ss:$4 sm:$0xff] %v563
        %v1116 = vld.sshfl [vmem:[#allocation1 + $0x20] sm:$0xff pattern:$0x73625140]
        %v1118 = vunpack.c.l.b16 %v1094
        %v1119 = vunpack.c.l.b16 %v1098
        %v1120 = vunpack.c.l.b16 %v1101
        %v1121 = vunpack.c.l.b16 %v1104
        %v1122 = vunpack.c.l.b16 %v1107
        %v1123 = vunpack.c.l.b16 %v1110
        %v1124 = vunpack.c.l.b16 %v1113
        %v1125 = vunpack.c.l.b16 %v1116
        %v1126 = vrot.slane %v1118, 2
        %v1127 = vrot.slane %v1119, 1
        %v1128 = vsel %vm615, %v1127, %v1126
        %v1129 = vsel %vm618, %v1120, %v1128
        %v1130 = vrot.slane %v1121, 7
        %v1131 = vsel %vm621, %v1130, %v1129
        %v1132 = vrot.slane %v1122, 6
        %v1133 = vsel %vm624, %v1132, %v1131
        %v1134 = vrot.slane %v1123, 5
        %v1135 = vsel %vm627, %v1134, %v1133
        %v1136 = vrot.slane %v1124, 4
        %v1137 = vsel %vm630, %v1136, %v1135
        %v1138 = vrot.slane %v1125, 3
        %v1139 = vsel %vm633, %v1138, %v1137
        %v1140 = vpack.c.b16 %v1139, %v1139
        %v1142 = vsel %vm692, %v1092, 0
        %v1145 = vsel %vm692, %v1140, 0
        %1147 = vmatpush.bf16.xpose.msra.mxu0 0
        %1148 = vmatpush.bf16.xpose.msra.mxu0 0
        %1149 = vmatpush.bf16.xpose.msra.mxu0 0
        %1150 = vmatpush.bf16.xpose.msra.mxu0 0
        %1151 = vmatpush.bf16.xpose.msra.mxu0 0
        %1152 = vmatpush.bf16.xpose.msra.mxu0 0
        %1153 = vmatpush.bf16.xpose.msra.mxu0 0
        %1154 = vmatpush.bf16.xpose.msra.mxu0 %v1145
        %1155 = vmatmul.bf16.gmra.mxu0 %v1142
        %v1156 = vpop.f32.mrf.mxu0
        %v1157 = vadd.f32 %v572, %v1156
        %v1158 = vpop.f32.mrf.mxu0
        %1159 = vdwg.mxu0
        %v1160 = vld [vmem:[#allocation2] sm:$0xff]
        %v1161 = vsel %vm692, %v1157, -inf
        %1162 = vmax.xlane.f32.xlu0 %v1161
        %v1163 = vpop.xlane.xlu0 %1162
        %v1164 = vmax.f32 %v1160, %v1163
        %v1165 = vsub.f32 %v1160, %v1164
        %v1166 = vmul.f32 %v1165, 1.442695
        %v1167 = vpow.pop %v1166
        %1169 = vset.pattern.permute.xlu0 2
        %1170 = vperm.xlu0 %1169, %v1164
        %v1171 = vpop.permute.xlu0 %1170
        %v1173 = vsub.f32 %v1157, %v1171
        %v1174 = vmul.f32 %v1173, 1.442695
        %v1175 = vpow.pop %v1174
        %v1176 = vld [vmem:[#allocation3] sm:$0xff]
        %v1177 = vmul.f32 %v1167, %v1176
        %v1178 = vsel %vm692, %v1175, 0.0
        %1179 = vadd.xlane.f32.xlu0 %v1178
        %v1180 = vpop.xlane.xlu0 %1179
        %v1181 = vadd.f32 %v1177, %v1180
        %vm1182 = vcmask 23568
        %1183 = vst.msk [vmem:[#allocation3] sm:$0xff] %vm1182, %v1181
        %v1184 = vpack.c.bf16 %v1175, %v1175
        %1185 = vst [vmem:[#allocation1] ss:$4 sm:$0xff] %v564
        %v1186 = vld.sshfl [vmem:[#allocation1] sm:$0xff pattern:$0x73625140]
        %s1188 = scalar_lea.vmem [#allocation1], 32
        %1189 = vst [vmem:[%s1188] ss:$4 sm:$0xff] %v565
        %v1190 = vld.sshfl [vmem:[#allocation1 + $0x20] sm:$0xff pattern:$0x73625140]
        %1192 = vst [vmem:[#allocation1] ss:$4 sm:$0xff] %v566
        %v1193 = vld.sshfl [vmem:[#allocation1] sm:$0xff pattern:$0x73625140]
        %1195 = vst [vmem:[%s1188] ss:$4 sm:$0xff] %v567
        %v1196 = vld.sshfl [vmem:[#allocation1 + $0x20] sm:$0xff pattern:$0x73625140]
        %1198 = vst [vmem:[#allocation1] ss:$4 sm:$0xff] %v568
        %v1199 = vld.sshfl [vmem:[#allocation1] sm:$0xff pattern:$0x73625140]
        %1201 = vst [vmem:[%s1188] ss:$4 sm:$0xff] %v569
        %v1202 = vld.sshfl [vmem:[#allocation1 + $0x20] sm:$0xff pattern:$0x73625140]
        %1204 = vst [vmem:[#allocation1] ss:$4 sm:$0xff] %v570
        %v1205 = vld.sshfl [vmem:[#allocation1] sm:$0xff pattern:$0x73625140]
        %1207 = vst [vmem:[%s1188] ss:$4 sm:$0xff] %v571
        %v1208 = vld.sshfl [vmem:[#allocation1 + $0x20] sm:$0xff pattern:$0x73625140]
        %v1210 = vunpack.c.l.b16 %v1186
        %v1211 = vunpack.c.l.b16 %v1190
        %v1212 = vunpack.c.l.b16 %v1193
        %v1213 = vunpack.c.l.b16 %v1196
        %v1214 = vunpack.c.l.b16 %v1199
        %v1215 = vunpack.c.l.b16 %v1202
        %v1216 = vunpack.c.l.b16 %v1205
        %v1217 = vunpack.c.l.b16 %v1208
        %v1218 = vrot.slane %v1210, 2
        %v1219 = vrot.slane %v1211, 1
        %v1220 = vsel %vm615, %v1219, %v1218
        %v1221 = vsel %vm618, %v1212, %v1220
        %v1222 = vrot.slane %v1213, 7
        %v1223 = vsel %vm621, %v1222, %v1221
        %v1224 = vrot.slane %v1214, 6
        %v1225 = vsel %vm624, %v1224, %v1223
        %v1226 = vrot.slane %v1215, 5
        %v1227 = vsel %vm627, %v1226, %v1225
        %v1228 = vrot.slane %v1216, 4
        %v1229 = vsel %vm630, %v1228, %v1227
        %v1230 = vrot.slane %v1217, 3
        %v1231 = vsel %vm633, %v1230, %v1229
        %v1232 = vpack.c.b16 %v1231, %v1231
        %v1234 = vsel %vm692, %v1184, 0
        %v1237 = vsel %vm796, %v1232, 0
        %1239 = vmatpush.bf16.msra.mxu0 0
        %1240 = vmatpush.bf16.msra.mxu0 0
        %1241 = vmatpush.bf16.msra.mxu0 0
        %1242 = vmatpush.bf16.msra.mxu0 0
        %1243 = vmatpush.bf16.msra.mxu0 0
        %1244 = vmatpush.bf16.msra.mxu0 0
        %1245 = vmatpush.bf16.msra.mxu0 0
        %1246 = vmatpush.bf16.msra.mxu0 %v1237
        %1247 = vmatmul.bf16.gmra.mxu0 %v1234
        %v1248 = vpop.f32.mrf.mxu0
        %v1249 = vadd.f32 0.0, %v1248
        %v1250 = vpop.f32.mrf.mxu0
        %1251 = vdwg.mxu0
        %v1252 = vld [vmem:[#allocation4] sm:$0xff]
        %1254 = vset.pattern.permute.xlu0 2
        %1255 = vperm.xlu0 %1254, %v1167
        %v1256 = vpop.permute.xlu0 %1255
        %v1258 = vmul.f32 %v1256, %v1252
        %1260 = vrot.lane.b32.xlu0 %v1249, 16
        %v1261 = vpop.permute.xlu0 %1260
        %v1263 = vadd.f32 %v1258, %v1261
        %vm1264 = vcmask 195712
        %1265 = vst.msk [vmem:[#allocation4] sm:$0xff] %vm1264, %v1263
        %1266 = vst.msk [vmem:[#allocation2] sm:$0xff] %vm1182, %v1164
        %1267 = vst [vmem:[#allocation1] ss:$4 sm:$0xff] %v548
        %v1268 = vld.sshfl [vmem:[#allocation1] sm:$0xff pattern:$0x73625140]
        %s1270 = scalar_lea.vmem [#allocation1], 32
        %1271 = vst [vmem:[%s1270] ss:$4 sm:$0xff] %v549
        %v1272 = vld.sshfl [vmem:[#allocation1 + $0x20] sm:$0xff pattern:$0x73625140]
        %1274 = vst [vmem:[#allocation1] ss:$4 sm:$0xff] %v550
        %v1275 = vld.sshfl [vmem:[#allocation1] sm:$0xff pattern:$0x73625140]
        %1277 = vst [vmem:[%s1270] ss:$4 sm:$0xff] %v551
        %v1278 = vld.sshfl [vmem:[#allocation1 + $0x20] sm:$0xff pattern:$0x73625140]
        %1280 = vst [vmem:[#allocation1] ss:$4 sm:$0xff] %v552
        %v1281 = vld.sshfl [vmem:[#allocation1] sm:$0xff pattern:$0x73625140]
        %1283 = vst [vmem:[%s1270] ss:$4 sm:$0xff] %v553
        %v1284 = vld.sshfl [vmem:[#allocation1 + $0x20] sm:$0xff pattern:$0x73625140]
        %1286 = vst [vmem:[#allocation1] ss:$4 sm:$0xff] %v554
        %v1287 = vld.sshfl [vmem:[#allocation1] sm:$0xff pattern:$0x73625140]
        %1289 = vst [vmem:[%s1270] ss:$4 sm:$0xff] %v555
        %v1290 = vld.sshfl [vmem:[#allocation1 + $0x20] sm:$0xff pattern:$0x73625140]
        %v1292 = vunpack.c.l.b16 %v1268
        %v1293 = vunpack.c.l.b16 %v1272
        %v1294 = vunpack.c.l.b16 %v1275
        %v1295 = vunpack.c.l.b16 %v1278
        %v1296 = vunpack.c.l.b16 %v1281
        %v1297 = vunpack.c.l.b16 %v1284
        %v1298 = vunpack.c.l.b16 %v1287
        %v1299 = vunpack.c.l.b16 %v1290
        %v1300 = vrot.slane %v1292, 3
        %v1301 = vrot.slane %v1293, 2
        %v1302 = vsel %vm615, %v1301, %v1300
        %v1303 = vrot.slane %v1294, 1
        %v1304 = vsel %vm618, %v1303, %v1302
        %v1305 = vsel %vm621, %v1295, %v1304
        %v1306 = vrot.slane %v1296, 7
        %v1307 = vsel %vm624, %v1306, %v1305
        %v1308 = vrot.slane %v1297, 6
        %v1309 = vsel %vm627, %v1308, %v1307
        %v1310 = vrot.slane %v1298, 5
        %v1311 = vsel %vm630, %v1310, %v1309
        %v1312 = vrot.slane %v1299, 4
        %v1313 = vsel %vm633, %v1312, %v1311
        %v1314 = vpack.c.b16 %v1313, %v1313
        %1315 = vst [vmem:[#allocation1] ss:$4 sm:$0xff] %v556
        %v1316 = vld.sshfl [vmem:[#allocation1] sm:$0xff pattern:$0x73625140]
        %s1318 = scalar_lea.vmem [#allocation1], 32
        %1319 = vst [vmem:[%s1318] ss:$4 sm:$0xff] %v557
        %v1320 = vld.sshfl [vmem:[#allocation1 + $0x20] sm:$0xff pattern:$0x73625140]
        %1322 = vst [vmem:[#allocation1] ss:$4 sm:$0xff] %v558
        %v1323 = vld.sshfl [vmem:[#allocation1] sm:$0xff pattern:$0x73625140]
        %1325 = vst [vmem:[%s1318] ss:$4 sm:$0xff] %v559
        %v1326 = vld.sshfl [vmem:[#allocation1 + $0x20] sm:$0xff pattern:$0x73625140]
        %1328 = vst [vmem:[#allocation1] ss:$4 sm:$0xff] %v560
        %v1329 = vld.sshfl [vmem:[#allocation1] sm:$0xff pattern:$0x73625140]
        %1331 = vst [vmem:[%s1318] ss:$4 sm:$0xff] %v561
        %v1332 = vld.sshfl [vmem:[#allocation1 + $0x20] sm:$0xff pattern:$0x73625140]
        %1334 = vst [vmem:[#allocation1] ss:$4 sm:$0xff] %v562
        %v1335 = vld.sshfl [vmem:[#allocation1] sm:$0xff pattern:$0x73625140]
        %1337 = vst [vmem:[%s1318] ss:$4 sm:$0xff] %v563
        %v1338 = vld.sshfl [vmem:[#allocation1 + $0x20] sm:$0xff pattern:$0x73625140]
        %v1340 = vunpack.c.l.b16 %v1316
        %v1341 = vunpack.c.l.b16 %v1320
        %v1342 = vunpack.c.l.b16 %v1323
        %v1343 = vunpack.c.l.b16 %v1326
        %v1344 = vunpack.c.l.b16 %v1329
        %v1345 = vunpack.c.l.b16 %v1332
        %v1346 = vunpack.c.l.b16 %v1335
        %v1347 = vunpack.c.l.b16 %v1338
        %v1348 = vrot.slane %v1340, 3
        %v1349 = vrot.slane %v1341, 2
        %v1350 = vsel %vm615, %v1349, %v1348
        %v1351 = vrot.slane %v1342, 1
        %v1352 = vsel %vm618, %v1351, %v1350
        %v1353 = vsel %vm621, %v1343, %v1352
        %v1354 = vrot.slane %v1344, 7
        %v1355 = vsel %vm624, %v1354, %v1353
        %v1356 = vrot.slane %v1345, 6
        %v1357 = vsel %vm627, %v1356, %v1355
        %v1358 = vrot.slane %v1346, 5
        %v1359 = vsel %vm630, %v1358, %v1357
        %v1360 = vrot.slane %v1347, 4
        %v1361 = vsel %vm633, %v1360, %v1359
        %v1362 = vpack.c.b16 %v1361, %v1361
        %v1364 = vsel %vm692, %v1314, 0
        %v1367 = vsel %vm692, %v1362, 0
        %1369 = vmatpush.bf16.xpose.msra.mxu0 0
        %1370 = vmatpush.bf16.xpose.msra.mxu0 0
        %1371 = vmatpush.bf16.xpose.msra.mxu0 0
        %1372 = vmatpush.bf16.xpose.msra.mxu0 0
        %1373 = vmatpush.bf16.xpose.msra.mxu0 0
        %1374 = vmatpush.bf16.xpose.msra.mxu0 0
        %1375 = vmatpush.bf16.xpose.msra.mxu0 0
        %1376 = vmatpush.bf16.xpose.msra.mxu0 %v1367
        %1377 = vmatmul.bf16.gmra.mxu0 %v1364
        %v1378 = vpop.f32.mrf.mxu0
        %v1379 = vadd.f32 %v572, %v1378
        %v1380 = vpop.f32.mrf.mxu0
        %1381 = vdwg.mxu0
        %v1382 = vld [vmem:[#allocation2] sm:$0xff]
        %v1383 = vsel %vm692, %v1379, -inf
        %1384 = vmax.xlane.f32.xlu0 %v1383
        %v1385 = vpop.xlane.xlu0 %1384
        %v1386 = vmax.f32 %v1382, %v1385
        %v1387 = vsub.f32 %v1382, %v1386
        %v1388 = vmul.f32 %v1387, 1.442695
        %v1389 = vpow.pop %v1388
        %1391 = vset.pattern.permute.xlu0 3
        %1392 = vperm.xlu0 %1391, %v1386
        %v1393 = vpop.permute.xlu0 %1392
        %v1395 = vsub.f32 %v1379, %v1393
        %v1396 = vmul.f32 %v1395, 1.442695
        %v1397 = vpow.pop %v1396
        %v1398 = vld [vmem:[#allocation3] sm:$0xff]
        %v1399 = vmul.f32 %v1389, %v1398
        %v1400 = vsel %vm692, %v1397, 0.0
        %1401 = vadd.xlane.f32.xlu0 %v1400
        %v1402 = vpop.xlane.xlu0 %1401
        %v1403 = vadd.f32 %v1399, %v1402
        %vm1404 = vcmask 31768
        %1405 = vst.msk [vmem:[#allocation3] sm:$0xff] %vm1404, %v1403
        %v1406 = vpack.c.bf16 %v1397, %v1397
        %1407 = vst [vmem:[#allocation1] ss:$4 sm:$0xff] %v564
        %v1408 = vld.sshfl [vmem:[#allocation1] sm:$0xff pattern:$0x73625140]
        %s1410 = scalar_lea.vmem [#allocation1], 32
        %1411 = vst [vmem:[%s1410] ss:$4 sm:$0xff] %v565
        %v1412 = vld.sshfl [vmem:[#allocation1 + $0x20] sm:$0xff pattern:$0x73625140]
        %1414 = vst [vmem:[#allocation1] ss:$4 sm:$0xff] %v566
        %v1415 = vld.sshfl [vmem:[#allocation1] sm:$0xff pattern:$0x73625140]
        %1417 = vst [vmem:[%s1410] ss:$4 sm:$0xff] %v567
        %v1418 = vld.sshfl [vmem:[#allocation1 + $0x20] sm:$0xff pattern:$0x73625140]
        %1420 = vst [vmem:[#allocation1] ss:$4 sm:$0xff] %v568
        %v1421 = vld.sshfl [vmem:[#allocation1] sm:$0xff pattern:$0x73625140]
        %1423 = vst [vmem:[%s1410] ss:$4 sm:$0xff] %v569
        %v1424 = vld.sshfl [vmem:[#allocation1 + $0x20] sm:$0xff pattern:$0x73625140]
        %1426 = vst [vmem:[#allocation1] ss:$4 sm:$0xff] %v570
        %v1427 = vld.sshfl [vmem:[#allocation1] sm:$0xff pattern:$0x73625140]
        %1429 = vst [vmem:[%s1410] ss:$4 sm:$0xff] %v571
        %v1430 = vld.sshfl [vmem:[#allocation1 + $0x20] sm:$0xff pattern:$0x73625140]
        %v1432 = vunpack.c.l.b16 %v1408
        %v1433 = vunpack.c.l.b16 %v1412
        %v1434 = vunpack.c.l.b16 %v1415
        %v1435 = vunpack.c.l.b16 %v1418
        %v1436 = vunpack.c.l.b16 %v1421
        %v1437 = vunpack.c.l.b16 %v1424
        %v1438 = vunpack.c.l.b16 %v1427
        %v1439 = vunpack.c.l.b16 %v1430
        %v1440 = vrot.slane %v1432, 3
        %v1441 = vrot.slane %v1433, 2
        %v1442 = vsel %vm615, %v1441, %v1440
        %v1443 = vrot.slane %v1434, 1
        %v1444 = vsel %vm618, %v1443, %v1442
        %v1445 = vsel %vm621, %v1435, %v1444
        %v1446 = vrot.slane %v1436, 7
        %v1447 = vsel %vm624, %v1446, %v1445
        %v1448 = vrot.slane %v1437, 6
        %v1449 = vsel %vm627, %v1448, %v1447
        %v1450 = vrot.slane %v1438, 5
        %v1451 = vsel %vm630, %v1450, %v1449
        %v1452 = vrot.slane %v1439, 4
        %v1453 = vsel %vm633, %v1452, %v1451
        %v1454 = vpack.c.b16 %v1453, %v1453
        %v1456 = vsel %vm692, %v1406, 0
        %v1459 = vsel %vm796, %v1454, 0
        %1461 = vmatpush.bf16.msra.mxu0 0
        %1462 = vmatpush.bf16.msra.mxu0 0
        %1463 = vmatpush.bf16.msra.mxu0 0
        %1464 = vmatpush.bf16.msra.mxu0 0
        %1465 = vmatpush.bf16.msra.mxu0 0
        %1466 = vmatpush.bf16.msra.mxu0 0
        %1467 = vmatpush.bf16.msra.mxu0 0
        %1468 = vmatpush.bf16.msra.mxu0 %v1459
        %1469 = vmatmul.bf16.gmra.mxu0 %v1456
        %v1470 = vpop.f32.mrf.mxu0
        %v1471 = vadd.f32 0.0, %v1470
        %v1472 = vpop.f32.mrf.mxu0
        %1473 = vdwg.mxu0
        %v1474 = vld [vmem:[#allocation4] sm:$0xff]
        %1476 = vset.pattern.permute.xlu0 3
        %1477 = vperm.xlu0 %1476, %v1389
        %v1478 = vpop.permute.xlu0 %1477
        %v1480 = vmul.f32 %v1478, %v1474
        %1482 = vrot.lane.b32.xlu0 %v1471, 24
        %v1483 = vpop.permute.xlu0 %1482
        %v1485 = vadd.f32 %v1480, %v1483
        %vm1486 = vcmask 261312
        %1487 = vst.msk [vmem:[#allocation4] sm:$0xff] %vm1486, %v1485
        %1488 = vst.msk [vmem:[#allocation2] sm:$0xff] %vm1404, %v1386
        // Predicated region
        $region164: #{run.18} parent=146 // pred_check
          %p1489 = pneg %p539
        $region165: #{run.18} parent=146 // pred_check_branch
          %1491 = sbr.rel (%p1489) target = $region167
        $region166: #{run.18} parent=146 // pred_region
          %v1492 = vld [vmem:[#allocation3] sm:$0xff]
          %v1493 = vrcp.pop %v1492
          %v1494 = vmul.f32 %v1492, %v1493
          %v1495 = vsub.f32 1.0, %v1494
          %v1496 = vmul.f32 %v1493, %v1495
          %v1497 = vadd.f32 %v1493, %v1496
          %vm1498 = vweird.f32 %v1492
          %vm1499 = vweird.f32 %v1493
          %vm1500 = vmor %vm1498, %vm1499
          %v1501 = vsel %vm1500, %v1493, %v1497
          %v1502 = vand.u32 2147483647, %v1492
          %vm1503 = vcmp.eq.f32.partialorder %v1502, 8.507059e+37
          %v1504 = vand.u32 %v1492, 2147483648
          %v1505 = vor.u32 1.1754944e-38, %v1504
          %v1506 = vsel %vm1503, %v1505, %v1501
          %v1507 = vld [vmem:[#allocation4] sm:$0xff]
          %1509 = vset.pattern.permute.xlu0 0
          %1510 = vperm.xlu0 %1509, %v1506
          %v1511 = vpop.permute.xlu0 %1510
          %v1513 = vmul.f32 %v1507, %v1511
          %v1514 = vpack.c.bf16 %v1513, %v1513
          %vm1515 = vcmask 60416
          %1516 = vst.msk [vmem:[%s537] sm:$0xf] %vm1515, %v1514
          %v1517 = vld [vmem:[#allocation3] sm:$0xff]
          %v1518 = vrcp.pop %v1517
          %v1519 = vmul.f32 %v1517, %v1518
          %v1520 = vsub.f32 1.0, %v1519
          %v1521 = vmul.f32 %v1518, %v1520
          %v1522 = vadd.f32 %v1518, %v1521
          %vm1523 = vweird.f32 %v1517
          %vm1524 = vweird.f32 %v1518
          %vm1525 = vmor %vm1523, %vm1524
          %v1526 = vsel %vm1525, %v1518, %v1522
          %v1527 = vand.u32 2147483647, %v1517
          %vm1528 = vcmp.eq.f32.partialorder %v1527, 8.507059e+37
          %v1529 = vand.u32 %v1517, 2147483648
          %v1530 = vor.u32 1.1754944e-38, %v1529
          %v1531 = vsel %vm1528, %v1530, %v1526
          %v1532 = vld [vmem:[#allocation4] sm:$0xff]
          %1534 = vset.pattern.permute.xlu0 1
          %1535 = vperm.xlu0 %1534, %v1531
          %v1536 = vpop.permute.xlu0 %1535
          %v1538 = vmul.f32 %v1532, %v1536
          %v1539 = vpack.c.bf16 %v1538, %v1538
          %vm1540 = vcmask 126016
          %1541 = vst.msk [vmem:[%s537] sm:$0xf] %vm1540, %v1539
          %v1542 = vld [vmem:[#allocation3] sm:$0xff]
          %v1543 = vrcp.pop %v1542
          %v1544 = vmul.f32 %v1542, %v1543
          %v1545 = vsub.f32 1.0, %v1544
          %v1546 = vmul.f32 %v1543, %v1545
          %v1547 = vadd.f32 %v1543, %v1546
          %vm1548 = vweird.f32 %v1542
          %vm1549 = vweird.f32 %v1543
          %vm1550 = vmor %vm1548, %vm1549
          %v1551 = vsel %vm1550, %v1543, %v1547
          %v1552 = vand.u32 2147483647, %v1542
          %vm1553 = vcmp.eq.f32.partialorder %v1552, 8.507059e+37
          %v1554 = vand.u32 %v1542, 2147483648
          %v1555 = vor.u32 1.1754944e-38, %v1554
          %v1556 = vsel %vm1553, %v1555, %v1551
          %v1557 = vld [vmem:[#allocation4] sm:$0xff]
          %1559 = vset.pattern.permute.xlu0 2
          %1560 = vperm.xlu0 %1559, %v1556
          %v1561 = vpop.permute.xlu0 %1560
          %v1563 = vmul.f32 %v1557, %v1561
          %v1564 = vpack.c.bf16 %v1563, %v1563
          %vm1565 = vcmask 191616
          %1566 = vst.msk [vmem:[%s537] sm:$0xf] %vm1565, %v1564
          %v1567 = vld [vmem:[#allocation3] sm:$0xff]
          %v1568 = vrcp.pop %v1567
          %v1569 = vmul.f32 %v1567, %v1568
          %v1570 = vsub.f32 1.0, %v1569
          %v1571 = vmul.f32 %v1568, %v1570
          %v1572 = vadd.f32 %v1568, %v1571
          %vm1573 = vweird.f32 %v1567
          %vm1574 = vweird.f32 %v1568
          %vm1575 = vmor %vm1573, %vm1574
          %v1576 = vsel %vm1575, %v1568, %v1572
          %v1577 = vand.u32 2147483647, %v1567
          %vm1578 = vcmp.eq.f32.partialorder %v1577, 8.507059e+37
          %v1579 = vand.u32 %v1567, 2147483648
          %v1580 = vor.u32 1.1754944e-38, %v1579
          %v1581 = vsel %vm1578, %v1580, %v1576
          %v1582 = vld [vmem:[#allocation4] sm:$0xff]
          %1584 = vset.pattern.permute.xlu0 3
          %1585 = vperm.xlu0 %1584, %v1581
          %v1586 = vpop.permute.xlu0 %1585
          %v1588 = vmul.f32 %v1582, %v1586
          %v1589 = vpack.c.bf16 %v1588, %v1588
          %vm1590 = vcmask 257216
          %1591 = vst.msk [vmem:[%s537] sm:$0xf] %vm1590, %v1589
        $region167: #{run.18} parent=146 // pred_fallthru
          _
        %p1592 = scmp.lt.s32.totalorder %s20, 1
        %s1593 = scalar_select %p1592, %s20, 1
        %p1594 = scmp.lt.s32.totalorder %s21, 0
        %s1595 = scalar_select %p1594, %s21, 0
        %s1596 = sadd.s32 %s1595, %s1593
        %s1597 = smul.addr %s1596, 4
        %s1598 = scalar_lea.vmem %s4, %s1597
        // Predicated region
        $region168: #{run.18} parent=146 // pred_check
          %p1599 = pneg %p168
        $region169: #{run.18} parent=146 // pred_check_branch
          %1601 = sbr.rel (%p1599) target = $region171
        $region170: #{run.18} parent=146 // pred_region
          _
        $region171: #{run.18} parent=146 // pred_fallthru
          _
      $region147: #{run.18} parent=5 // pred_fallthru
        _
      %p1602 = scmp.le.s32.totalorder 2, %s10
      // Predicated region
      $region172: #{run.18} parent=5 // pred_check
        %p1603 = pneg %p1602
      $region173: #{run.18} parent=5 // pred_check_branch
        %1605 = sbr.rel (%p1603) target = $region175
      $region174: #{run.18} parent=5 // pred_region
        %s1606 = ssub.s32 %s10, 2
        // Predicated region
        $region176: #{run.18} parent=174 // pred_check
          %p1607 = pneg %p174
        $region177: #{run.18} parent=174 // pred_check_branch
          %1609 = sbr.rel (%p1607) target = $region179
        $region178: #{run.18} parent=174 // pred_region
          %p1610 = scmp.lt.s32.totalorder %s23, 1
          %s1611 = scalar_select %p1610, %s23, 1
          %p1612 = scmp.lt.s32.totalorder %s24, 0
          %s1613 = scalar_select %p1612, %s24, 0
          %s1614 = sadd.s32 %s1613, %s1611
          %s1615 = smul.addr %s1614, 4
          %s1616 = scalar_lea.vmem %s4, %s1615
        $region179: #{run.18} parent=174 // pred_fallthru
          _
      $region175: #{run.18} parent=5 // pred_fallthru
        _
    $region6: #{run.18} parent=1 // loop_footer
      %s14 = sadd.s32 1, %s10
    $region7: #{run.18} parent=1 // loop_footer_branch
      %9 = sbr.rel target = $region3
    $region8: #{run.18} parent=1 // loop_exit
      _

// kernel: run.33
$region0: #{run.33}
  #allocation0 [shape = 'u32[]', space=smem, size = 0x4, offset = 0x4, fixed_abs, tag = 'smem constant byte address 0x4 - core index']
  #allocation1 [shape = 'u32[72,128]{1,0:T(1,128)}', space=vmem, size = 0x9000, scoped, tag = 'internal scratch']
  %s0 = inlined_call_operand.vmem [shape: f32[16,32], index: 0, kind: input, shape index: {}]
  %s1 = inlined_call_operand.vmem [shape: f32[1,32], index: 1, kind: input, shape index: {}]
  %s2 = inlined_call_operand.vmem [shape: f32[1,32], index: 2, kind: input, shape index: {}]
  %s3 = inlined_call_operand.hbm [shape: f32[16,32], index: 3, kind: output, shape index: {}]
  %s4 = sld [smem:[#allocation0]]
  $region22: #{run.33} parent=0
    _
  %s6 = ssub.s32 1, %s4
  %s7 = scalar_select 0, %s6, %s4
  $region1: #{run.33} parent=0
    #allocation2 [shape = 'u8[8192]{0}', space=vmem, size = 0x2000, scoped, tag = 'output window, operand 0, single buffered']
    #allocation3 [shape = 's32[1]{0}', space=sflag, size = 0x4, scoped, tag = 'scoped memory for run.33']
    %8 = vsyncpa [#allocation3], 0
    // Predicated region
    $region2: #{run.33} parent=1 // pred_check
      _
    $region3: #{run.33} parent=1 // pred_check_branch
      %10 = sbr.rel (0) target = $region5
    $region4: #{run.33} parent=1 // pred_region
      _
    $region5: #{run.33} parent=1 // pred_fallthru
      _
    // Predicated region
    $region6: #{run.33} parent=1 // pred_check
      _
    $region7: #{run.33} parent=1 // pred_check_branch
      %12 = sbr.rel (0) target = $region9
    $region8: #{run.33} parent=1 // pred_region
      _
    $region9: #{run.33} parent=1 // pred_fallthru
      _
    // Predicated region
    $region10: #{run.33} parent=1 // pred_check
      _
    $region11: #{run.33} parent=1 // pred_check_branch
      %14 = sbr.rel (0) target = $region13
    $region12: #{run.33} parent=1 // pred_region
      _
    $region13: #{run.33} parent=1 // pred_fallthru
      _
    %v15 = vld [vmem:[%s0] sm:$0xff]
    %v16 = vld [vmem:[%s0 + $0x8] sm:$0xff]
    %vm17 = vcmask 261120
    %v18 = vsel %vm17, %v15, 0.0
    %19 = vadd.xlane.f32.xlu0 %v18
    %v20 = vpop.xlane.xlu0 %19
    %v21 = vsel %vm17, %v16, 0.0
    %22 = vadd.xlane.f32.xlu0 %v21
    %v23 = vpop.xlane.xlu0 %22
    %v24 = vrcp.pop 32.0
    %v25 = vmul.f32 32.0, %v24
    %v26 = vsub.f32 1.0, %v25
    %v27 = vmul.f32 %v24, %v26
    %v28 = vadd.f32 %v24, %v27
    %vm29 = vweird.f32 %v24
    %v30 = vsel %vm29, %v24, %v28
    %v31 = vmul.f32 %v20, %v30
    %v32 = vmul.f32 %v23, %v30
    %v33 = vsub.f32 %v15, %v31
    %v34 = vsub.f32 %v16, %v32
    %v35 = vmul.f32 %v33, %v33
    %v36 = vmul.f32 %v34, %v34
    %v37 = vsel %vm17, %v35, 0.0
    %38 = vadd.xlane.f32.xlu0 %v37
    %v39 = vpop.xlane.xlu0 %38
    %v40 = vsel %vm17, %v36, 0.0
    %41 = vadd.xlane.f32.xlu0 %v40
    %v42 = vpop.xlane.xlu0 %41
    %v43 = vrcp.pop 31.0
    %v44 = vmul.f32 31.0, %v43
    %v45 = vsub.f32 1.0, %v44
    %v46 = vmul.f32 %v43, %v45
    %v47 = vadd.f32 %v43, %v46
    %vm48 = vweird.f32 %v43
    %v49 = vsel %vm48, %v43, %v47
    %v50 = vmul.f32 %v39, %v49
    %v51 = vmul.f32 %v42, %v49
    %v52 = vrsqrt.pop %v50
    %v53 = vmul.f32 %v52, %v50
    %v54 = vmul.f32 %v53, %v52
    %v55 = vmul.f32 0.5, %v54
    %v56 = vsub.f32 1.5, %v55
    %v57 = vmul.f32 %v52, %v56
    %v58 = vmul.f32 %v50, %v57
    %vm59 = vcmp.eq.f32.partialorder %v50, inf
    %v60 = vsel %vm59, %v50, %v58
    %vm61 = vcmp.eq.f32.partialorder %v50, 0.0
    %v62 = vand.u32 %v50, 2147483648
    %v63 = vsel %vm61, %v62, %v60
    %v64 = vrsqrt.pop %v51
    %v65 = vmul.f32 %v64, %v51
    %v66 = vmul.f32 %v65, %v64
    %v67 = vmul.f32 0.5, %v66
    %v68 = vsub.f32 1.5, %v67
    %v69 = vmul.f32 %v64, %v68
    %v70 = vmul.f32 %v51, %v69
    %vm71 = vcmp.eq.f32.partialorder %v51, inf
    %v72 = vsel %vm71, %v51, %v70
    %vm73 = vcmp.eq.f32.partialorder %v51, 0.0
    %v74 = vand.u32 %v51, 2147483648
    %v75 = vsel %vm73, %v74, %v72
    %v76 = vadd.f32 %v63, 1e-06
    %v77 = vadd.f32 %v75, 1e-06
    %v78 = vrcp.pop %v76
    %v79 = vmul.f32 %v76, %v78
    %v80 = vsub.f32 1.0, %v79
    %v81 = vmul.f32 %v78, %v80
    %v82 = vadd.f32 %v78, %v81
    %vm83 = vweird.f32 %v76
    %vm84 = vweird.f32 %v78
    %vm85 = vmor %vm83, %vm84
    %v86 = vsel %vm85, %v78, %v82
    %v87 = vand.u32 2147483647, %v76
    %vm88 = vcmp.eq.f32.partialorder %v87, 8.507059e+37
    %v89 = vand.u32 %v76, 2147483648
    %v90 = vor.u32 1.1754944e-38, %v89
    %v91 = vsel %vm88, %v90, %v86
    %v92 = vrcp.pop %v77
    %v93 = vmul.f32 %v77, %v92
    %v94 = vsub.f32 1.0, %v93
    %v95 = vmul.f32 %v92, %v94
    %v96 = vadd.f32 %v92, %v95
    %vm97 = vweird.f32 %v77
    %vm98 = vweird.f32 %v92
    %vm99 = vmor %vm97, %vm98
    %v100 = vsel %vm99, %v92, %v96
    %v101 = vand.u32 2147483647, %v77
    %vm102 = vcmp.eq.f32.partialorder %v101, 8.507059e+37
    %v103 = vand.u32 %v77, 2147483648
    %v104 = vor.u32 1.1754944e-38, %v103
    %v105 = vsel %vm102, %v104, %v100
    %v106 = vld [vmem:[%s1] sm:$0x1]
    %v107 = vmul.f32 %v33, %v91
    %v108 = vmul.f32 %v34, %v105
    %v110 = vperm.slane %v106, 0
    %v112 = vmul.f32 %v110, %v107
    %v113 = vmul.f32 %v110, %v108
    %v114 = vld [vmem:[%s2] sm:$0x1]
    %v116 = vperm.slane %v114, 0
    %v118 = vadd.f32 %v112, %v116
    %v119 = vadd.f32 %v113, %v116
    %120 = vst.msk [vmem:[#allocation2] sm:$0xff] %vm17, %v118
    %121 = vst.msk [vmem:[#allocation2 + $0x8] sm:$0xff] %vm17, %v119
    // Predicated region
    $region14: #{run.33} parent=1 // pred_check
      _
    $region15: #{run.33} parent=1 // pred_check_branch
      %123 = sbr.rel (0) target = $region17
    $region16: #{run.33} parent=1 // pred_region
      %125 = vsyncadd [#allocation3], 0
      %s126 = sshll.u32 [#allocation2], 4
      %s127 = int_to_ptr.vmem [resolvable:$true] %s126
      %s128 = sshll.u32 %s3, 4
      %s129 = int_to_ptr.hbm [resolvable:$true] %s128
      %134 = dma.vmem_to_hbm [thread:$0]  %s127, 256, %s129, [#allocation3], 128, 128, 8
    $region17: #{run.33} parent=1 // pred_fallthru
      _
    // Predicated region
    $region18: #{run.33} parent=1 // pred_check
      _
    $region19: #{run.33} parent=1 // pred_check_branch
      %136 = sbr.rel (0) target = $region21
    $region20: #{run.33} parent=1 // pred_region
      %138 = dma.done [#allocation3], 256
    $region21: #{run.33} parent=1 // pred_fallthru
      _
    %139 = vsyncpa [#allocation3], 1

// kernel: run.24
$region0: #{run.24}
  #allocation0 [shape = 'u32[]', space=smem, size = 0x4, offset = 0x4, fixed_abs, tag = 'smem constant byte address 0x4 - core index']
  #allocation1 [shape = 'u32[72,128]{1,0:T(1,128)}', space=vmem, size = 0x9000, scoped, tag = 'internal scratch']
  %s0 = inlined_call_operand.vmem [shape: f32[16,32], index: 0, kind: input, shape index: {}]
  %s1 = inlined_call_operand.vmem [shape: f32[1,32], index: 1, kind: input, shape index: {}]
  %s2 = inlined_call_operand.vmem [shape: f32[1,32], index: 2, kind: input, shape index: {}]
  %s3 = inlined_call_operand.vmem [shape: bf16[32,64], index: 3, kind: input, shape index: {}]
  %s4 = inlined_call_operand.vmem [shape: f32[1,64], index: 4, kind: input, shape index: {}]
  %s5 = inlined_call_operand.vmem [shape: bf16[64,32], index: 5, kind: input, shape index: {}]
  %s6 = inlined_call_operand.vmem [shape: f32[1,32], index: 6, kind: input, shape index: {}]
  %s7 = inlined_call_operand.vmem [shape: f32[16,32], index: 7, kind: output, shape index: {}]
  %s8 = sld [smem:[#allocation0]]
  $region38: #{run.24} parent=0
    _
  %s10 = ssub.s32 1, %s8
  %s11 = scalar_select 0, %s10, %s8
  // Predicated region
  $region2: #{run.24} parent=0 // pred_check
    _
  $region3: #{run.24} parent=0 // pred_check_branch
    %13 = sbr.rel (0) target = $region5
  $region4: #{run.24} parent=0 // pred_region
    _
  $region5: #{run.24} parent=0 // pred_fallthru
    _
  // Predicated region
  $region6: #{run.24} parent=0 // pred_check
    _
  $region7: #{run.24} parent=0 // pred_check_branch
    %15 = sbr.rel (0) target = $region9
  $region8: #{run.24} parent=0 // pred_region
    _
  $region9: #{run.24} parent=0 // pred_fallthru
    _
  // Predicated region
  $region10: #{run.24} parent=0 // pred_check
    _
  $region11: #{run.24} parent=0 // pred_check_branch
    %17 = sbr.rel (0) target = $region13
  $region12: #{run.24} parent=0 // pred_region
    _
  $region13: #{run.24} parent=0 // pred_fallthru
    _
  // Predicated region
  $region14: #{run.24} parent=0 // pred_check
    _
  $region15: #{run.24} parent=0 // pred_check_branch
    %19 = sbr.rel (0) target = $region17
  $region16: #{run.24} parent=0 // pred_region
    _
  $region17: #{run.24} parent=0 // pred_fallthru
    _
  // Predicated region
  $region18: #{run.24} parent=0 // pred_check
    _
  $region19: #{run.24} parent=0 // pred_check_branch
    %21 = sbr.rel (0) target = $region21
  $region20: #{run.24} parent=0 // pred_region
    _
  $region21: #{run.24} parent=0 // pred_fallthru
    _
  // Predicated region
  $region22: #{run.24} parent=0 // pred_check
    _
  $region23: #{run.24} parent=0 // pred_check_branch
    %23 = sbr.rel (0) target = $region25
  $region24: #{run.24} parent=0 // pred_region
    _
  $region25: #{run.24} parent=0 // pred_fallthru
    _
  // Predicated region
  $region26: #{run.24} parent=0 // pred_check
    _
  $region27: #{run.24} parent=0 // pred_check_branch
    %25 = sbr.rel (0) target = $region29
  $region28: #{run.24} parent=0 // pred_region
    _
  $region29: #{run.24} parent=0 // pred_fallthru
    _
  %v27 = vld [vmem:[%s0] sm:$0xff]
  %v28 = vld [vmem:[%s0 + $0x8] sm:$0xff]
  %vm29 = vcmask 261120
  %v30 = vsel %vm29, %v27, 0.0
  %31 = vadd.xlane.f32.xlu0 %v30
  %v32 = vpop.xlane.xlu0 %31
  %v33 = vsel %vm29, %v28, 0.0
  %34 = vadd.xlane.f32.xlu0 %v33
  %v35 = vpop.xlane.xlu0 %34
  %v36 = vrcp.pop 32.0
  %v37 = vmul.f32 32.0, %v36
  %v38 = vsub.f32 1.0, %v37
  %v39 = vmul.f32 %v36, %v38
  %v40 = vadd.f32 %v36, %v39
  %vm41 = vweird.f32 %v36
  %v42 = vsel %vm41, %v36, %v40
  %v43 = vmul.f32 %v32, %v42
  %v44 = vmul.f32 %v35, %v42
  %v45 = vsub.f32 %v27, %v43
  %v46 = vsub.f32 %v28, %v44
  %v47 = vmul.f32 %v45, %v45
  %v48 = vmul.f32 %v46, %v46
  %v49 = vsel %vm29, %v47, 0.0
  %50 = vadd.xlane.f32.xlu0 %v49
  %v51 = vpop.xlane.xlu0 %50
  %v52 = vsel %vm29, %v48, 0.0
  %53 = vadd.xlane.f32.xlu0 %v52
  %v54 = vpop.xlane.xlu0 %53
  %v55 = vrcp.pop 31.0
  %v56 = vmul.f32 31.0, %v55
  %v57 = vsub.f32 1.0, %v56
  %v58 = vmul.f32 %v55, %v57
  %v59 = vadd.f32 %v55, %v58
  %vm60 = vweird.f32 %v55
  %v61 = vsel %vm60, %v55, %v59
  %v62 = vmul.f32 %v51, %v61
  %v63 = vmul.f32 %v54, %v61
  %v64 = vrsqrt.pop %v62
  %v65 = vmul.f32 %v64, %v62
  %v66 = vmul.f32 %v65, %v64
  %v67 = vmul.f32 0.5, %v66
  %v68 = vsub.f32 1.5, %v67
  %v69 = vmul.f32 %v64, %v68
  %v70 = vmul.f32 %v62, %v69
  %vm71 = vcmp.eq.f32.partialorder %v62, inf
  %v72 = vsel %vm71, %v62, %v70
  %vm73 = vcmp.eq.f32.partialorder %v62, 0.0
  %v74 = vand.u32 %v62, 2147483648
  %v75 = vsel %vm73, %v74, %v72
  %v76 = vrsqrt.pop %v63
  %v77 = vmul.f32 %v76, %v63
  %v78 = vmul.f32 %v77, %v76
  %v79 = vmul.f32 0.5, %v78
  %v80 = vsub.f32 1.5, %v79
  %v81 = vmul.f32 %v76, %v80
  %v82 = vmul.f32 %v63, %v81
  %vm83 = vcmp.eq.f32.partialorder %v63, inf
  %v84 = vsel %vm83, %v63, %v82
  %vm85 = vcmp.eq.f32.partialorder %v63, 0.0
  %v86 = vand.u32 %v63, 2147483648
  %v87 = vsel %vm85, %v86, %v84
  %v88 = vadd.f32 %v75, 1e-06
  %v89 = vadd.f32 %v87, 1e-06
  %v90 = vrcp.pop %v88
  %v91 = vmul.f32 %v88, %v90
  %v92 = vsub.f32 1.0, %v91
  %v93 = vmul.f32 %v90, %v92
  %v94 = vadd.f32 %v90, %v93
  %vm95 = vweird.f32 %v88
  %vm96 = vweird.f32 %v90
  %vm97 = vmor %vm95, %vm96
  %v98 = vsel %vm97, %v90, %v94
  %v99 = vand.u32 2147483647, %v88
  %vm100 = vcmp.eq.f32.partialorder %v99, 8.507059e+37
  %v101 = vand.u32 %v88, 2147483648
  %v102 = vor.u32 1.1754944e-38, %v101
  %v103 = vsel %vm100, %v102, %v98
  %v104 = vrcp.pop %v89
  %v105 = vmul.f32 %v89, %v104
  %v106 = vsub.f32 1.0, %v105
  %v107 = vmul.f32 %v104, %v106
  %v108 = vadd.f32 %v104, %v107
  %vm109 = vweird.f32 %v89
  %vm110 = vweird.f32 %v104
  %vm111 = vmor %vm109, %vm110
  %v112 = vsel %vm111, %v104, %v108
  %v113 = vand.u32 2147483647, %v89
  %vm114 = vcmp.eq.f32.partialorder %v113, 8.507059e+37
  %v115 = vand.u32 %v89, 2147483648
  %v116 = vor.u32 1.1754944e-38, %v115
  %v117 = vsel %vm114, %v116, %v112
  %v118 = vld [vmem:[%s1] sm:$0x1]
  %v119 = vmul.f32 %v45, %v103
  %v120 = vmul.f32 %v46, %v117
  %v122 = vperm.slane %v118, 0
  %v124 = vmul.f32 %v122, %v119
  %v125 = vmul.f32 %v122, %v120
  %v126 = vld [vmem:[%s2] sm:$0x1]
  %v128 = vperm.slane %v126, 0
  %v130 = vadd.f32 %v124, %v128
  %v131 = vadd.f32 %v125, %v128
  %v132 = vpack.c.bf16 %v131, %v130
  %v133 = vld [vmem:[%s3] sm:$0xf]
  %v134 = vld [vmem:[%s3 + $0x4] sm:$0xf]
  %v135 = vld [vmem:[%s3 + $0x8] sm:$0xf]
  %v136 = vld [vmem:[%s3 + $0xc] sm:$0xf]
  %v137 = vld [vmem:[%s4] sm:$0x1]
  %v139 = vperm.slane %v137, 0
  %v145 = vunpack.c.l.b16 %v133
  %v146 = vunpack.c.l.b16 %v134
  %v147 = vunpack.c.l.b16 %v135
  %v148 = vunpack.c.l.b16 %v136
  %v149 = vpack.c.b16 %v146, %v145
  %v150 = vpack.c.b16 %v148, %v147
  %v154 = vsel %vm29, %v132, 0
  %156 = vmatpush.bf16.msra.mxu0 0
  %157 = vmatpush.bf16.msra.mxu0 0
  %158 = vmatpush.bf16.msra.mxu0 0
  %159 = vmatpush.bf16.msra.mxu0 0
  %160 = vmatpush.bf16.msra.mxu0 0
  %161 = vmatpush.bf16.msra.mxu0 0
  %162 = vmatpush.bf16.msra.mxu0 %v150
  %163 = vmatpush.bf16.msra.mxu0 %v149
  %164 = vmatmul.bf16.gmra.mxu0 %v154
  %v165 = vpop.f32.mrf.mxu0
  %v166 = vadd.f32 %v139, %v165
  %v167 = vpop.f32.mrf.mxu0
  %v168 = vadd.f32 %v139, %v167
  %169 = vdwg.mxu0
  %v170 = vmax.f32 %v166, 0.0
  %v171 = vmax.f32 %v168, 0.0
  %v172 = vpack.c.bf16 %v171, %v170
  %v173 = vld [vmem:[%s5] sm:$0xf]
  %v174 = vld [vmem:[%s5 + $0x4] sm:$0xf]
  %v175 = vld [vmem:[%s5 + $0x8] sm:$0xf]
  %v176 = vld [vmem:[%s5 + $0xc] sm:$0xf]
  %v177 = vld [vmem:[%s5 + $0x10] sm:$0xf]
  %v178 = vld [vmem:[%s5 + $0x14] sm:$0xf]
  %v179 = vld [vmem:[%s5 + $0x18] sm:$0xf]
  %v180 = vld [vmem:[%s5 + $0x1c] sm:$0xf]
  %v181 = vld [vmem:[%s6] sm:$0x1]
  %v183 = vperm.slane %v181, 0
  %v193 = vunpack.c.l.b16 %v173
  %v194 = vunpack.c.l.b16 %v174
  %v195 = vunpack.c.l.b16 %v175
  %v196 = vunpack.c.l.b16 %v176
  %v197 = vunpack.c.l.b16 %v177
  %v198 = vunpack.c.l.b16 %v178
  %v199 = vunpack.c.l.b16 %v179
  %v200 = vunpack.c.l.b16 %v180
  %v201 = vpack.c.b16 %v194, %v193
  %v202 = vpack.c.b16 %v196, %v195
  %v203 = vpack.c.b16 %v198, %v197
  %v204 = vpack.c.b16 %v200, %v199
  %vm209 = vcmask 523264
  %v211 = vsel %vm209, %v172, 0
  %213 = vmatpush.bf16.msra.mxu0 0
  %214 = vmatpush.bf16.msra.mxu0 0
  %215 = vmatpush.bf16.msra.mxu0 0
  %216 = vmatpush.bf16.msra.mxu0 0
  %217 = vmatpush.bf16.msra.mxu0 %v204
  %218 = vmatpush.bf16.msra.mxu0 %v203
  %219 = vmatpush.bf16.msra.mxu0 %v202
  %220 = vmatpush.bf16.msra.mxu0 %v201
  %221 = vmatmul.bf16.gmra.mxu0 %v211
  %v222 = vpop.f32.mrf.mxu0
  %v223 = vadd.f32 %v183, %v222
  %v224 = vpop.f32.mrf.mxu0
  %v225 = vadd.f32 %v183, %v224
  %226 = vdwg.mxu0
  %v227 = vadd.f32 %v27, %v223
  %v228 = vadd.f32 %v28, %v225
  %229 = vst.msk [vmem:[%s7] sm:$0xff] %vm29, %v227
  %230 = vst.msk [vmem:[%s7 + $0x8] sm:$0xff] %vm29, %v228
  // Predicated region
  $region30: #{run.24} parent=0 // pred_check
    _
  $region31: #{run.24} parent=0 // pred_check_branch
    %232 = sbr.rel (0) target = $region33
  $region32: #{run.24} parent=0 // pred_region
    _
  $region33: #{run.24} parent=0 // pred_fallthru
    _
  // Predicated region
  $region34: #{run.24} parent=0 // pred_check
    _
  $region35: #{run.24} parent=0 // pred_check_branch
    %234 = sbr.rel (0) target = $region37
  $region36: #{run.24} parent=0 // pred_region
    _
  $region37: #{run.24} parent=0 // pred_fallthru
    _

// kernel: run.22
$region0: #{run.22}
  #allocation0 [shape = 'u32[]', space=smem, size = 0x4, offset = 0x4, fixed_abs, tag = 'smem constant byte address 0x4 - core index']
  #allocation1 [shape = 'u32[72,128]{1,0:T(1,128)}', space=vmem, size = 0x9000, scoped, tag = 'internal scratch']
  #allocation2 [shape = 'f32[8,4]{1,0:T(8,128)}', space=vmem, size = 0x1000, scoped, tag = 'scratch operand']
  #allocation3 [shape = 'f32[8,4]{1,0:T(8,128)}', space=vmem, size = 0x1000, scoped, tag = 'scratch operand']
  #allocation4 [shape = 'f32[8,32]{1,0:T(8,128)}', space=vmem, size = 0x1000, scoped, tag = 'scratch operand']
  %s0 = inlined_call_operand.vmem [shape: bf16[2,8,1,4,8], index: 0, kind: input, shape index: {}]
  %s1 = inlined_call_operand.vmem [shape: bf16[2,8,2,4,8], index: 1, kind: input, shape index: {}, may-alias: {1,2}]
  %s2 = inlined_call_operand.vmem [shape: bf16[2,8,2,4,8], index: 2, kind: input, shape index: {}, may-alias: {1,2}]
  %s3 = inlined_call_operand.vmem [shape: f32[2,1,8], index: 3, kind: input, shape index: {}]
  %s4 = inlined_call_operand.vmem [shape: bf16[2,8,32], index: 4, kind: output, shape index: {}]
  %s5 = sld [smem:[#allocation0]]
  $region139: #{run.22} parent=0
    _
  %s7 = ssub.s32 1, %s5
  %s8 = scalar_select 0, %s7, %s5
  $region1: #{run.22} parent=0
    #allocation5 [shape = 'u8[16384]{0}', space=vmem, size = 0x4000, scoped, tag = 'input window, operand 1']
    #allocation6 [shape = 'u8[16384]{0}', space=vmem, size = 0x4000, scoped, tag = 'input window, operand 2']
    loop: start=0, step=1, limit=4
    $region2: #{run.22} parent=1 // loop_pre_header
      _
    $region3: #{run.22} parent=1 // loop_header
      %s10 = sphi 0, %s14
      %p11 = scmp.ge.s32.totalorder %s10, 4
      %s17 = sphi 0, %s36
      %s18 = sphi 0, %s32
      %s19 = sphi 0, %s28
      %s20 = sphi 0, %s17
      %s21 = sphi 0, %s18
      %s22 = sphi 0, %s19
      %s23 = sphi 0, %s20
      %s24 = sphi 0, %s21
      %s25 = sphi 0, %s22
      %s41 = sphi 0, %s43
      %s44 = sphi 0, %s41
      %s45 = sphi 0, %s44
      %s61 = sphi 0, %s45
      %s69 = sphi 0, %s71
      %s72 = sphi 0, %s69
      %s73 = sphi 0, %s72
      %s89 = sphi 0, %s73
      %s97 = sphi 0, %s99
      %s100 = sphi 0, %s97
      %s101 = sphi 0, %s100
      %s117 = sphi 0, %s101
      %s125 = sphi 0, %s127
      %s128 = sphi 0, %s125
      %s129 = sphi 0, %s128
      %s145 = sphi 0, %s129
      %s153 = sphi 0, %s155
      %s156 = sphi 0, %s153
      %s157 = sphi 0, %s156
      %s173 = sphi 0, %s157
    $region4: #{run.22} parent=1 // loop_header_branch
      %13 = sbr.rel (%p11) target = $region8
    $region5: #{run.22} parent=1 // loop_body
      %s15 = ssub.s32 %s10, 1
      %s16 = ssub.s32 %s10, 2
      %s26 = sadd.s32 1, %s19
      %p27 = scmp.ge.s32.totalorder %s26, 1
      %s28 = scalar_select %p27, 0, %s26
      %s29 = sadd.s32 1, %s18
      %s30 = scalar_select %p27, %s29, %s18
      %p31 = scmp.ge.s32.totalorder %s30, 1
      %s32 = scalar_select %p31, 0, %s30
      %s33 = sadd.s32 1, %s17
      %s34 = scalar_select %p31, %s33, %s17
      %p35 = scmp.ge.s32.totalorder %s34, 2
      %s36 = scalar_select %p35, 0, %s34
      %s37 = ssub.s32 %s17, %s36
      %s38 = ssub.s32 %s18, %s32
      %s39 = sor.u32 %s37, %s38
      %p40 = scmp.eq.s32.totalorder %s39, 0
      %s42 = sadd.s32 %s41, 1
      %s43 = scalar_select %p40, %s41, %s42
      %p46 = pneg %p40
      %p47 = scmp.eq.s32.totalorder %s10, 1
      %p48 = por %p46, %p47
      %p49 = scmp.ne.s32.totalorder %s41, %s44
      %p50 = scmp.eq.s32.totalorder %s10, 0
      %p51 = por %p49, %p50
      %p52 = scmp.ne.s32.totalorder %s41, %s44
      %p53 = scmp.eq.s32.totalorder %s15, 1
      %p54 = por %p52, %p53
      %p55 = scmp.ne.s32.totalorder %s44, %s45
      %p56 = scmp.eq.s32.totalorder %s15, 0
      %p57 = por %p55, %p56
      %p58 = scmp.ne.s32.totalorder %s44, %s45
      %p59 = scmp.eq.s32.totalorder %s16, 1
      %p60 = por %p58, %p59
      %p62 = scmp.ne.s32.totalorder %s45, %s61
      %p63 = scmp.eq.s32.totalorder %s16, 0
      %p64 = por %p62, %p63
      %s65 = ssub.s32 %s17, %s36
      %s66 = ssub.s32 %s19, %s28
      %s67 = sor.u32 %s65, %s66
      %p68 = scmp.eq.s32.totalorder %s67, 0
      %s70 = sadd.s32 %s69, 1
      %s71 = scalar_select %p68, %s69, %s70
      %p74 = pneg %p68
      %p75 = scmp.eq.s32.totalorder %s10, 1
      %p76 = por %p74, %p75
      %p77 = scmp.ne.s32.totalorder %s69, %s72
      %p78 = scmp.eq.s32.totalorder %s10, 0
      %p79 = por %p77, %p78
      %p80 = scmp.ne.s32.totalorder %s69, %s72
      %p81 = scmp.eq.s32.totalorder %s15, 1
      %p82 = por %p80, %p81
      %p83 = scmp.ne.s32.totalorder %s72, %s73
      %p84 = scmp.eq.s32.totalorder %s15, 0
      %p85 = por %p83, %p84
      %p86 = scmp.ne.s32.totalorder %s72, %s73
      %p87 = scmp.eq.s32.totalorder %s16, 1
      %p88 = por %p86, %p87
      %p90 = scmp.ne.s32.totalorder %s73, %s89
      %p91 = scmp.eq.s32.totalorder %s16, 0
      %p92 = por %p90, %p91
      %s93 = ssub.s32 %s17, %s36
      %s94 = ssub.s32 %s19, %s28
      %s95 = sor.u32 %s93, %s94
      %p96 = scmp.eq.s32.totalorder %s95, 0
      %s98 = sadd.s32 %s97, 1
      %s99 = scalar_select %p96, %s97, %s98
      %p102 = pneg %p96
      %p103 = scmp.eq.s32.totalorder %s10, 1
      %p104 = por %p102, %p103
      %p105 = scmp.ne.s32.totalorder %s97, %s100
      %p106 = scmp.eq.s32.totalorder %s10, 0
      %p107 = por %p105, %p106
      %p108 = scmp.ne.s32.totalorder %s97, %s100
      %p109 = scmp.eq.s32.totalorder %s15, 1
      %p110 = por %p108, %p109
      %p111 = scmp.ne.s32.totalorder %s100, %s101
      %p112 = scmp.eq.s32.totalorder %s15, 0
      %p113 = por %p111, %p112
      %p114 = scmp.ne.s32.totalorder %s100, %s101
      %p115 = scmp.eq.s32.totalorder %s16, 1
      %p116 = por %p114, %p115
      %p118 = scmp.ne.s32.totalorder %s101, %s117
      %p119 = scmp.eq.s32.totalorder %s16, 0
      %p120 = por %p118, %p119
      %s121 = ssub.s32 %s17, %s36
      %s122 = ssub.s32 %s19, %s28
      %s123 = sor.u32 %s121, %s122
      %p124 = scmp.eq.s32.totalorder %s123, 0
      %s126 = sadd.s32 %s125, 1
      %s127 = scalar_select %p124, %s125, %s126
      %p130 = pneg %p124
      %p131 = scmp.eq.s32.totalorder %s10, 1
      %p132 = por %p130, %p131
      %p133 = scmp.ne.s32.totalorder %s125, %s128
      %p134 = scmp.eq.s32.totalorder %s10, 0
      %p135 = por %p133, %p134
      %p136 = scmp.ne.s32.totalorder %s125, %s128
      %p137 = scmp.eq.s32.totalorder %s15, 1
      %p138 = por %p136, %p137
      %p139 = scmp.ne.s32.totalorder %s128, %s129
      %p140 = scmp.eq.s32.totalorder %s15, 0
      %p141 = por %p139, %p140
      %p142 = scmp.ne.s32.totalorder %s128, %s129
      %p143 = scmp.eq.s32.totalorder %s16, 1
      %p144 = por %p142, %p143
      %p146 = scmp.ne.s32.totalorder %s129, %s145
      %p147 = scmp.eq.s32.totalorder %s16, 0
      %p148 = por %p146, %p147
      %s149 = ssub.s32 %s17, %s36
      %s150 = ssub.s32 %s18, %s32
      %s151 = sor.u32 %s149, %s150
      %p152 = scmp.eq.s32.totalorder %s151, 0
      %s154 = sadd.s32 %s153, 1
      %s155 = scalar_select %p152, %s153, %s154
      %p158 = pneg %p152
      %p159 = scmp.eq.s32.totalorder %s10, 1
      %p160 = por %p158, %p159
      %p161 = scmp.ne.s32.totalorder %s153, %s156
      %p162 = scmp.eq.s32.totalorder %s10, 0
      %p163 = por %p161, %p162
      %p164 = scmp.ne.s32.totalorder %s153, %s156
      %p165 = scmp.eq.s32.totalorder %s15, 1
      %p166 = por %p164, %p165
      %p167 = scmp.ne.s32.totalorder %s156, %s157
      %p168 = scmp.eq.s32.totalorder %s15, 0
      %p169 = por %p167, %p168
      %p170 = scmp.ne.s32.totalorder %s156, %s157
      %p171 = scmp.eq.s32.totalorder %s16, 1
      %p172 = por %p170, %p171
      %p174 = scmp.ne.s32.totalorder %s157, %s173
      %p175 = scmp.eq.s32.totalorder %s16, 0
      %p176 = por %p174, %p175
      %p177 = scmp.le.s32.totalorder 1, %s10
      %p178 = scmp.lt.s32.totalorder %s10, 3
      %p179 = pnand %p177, %p178
      %p180 = pneg %p179
      // Predicated region
      $region9: #{run.22} parent=5 // pred_check
        _
      $region10: #{run.22} parent=5 // pred_check_branch
        %182 = sbr.rel (%p179) target = $region12
      $region11: #{run.22} parent=5 // pred_region
        %s183 = ssub.s32 %s10, 1
      $region12: #{run.22} parent=5 // pred_fallthru
        _
      %p184 = scmp.lt.s32.totalorder %s10, 2
      // Predicated region
      $region13: #{run.22} parent=5 // pred_check
        %p185 = pneg %p184
      $region14: #{run.22} parent=5 // pred_check_branch
        %187 = sbr.rel (%p185) target = $region16
      $region15: #{run.22} parent=5 // pred_region
        // Predicated region
        $region17: #{run.22} parent=15 // pred_check
          %p188 = pneg %p51
        $region18: #{run.22} parent=15 // pred_check_branch
          %190 = sbr.rel (%p188) target = $region20
        $region19: #{run.22} parent=15 // pred_region
          %s191 = smul.u32 8, %s18
          %p192 = scmp.lt.s32.totalorder %s17, 1
          %s193 = scalar_select %p192, %s17, 1
          %p194 = scmp.lt.s32.totalorder %s191, 7
          %s195 = scalar_select %p194, %s191, 7
          %s196 = smul.addr %s193, 8
          %s197 = sadd.s32 %s195, %s196
          %s198 = smul.addr %s197, 2
          %s199 = scalar_lea.vmem %s0, %s198
          %s200 = smul.u32 8, %s18
        $region20: #{run.22} parent=15 // pred_fallthru
          _
        // Predicated region
        $region21: #{run.22} parent=15 // pred_check
          %p201 = pneg %p79
        $region22: #{run.22} parent=15 // pred_check_branch
          %203 = sbr.rel (%p201) target = $region24
        $region23: #{run.22} parent=15 // pred_region
          %s204 = sand.u32 %s69, 1
          %s205 = sand.u32 %s69, 1
          %s206 = smul.addr %s205, 16
          %s207 = scalar_lea.vmem [#allocation5], %s206
          %s208 = smul.u32 8, %s19
          %s209 = smul.addr %s208, 2
          %s210 = smul.addr %s17, 16
          %s211 = sadd.s32 %s209, %s210
          %s212 = smul.addr %s211, 2
          %s213 = scalar_lea.vmem %s1, %s212
          // Predicated region
          $region25: #{run.22} parent=23 // pred_check
            _
          $region26: #{run.22} parent=23 // pred_check_branch
            %215 = sbr.rel (0) target = $region28
          $region27: #{run.22} parent=23 // pred_region
            // Predicated region
            $region29: #{run.22} parent=27 // pred_check
              _
            $region30: #{run.22} parent=27 // pred_check_branch
              %217 = sbr.rel target = $region32
            $region31: #{run.22} parent=27 // pred_region
              // Predicated region
              $region44: #{run.22} parent=31 // pred_check
                _
              $region45: #{run.22} parent=31 // pred_check_branch
                %247 = sbr.rel (0) target = $region47
              $region46: #{run.22} parent=31 // pred_region
                loop: start=0, step=1, limit=1
                $region48: #{run.22} parent=46 // loop_pre_header
                  _
                $region49: #{run.22} parent=46 // loop_header
                  %s249 = sphi 0, %s253
                  %p250 = scmp.ge.s32.totalorder %s249, 1
                  %s254 = sphi %s213, %s213
                  %s255 = sphi %s207, %s207
                $region50: #{run.22} parent=46 // loop_header_branch
                  %252 = sbr.rel (%p250) target = $region54
                $region51: #{run.22} parent=46 // loop_body
                  _
                $region52: #{run.22} parent=46 // loop_footer
                  %s253 = sadd.s32 1, %s249
                $region53: #{run.22} parent=46 // loop_footer_branch
                  %248 = sbr.rel target = $region49
                $region54: #{run.22} parent=46 // loop_exit
                  _
                %s257 = ssub.s32 4, 1
                loop: start=0, step=1, limit=1
                $region55: #{run.22} parent=46 // loop_pre_header
                  _
                $region56: #{run.22} parent=46 // loop_header
                  %s259 = sphi 0, %s263
                  %p260 = scmp.ge.s32.totalorder %s259, 1
                  %s264 = sphi %s213, %s213
                  %s265 = sphi %s207, %s207
                $region57: #{run.22} parent=46 // loop_header_branch
                  %262 = sbr.rel (%p260) target = $region61
                $region58: #{run.22} parent=46 // loop_body
                  %v266 = vld [vmem:[%s264] sm:%s257]
                  %267 = vst [vmem:[%s265] sm:%s257] %v266
                  %v268 = vld [vmem:[%s264 + $0x4] sm:%s257]
                  %269 = vst [vmem:[%s265 + $0x2] sm:%s257] %v268
                  %v270 = vld [vmem:[%s264 + $0x8] sm:%s257]
                  %271 = vst [vmem:[%s265 + $0x4] sm:%s257] %v270
                  %v272 = vld [vmem:[%s264 + $0xc] sm:%s257]
                  %273 = vst [vmem:[%s265 + $0x6] sm:%s257] %v272
                  %v274 = vld [vmem:[%s264 + $0x10] sm:%s257]
                  %275 = vst [vmem:[%s265 + $0x8] sm:%s257] %v274
                  %v276 = vld [vmem:[%s264 + $0x14] sm:%s257]
                  %277 = vst [vmem:[%s265 + $0xa] sm:%s257] %v276
                  %v278 = vld [vmem:[%s264 + $0x18] sm:%s257]
                  %279 = vst [vmem:[%s265 + $0xc] sm:%s257] %v278
                  %v280 = vld [vmem:[%s264 + $0x1c] sm:%s257]
                  %281 = vst [vmem:[%s265 + $0xe] sm:%s257] %v280
                $region59: #{run.22} parent=46 // loop_footer
                  %s263 = sadd.s32 1, %s259
                $region60: #{run.22} parent=46 // loop_footer_branch
                  %258 = sbr.rel target = $region56
                $region61: #{run.22} parent=46 // loop_exit
                  _
              $region47: #{run.22} parent=31 // pred_fallthru
                _
            $region32: #{run.22} parent=27 // pred_fallthru
              _
            // Predicated region
            $region33: #{run.22} parent=27 // pred_check
              _
            $region34: #{run.22} parent=27 // pred_check_branch
              %219 = sbr.rel (0) target = $region36
            $region35: #{run.22} parent=27 // pred_region
              %s221 = ssub.s32 4, 1
              loop: start=0, step=1, limit=1
              $region37: #{run.22} parent=35 // loop_pre_header
                _
              $region38: #{run.22} parent=35 // loop_header
                %s223 = sphi 0, %s227
                %p224 = scmp.ge.s32.totalorder %s223, 1
                %s228 = sphi %s213, %s213
                %s229 = sphi %s207, %s207
              $region39: #{run.22} parent=35 // loop_header_branch
                %226 = sbr.rel (%p224) target = $region43
              $region40: #{run.22} parent=35 // loop_body
                %v230 = vld [vmem:[%s228] sm:%s221]
                %231 = vst [vmem:[%s229] sm:%s221] %v230
                %v232 = vld [vmem:[%s228 + $0x4] sm:%s221]
                %233 = vst [vmem:[%s229 + $0x2] sm:%s221] %v232
                %v234 = vld [vmem:[%s228 + $0x8] sm:%s221]
                %235 = vst [vmem:[%s229 + $0x4] sm:%s221] %v234
                %v236 = vld [vmem:[%s228 + $0xc] sm:%s221]
                %237 = vst [vmem:[%s229 + $0x6] sm:%s221] %v236
                %v238 = vld [vmem:[%s228 + $0x10] sm:%s221]
                %239 = vst [vmem:[%s229 + $0x8] sm:%s221] %v238
                %v240 = vld [vmem:[%s228 + $0x14] sm:%s221]
                %241 = vst [vmem:[%s229 + $0xa] sm:%s221] %v240
                %v242 = vld [vmem:[%s228 + $0x18] sm:%s221]
                %243 = vst [vmem:[%s229 + $0xc] sm:%s221] %v242
                %v244 = vld [vmem:[%s228 + $0x1c] sm:%s221]
                %245 = vst [vmem:[%s229 + $0xe] sm:%s221] %v244
              $region41: #{run.22} parent=35 // loop_footer
                %s227 = sadd.s32 1, %s223
              $region42: #{run.22} parent=35 // loop_footer_branch
                %222 = sbr.rel target = $region38
              $region43: #{run.22} parent=35 // loop_exit
                _
            $region36: #{run.22} parent=27 // pred_fallthru
              _
          $region28: #{run.22} parent=23 // pred_fallthru
            _
          %282 = vnop
        $region24: #{run.22} parent=15 // pred_fallthru
          _
        // Predicated region
        $region62: #{run.22} parent=15 // pred_check
          %p283 = pneg %p107
        $region63: #{run.22} parent=15 // pred_check_branch
          %285 = sbr.rel (%p283) target = $region65
        $region64: #{run.22} parent=15 // pred_region
          %s286 = sand.u32 %s97, 1
          %s287 = sand.u32 %s97, 1
          %s288 = smul.addr %s287, 16
          %s289 = scalar_lea.vmem [#allocation6], %s288
          %s290 = smul.u32 8, %s19
          %s291 = smul.addr %s290, 2
          %s292 = sadd.s32 1, %s291
          %s293 = smul.addr %s17, 16
          %s294 = sadd.s32 %s292, %s293
          %s295 = smul.addr %s294, 2
          %s296 = scalar_lea.vmem %s2, %s295
          // Predicated region
          $region66: #{run.22} parent=64 // pred_check
            _
          $region67: #{run.22} parent=64 // pred_check_branch
            %298 = sbr.rel (0) target = $region69
          $region68: #{run.22} parent=64 // pred_region
            // Predicated region
            $region70: #{run.22} parent=68 // pred_check
              _
            $region71: #{run.22} parent=68 // pred_check_branch
              %300 = sbr.rel target = $region73
            $region72: #{run.22} parent=68 // pred_region
              // Predicated region
              $region85: #{run.22} parent=72 // pred_check
                _
              $region86: #{run.22} parent=72 // pred_check_branch
                %330 = sbr.rel (0) target = $region88
              $region87: #{run.22} parent=72 // pred_region
                loop: start=0, step=1, limit=1
                $region89: #{run.22} parent=87 // loop_pre_header
                  _
                $region90: #{run.22} parent=87 // loop_header
                  %s332 = sphi 0, %s336
                  %p333 = scmp.ge.s32.totalorder %s332, 1
                  %s337 = sphi %s296, %s296
                  %s338 = sphi %s289, %s289
                $region91: #{run.22} parent=87 // loop_header_branch
                  %335 = sbr.rel (%p333) target = $region95
                $region92: #{run.22} parent=87 // loop_body
                  _
                $region93: #{run.22} parent=87 // loop_footer
                  %s336 = sadd.s32 1, %s332
                $region94: #{run.22} parent=87 // loop_footer_branch
                  %331 = sbr.rel target = $region90
                $region95: #{run.22} parent=87 // loop_exit
                  _
                %s340 = ssub.s32 4, 1
                loop: start=0, step=1, limit=1
                $region96: #{run.22} parent=87 // loop_pre_header
                  _
                $region97: #{run.22} parent=87 // loop_header
                  %s342 = sphi 0, %s346
                  %p343 = scmp.ge.s32.totalorder %s342, 1
                  %s347 = sphi %s296, %s296
                  %s348 = sphi %s289, %s289
                $region98: #{run.22} parent=87 // loop_header_branch
                  %345 = sbr.rel (%p343) target = $region102
                $region99: #{run.22} parent=87 // loop_body
                  %v349 = vld [vmem:[%s347] sm:%s340]
                  %350 = vst [vmem:[%s348] sm:%s340] %v349
                  %v351 = vld [vmem:[%s347 + $0x4] sm:%s340]
                  %352 = vst [vmem:[%s348 + $0x2] sm:%s340] %v351
                  %v353 = vld [vmem:[%s347 + $0x8] sm:%s340]
                  %354 = vst [vmem:[%s348 + $0x4] sm:%s340] %v353
                  %v355 = vld [vmem:[%s347 + $0xc] sm:%s340]
                  %356 = vst [vmem:[%s348 + $0x6] sm:%s340] %v355
                  %v357 = vld [vmem:[%s347 + $0x10] sm:%s340]
                  %358 = vst [vmem:[%s348 + $0x8] sm:%s340] %v357
                  %v359 = vld [vmem:[%s347 + $0x14] sm:%s340]
                  %360 = vst [vmem:[%s348 + $0xa] sm:%s340] %v359
                  %v361 = vld [vmem:[%s347 + $0x18] sm:%s340]
                  %362 = vst [vmem:[%s348 + $0xc] sm:%s340] %v361
                  %v363 = vld [vmem:[%s347 + $0x1c] sm:%s340]
                  %364 = vst [vmem:[%s348 + $0xe] sm:%s340] %v363
                $region100: #{run.22} parent=87 // loop_footer
                  %s346 = sadd.s32 1, %s342
                $region101: #{run.22} parent=87 // loop_footer_branch
                  %341 = sbr.rel target = $region97
                $region102: #{run.22} parent=87 // loop_exit
                  _
              $region88: #{run.22} parent=72 // pred_fallthru
                _
            $region73: #{run.22} parent=68 // pred_fallthru
              _
            // Predicated region
            $region74: #{run.22} parent=68 // pred_check
              _
            $region75: #{run.22} parent=68 // pred_check_branch
              %302 = sbr.rel (0) target = $region77
            $region76: #{run.22} parent=68 // pred_region
              %s304 = ssub.s32 4, 1
              loop: start=0, step=1, limit=1
              $region78: #{run.22} parent=76 // loop_pre_header
                _
              $region79: #{run.22} parent=76 // loop_header
                %s306 = sphi 0, %s310
                %p307 = scmp.ge.s32.totalorder %s306, 1
                %s311 = sphi %s296, %s296
                %s312 = sphi %s289, %s289
              $region80: #{run.22} parent=76 // loop_header_branch
                %309 = sbr.rel (%p307) target = $region84
              $region81: #{run.22} parent=76 // loop_body
                %v313 = vld [vmem:[%s311] sm:%s304]
                %314 = vst [vmem:[%s312] sm:%s304] %v313
                %v315 = vld [vmem:[%s311 + $0x4] sm:%s304]
                %316 = vst [vmem:[%s312 + $0x2] sm:%s304] %v315
                %v317 = vld [vmem:[%s311 + $0x8] sm:%s304]
                %318 = vst [vmem:[%s312 + $0x4] sm:%s304] %v317
                %v319 = vld [vmem:[%s311 + $0xc] sm:%s304]
                %320 = vst [vmem:[%s312 + $0x6] sm:%s304] %v319
                %v321 = vld [vmem:[%s311 + $0x10] sm:%s304]
                %322 = vst [vmem:[%s312 + $0x8] sm:%s304] %v321
                %v323 = vld [vmem:[%s311 + $0x14] sm:%s304]
                %324 = vst [vmem:[%s312 + $0xa] sm:%s304] %v323
                %v325 = vld [vmem:[%s311 + $0x18] sm:%s304]
                %326 = vst [vmem:[%s312 + $0xc] sm:%s304] %v325
                %v327 = vld [vmem:[%s311 + $0x1c] sm:%s304]
                %328 = vst [vmem:[%s312 + $0xe] sm:%s304] %v327
              $region82: #{run.22} parent=76 // loop_footer
                %s310 = sadd.s32 1, %s306
              $region83: #{run.22} parent=76 // loop_footer_branch
                %305 = sbr.rel target = $region79
              $region84: #{run.22} parent=76 // loop_exit
                _
            $region77: #{run.22} parent=68 // pred_fallthru
              _
          $region69: #{run.22} parent=64 // pred_fallthru
            _
          %365 = vnop
        $region65: #{run.22} parent=15 // pred_fallthru
          _
        // Predicated region
        $region103: #{run.22} parent=15 // pred_check
          %p366 = pneg %p135
        $region104: #{run.22} parent=15 // pred_check_branch
          %368 = sbr.rel (%p366) target = $region106
        $region105: #{run.22} parent=15 // pred_region
          %p369 = scmp.lt.s32.totalorder %s17, 1
          %s370 = scalar_select %p369, %s17, 1
          %p371 = scmp.lt.s32.totalorder %s19, 0
          %s372 = scalar_select %p371, %s19, 0
          %s373 = sadd.s32 %s372, %s370
          %s374 = scalar_lea.vmem %s3, %s373
        $region106: #{run.22} parent=15 // pred_fallthru
          _
      $region16: #{run.22} parent=5 // pred_fallthru
        _
      %p375 = scmp.le.s32.totalorder 1, %s10
      %p376 = scmp.lt.s32.totalorder %s10, 3
      %p377 = pnand %p375, %p376
      %p378 = pneg %p377
      // Predicated region
      $region107: #{run.22} parent=5 // pred_check
        _
      $region108: #{run.22} parent=5 // pred_check_branch
        %380 = sbr.rel (%p377) target = $region110
      $region109: #{run.22} parent=5 // pred_region
        %s381 = ssub.s32 %s10, 1
        %s382 = sand.u32 %s72, 1
        %s383 = sand.u32 %s72, 1
        %s384 = smul.addr %s383, 16
        %s385 = scalar_lea.vmem [#allocation5], %s384
        // Predicated region
        $region111: #{run.22} parent=109 // pred_check
          %p386 = pneg %p85
        $region112: #{run.22} parent=109 // pred_check_branch
          %388 = sbr.rel (%p386) target = $region114
        $region113: #{run.22} parent=109 // pred_region
          _
        $region114: #{run.22} parent=109 // pred_fallthru
          _
        %s389 = sand.u32 %s100, 1
        %s390 = sand.u32 %s100, 1
        %s391 = smul.addr %s390, 16
        %s392 = scalar_lea.vmem [#allocation6], %s391
        // Predicated region
        $region115: #{run.22} parent=109 // pred_check
          %p393 = pneg %p113
        $region116: #{run.22} parent=109 // pred_check_branch
          %395 = sbr.rel (%p393) target = $region118
        $region117: #{run.22} parent=109 // pred_region
          _
        $region118: #{run.22} parent=109 // pred_fallthru
          _
        %s396 = smul.u32 8, %s21
        %p397 = scmp.lt.s32.totalorder %s20, 1
        %s398 = scalar_select %p397, %s20, 1
        %p399 = scmp.lt.s32.totalorder %s396, 7
        %s400 = scalar_select %p399, %s396, 7
        %s401 = smul.addr %s398, 8
        %s402 = sadd.s32 %s400, %s401
        %s403 = smul.addr %s402, 2
        %s404 = scalar_lea.vmem %s0, %s403
        %p405 = pneg %p57
        %p406 = pneg %p54
        %s407 = sand.u32 %s72, 1
        %s408 = sand.u32 %s72, 1
        %s409 = smul.addr %s408, 16
        %s410 = scalar_lea.vmem [#allocation5], %s409
        %p411 = pneg %p85
        %p412 = pneg %p82
        %s413 = sand.u32 %s100, 1
        %s414 = sand.u32 %s100, 1
        %s415 = smul.addr %s414, 16
        %s416 = scalar_lea.vmem [#allocation6], %s415
        %p417 = pneg %p113
        %p418 = pneg %p110
        %p419 = scmp.lt.s32.totalorder %s20, 1
        %s420 = scalar_select %p419, %s20, 1
        %p421 = scmp.lt.s32.totalorder %s22, 0
        %s422 = scalar_select %p421, %s22, 0
        %s423 = sadd.s32 %s422, %s420
        %s424 = scalar_lea.vmem %s3, %s423
        %p425 = pneg %p141
        %p426 = pneg %p138
        %p427 = pneg %p169
        %p428 = pneg %p166
        %p429 = scmp.lt.s32.totalorder %s20, 1
        %s430 = scalar_select %p429, %s20, 1
        %p431 = scmp.lt.s32.totalorder %s21, 0
        %s432 = scalar_select %p431, %s21, 0
        %s433 = sadd.s32 %s432, %s430
        %s434 = smul.addr %s433, 4
        %s435 = scalar_lea.vmem %s4, %s434
        %s436 = smul.u32 8, %s21
        %p437 = scmp.lt.s32.totalorder %s20, 1
        %s438 = scalar_select %p437, %s20, 1
        %p439 = scmp.lt.s32.totalorder %s436, 7
        %s440 = scalar_select %p439, %s436, 7
        %s441 = smul.addr %s438, 8
        %s442 = sadd.s32 %s440, %s441
        %s443 = smul.addr %s442, 2
        %s444 = scalar_lea.vmem %s0, %s443
        %s445 = smul.u32 8, %s21
        %s446 = smul.u32 8, %s22
        %s447 = smul.u32 8, %s22
        %p448 = scmp.lt.s32.totalorder %s20, 1
        %s449 = scalar_select %p448, %s20, 1
        %p450 = scmp.lt.s32.totalorder %s22, 0
        %s451 = scalar_select %p450, %s22, 0
        %s452 = sadd.s32 %s451, %s449
        %s453 = scalar_lea.vmem %s3, %s452
        %p454 = scmp.lt.s32.totalorder %s20, 1
        %s455 = scalar_select %p454, %s20, 1
        %p456 = scmp.lt.s32.totalorder %s21, 0
        %s457 = scalar_select %p456, %s21, 0
        %s458 = sadd.s32 %s457, %s455
        %s459 = smul.addr %s458, 4
        %s460 = scalar_lea.vmem %s4, %s459
        %p462 = scmp.eq.s32.totalorder %s22, 0
        // Predicated region
        $region119: #{run.22} parent=109 // pred_check
          %p463 = pneg %p462
        $region120: #{run.22} parent=109 // pred_check_branch
          %465 = sbr.rel (%p463) target = $region122
        $region121: #{run.22} parent=109 // pred_region
          %vm466 = vcmask 31744
          %467 = vst.msk [vmem:[#allocation2] sm:$0xff] %vm466, -inf
          %468 = vst.msk [vmem:[#allocation3] sm:$0xff] %vm466, 0.0
          %vm469 = vcmask 261120
          %470 = vst.msk [vmem:[#allocation4] sm:$0xff] %vm469, 0.0
        $region122: #{run.22} parent=109 // pred_fallthru
          _
        %v471 = vld [vmem:[%s444] sm:$0x3]
        %v472 = vld [vmem:[%s444 + $0x2] sm:$0x3]
        %v473 = vld [vmem:[%s444 + $0x4] sm:$0x3]
        %v474 = vld [vmem:[%s444 + $0x6] sm:$0x3]
        %v475 = vld [vmem:[%s444 + $0x8] sm:$0x3]
        %v476 = vld [vmem:[%s444 + $0xa] sm:$0x3]
        %v477 = vld [vmem:[%s444 + $0xc] sm:$0x3]
        %v478 = vld [vmem:[%s444 + $0xe] sm:$0x3]
        %v479 = vld [vmem:[%s385] sm:$0x3]
        %v480 = vld [vmem:[%s385 + $0x2] sm:$0x3]
        %v481 = vld [vmem:[%s385 + $0x4] sm:$0x3]
        %v482 = vld [vmem:[%s385 + $0x6] sm:$0x3]
        %v483 = vld [vmem:[%s385 + $0x8] sm:$0x3]
        %v484 = vld [vmem:[%s385 + $0xa] sm:$0x3]
        %v485 = vld [vmem:[%s385 + $0xc] sm:$0x3]
        %v486 = vld [vmem:[%s385 + $0xe] sm:$0x3]
        %v487 = vld [vmem:[%s392] sm:$0x3]
        %v488 = vld [vmem:[%s392 + $0x2] sm:$0x3]
        %v489 = vld [vmem:[%s392 + $0x4] sm:$0x3]
        %v490 = vld [vmem:[%s392 + $0x6] sm:$0x3]
        %v491 = vld [vmem:[%s392 + $0x8] sm:$0x3]
        %v492 = vld [vmem:[%s392 + $0xa] sm:$0x3]
        %v493 = vld [vmem:[%s392 + $0xc] sm:$0x3]
        %v494 = vld [vmem:[%s392 + $0xe] sm:$0x3]
        %v495 = vld [vmem:[%s453] sm:$0x1]
        %v497 = vperm.slane %v495, 0
        %500 = vst [vmem:[#allocation1] ss:$4 sm:$0xff] %v471
        %v501 = vld.sshfl [vmem:[#allocation1] sm:$0xff pattern:$0x73625140]
        %s504 = scalar_lea.vmem [#allocation1], 32
        %505 = vst [vmem:[%s504] ss:$4 sm:$0xff] %v472
        %v506 = vld.sshfl [vmem:[#allocation1 + $0x20] sm:$0xff pattern:$0x73625140]
        %509 = vst [vmem:[#allocation1] ss:$4 sm:$0xff] %v473
        %v510 = vld.sshfl [vmem:[#allocation1] sm:$0xff pattern:$0x73625140]
        %513 = vst [vmem:[%s504] ss:$4 sm:$0xff] %v474
        %v514 = vld.sshfl [vmem:[#allocation1 + $0x20] sm:$0xff pattern:$0x73625140]
        %517 = vst [vmem:[#allocation1] ss:$4 sm:$0xff] %v475
        %v518 = vld.sshfl [vmem:[#allocation1] sm:$0xff pattern:$0x73625140]
        %521 = vst [vmem:[%s504] ss:$4 sm:$0xff] %v476
        %v522 = vld.sshfl [vmem:[#allocation1 + $0x20] sm:$0xff pattern:$0x73625140]
        %525 = vst [vmem:[#allocation1] ss:$4 sm:$0xff] %v477
        %v526 = vld.sshfl [vmem:[#allocation1] sm:$0xff pattern:$0x73625140]
        %529 = vst [vmem:[%s504] ss:$4 sm:$0xff] %v478
        %v530 = vld.sshfl [vmem:[#allocation1 + $0x20] sm:$0xff pattern:$0x73625140]
        %v532 = vunpack.c.l.b16 %v501
        %v533 = vunpack.c.l.b16 %v506
        %v534 = vunpack.c.l.b16 %v510
        %v535 = vunpack.c.l.b16 %v514
        %v536 = vunpack.c.l.b16 %v518
        %v537 = vunpack.c.l.b16 %v522
        %v538 = vunpack.c.l.b16 %v526
        %v539 = vunpack.c.l.b16 %v530
        %v540 = vrot.slane %v533, 7
        %vm541 = vcmask 1041409
        %v542 = vsel %vm541, %v540, %v532
        %v543 = vrot.slane %v534, 6
        %vm544 = vcmask 1042434
        %v545 = vsel %vm544, %v543, %v542
        %v546 = vrot.slane %v535, 5
        %vm547 = vcmask 1043459
        %v548 = vsel %vm547, %v546, %v545
        %v549 = vrot.slane %v536, 4
        %vm550 = vcmask 1044484
        %v551 = vsel %vm550, %v549, %v548
        %v552 = vrot.slane %v537, 3
        %vm553 = vcmask 1045509
        %v554 = vsel %vm553, %v552, %v551
        %v555 = vrot.slane %v538, 2
        %vm556 = vcmask 1046534
        %v557 = vsel %vm556, %v555, %v554
        %v558 = vrot.slane %v539, 1
        %vm559 = vcmask 1047559
        %v560 = vsel %vm559, %v558, %v557
        %v561 = vpack.c.b16 %v560, %v560
        %563 = vst [vmem:[#allocation1] ss:$4 sm:$0xff] %v479
        %v564 = vld.sshfl [vmem:[#allocation1] sm:$0xff pattern:$0x73625140]
        %s567 = scalar_lea.vmem [#allocation1], 32
        %568 = vst [vmem:[%s567] ss:$4 sm:$0xff] %v480
        %v569 = vld.sshfl [vmem:[#allocation1 + $0x20] sm:$0xff pattern:$0x73625140]
        %572 = vst [vmem:[#allocation1] ss:$4 sm:$0xff] %v481
        %v573 = vld.sshfl [vmem:[#allocation1] sm:$0xff pattern:$0x73625140]
        %576 = vst [vmem:[%s567] ss:$4 sm:$0xff] %v482
        %v577 = vld.sshfl [vmem:[#allocation1 + $0x20] sm:$0xff pattern:$0x73625140]
        %580 = vst [vmem:[#allocation1] ss:$4 sm:$0xff] %v483
        %v581 = vld.sshfl [vmem:[#allocation1] sm:$0xff pattern:$0x73625140]
        %584 = vst [vmem:[%s567] ss:$4 sm:$0xff] %v484
        %v585 = vld.sshfl [vmem:[#allocation1 + $0x20] sm:$0xff pattern:$0x73625140]
        %588 = vst [vmem:[#allocation1] ss:$4 sm:$0xff] %v485
        %v589 = vld.sshfl [vmem:[#allocation1] sm:$0xff pattern:$0x73625140]
        %592 = vst [vmem:[%s567] ss:$4 sm:$0xff] %v486
        %v593 = vld.sshfl [vmem:[#allocation1 + $0x20] sm:$0xff pattern:$0x73625140]
        %v595 = vunpack.c.l.b16 %v564
        %v596 = vunpack.c.l.b16 %v569
        %v597 = vunpack.c.l.b16 %v573
        %v598 = vunpack.c.l.b16 %v577
        %v599 = vunpack.c.l.b16 %v581
        %v600 = vunpack.c.l.b16 %v585
        %v601 = vunpack.c.l.b16 %v589
        %v602 = vunpack.c.l.b16 %v593
        %v603 = vrot.slane %v596, 7
        %v604 = vsel %vm541, %v603, %v595
        %v605 = vrot.slane %v597, 6
        %v606 = vsel %vm544, %v605, %v604
        %v607 = vrot.slane %v598, 5
        %v608 = vsel %vm547, %v607, %v606
        %v609 = vrot.slane %v599, 4
        %v610 = vsel %vm550, %v609, %v608
        %v611 = vrot.slane %v600, 3
        %v612 = vsel %vm553, %v611, %v610
        %v613 = vrot.slane %v601, 2
        %v614 = vsel %vm556, %v613, %v612
        %v615 = vrot.slane %v602, 1
        %v616 = vsel %vm559, %v615, %v614
        %v617 = vpack.c.b16 %v616, %v616
        %vm618 = vcmask 64512
        %v620 = vsel %vm618, %v561, 0
        %v623 = vsel %vm618, %v617, 0
        %625 = vmatpush.bf16.xpose.msra.mxu0 0
        %626 = vmatpush.bf16.xpose.msra.mxu0 0
        %627 = vmatpush.bf16.xpose.msra.mxu0 0
        %628 = vmatpush.bf16.xpose.msra.mxu0 0
        %629 = vmatpush.bf16.xpose.msra.mxu0 0
        %630 = vmatpush.bf16.xpose.msra.mxu0 0
        %631 = vmatpush.bf16.xpose.msra.mxu0 0
        %632 = vmatpush.bf16.xpose.msra.mxu0 %v623
        %633 = vmatmul.bf16.gmra.mxu0 %v620
        %v634 = vpop.f32.mrf.mxu0
        %v635 = vadd.f32 %v497, %v634
        %v636 = vpop.f32.mrf.mxu0
        %637 = vdwg.mxu0
        %v638 = vld [vmem:[#allocation2] sm:$0xff]
        %v639 = vsel %vm618, %v635, -inf
        %640 = vmax.xlane.f32.xlu0 %v639
        %v641 = vpop.xlane.xlu0 %640
        %v642 = vmax.f32 %v638, %v641
        %v643 = vsub.f32 %v638, %v642
        %v644 = vmul.f32 %v643, 1.442695
        %v645 = vpow.pop %v644
        %647 = vset.pattern.permute.xlu0 0
        %648 = vperm.xlu0 %647, %v642
        %v649 = vpop.permute.xlu0 %648
        %v651 = vsub.f32 %v635, %v649
        %v652 = vmul.f32 %v651, 1.442695
        %v653 = vpow.pop %v652
        %v654 = vld [vmem:[#allocation3] sm:$0xff]
        %v655 = vmul.f32 %v645, %v654
        %v656 = vsel %vm618, %v653, 0.0
        %657 = vadd.xlane.f32.xlu0 %v656
        %v658 = vpop.xlane.xlu0 %657
        %v659 = vadd.f32 %v655, %v658
        %vm660 = vcmask 7168
        %661 = vst.msk [vmem:[#allocation3] sm:$0xff] %vm660, %v659
        %v662 = vpack.c.bf16 %v653, %v653
        %664 = vst [vmem:[#allocation1] ss:$4 sm:$0xff] %v487
        %v665 = vld.sshfl [vmem:[#allocation1] sm:$0xff pattern:$0x73625140]
        %s668 = scalar_lea.vmem [#allocation1], 32
        %669 = vst [vmem:[%s668] ss:$4 sm:$0xff] %v488
        %v670 = vld.sshfl [vmem:[#allocation1 + $0x20] sm:$0xff pattern:$0x73625140]
        %673 = vst [vmem:[#allocation1] ss:$4 sm:$0xff] %v489
        %v674 = vld.sshfl [vmem:[#allocation1] sm:$0xff pattern:$0x73625140]
        %677 = vst [vmem:[%s668] ss:$4 sm:$0xff] %v490
        %v678 = vld.sshfl [vmem:[#allocation1 + $0x20] sm:$0xff pattern:$0x73625140]
        %681 = vst [vmem:[#allocation1] ss:$4 sm:$0xff] %v491
        %v682 = vld.sshfl [vmem:[#allocation1] sm:$0xff pattern:$0x73625140]
        %685 = vst [vmem:[%s668] ss:$4 sm:$0xff] %v492
        %v686 = vld.sshfl [vmem:[#allocation1 + $0x20] sm:$0xff pattern:$0x73625140]
        %689 = vst [vmem:[#allocation1] ss:$4 sm:$0xff] %v493
        %v690 = vld.sshfl [vmem:[#allocation1] sm:$0xff pattern:$0x73625140]
        %693 = vst [vmem:[%s668] ss:$4 sm:$0xff] %v494
        %v694 = vld.sshfl [vmem:[#allocation1 + $0x20] sm:$0xff pattern:$0x73625140]
        %v696 = vunpack.c.l.b16 %v665
        %v697 = vunpack.c.l.b16 %v670
        %v698 = vunpack.c.l.b16 %v674
        %v699 = vunpack.c.l.b16 %v678
        %v700 = vunpack.c.l.b16 %v682
        %v701 = vunpack.c.l.b16 %v686
        %v702 = vunpack.c.l.b16 %v690
        %v703 = vunpack.c.l.b16 %v694
        %v704 = vrot.slane %v697, 7
        %v705 = vsel %vm541, %v704, %v696
        %v706 = vrot.slane %v698, 6
        %v707 = vsel %vm544, %v706, %v705
        %v708 = vrot.slane %v699, 5
        %v709 = vsel %vm547, %v708, %v707
        %v710 = vrot.slane %v700, 4
        %v711 = vsel %vm550, %v710, %v709
        %v712 = vrot.slane %v701, 3
        %v713 = vsel %vm553, %v712, %v711
        %v714 = vrot.slane %v702, 2
        %v715 = vsel %vm556, %v714, %v713
        %v716 = vrot.slane %v703, 1
        %v717 = vsel %vm559, %v716, %v715
        %v718 = vpack.c.b16 %v717, %v717
        %v720 = vsel %vm618, %v662, 0
        %vm722 = vcmask 1043456
        %v724 = vsel %vm722, %v718, 0
        %726 = vmatpush.bf16.msra.mxu0 0
        %727 = vmatpush.bf16.msra.mxu0 0
        %728 = vmatpush.bf16.msra.mxu0 0
        %729 = vmatpush.bf16.msra.mxu0 0
        %730 = vmatpush.bf16.msra.mxu0 0
        %731 = vmatpush.bf16.msra.mxu0 0
        %732 = vmatpush.bf16.msra.mxu0 0
        %733 = vmatpush.bf16.msra.mxu0 %v724
        %734 = vmatmul.bf16.gmra.mxu0 %v720
        %v735 = vpop.f32.mrf.mxu0
        %v736 = vadd.f32 0.0, %v735
        %v737 = vpop.f32.mrf.mxu0
        %738 = vdwg.mxu0
        %v739 = vld [vmem:[#allocation4] sm:$0xff]
        %741 = vset.pattern.permute.xlu0 0
        %742 = vperm.xlu0 %741, %v645
        %v743 = vpop.permute.xlu0 %742
        %v745 = vmul.f32 %v743, %v739
        %v746 = vadd.f32 %v745, %v736
        %747 = vst.msk [vmem:[#allocation4] sm:$0xff] %vm618, %v746
        %748 = vst.msk [vmem:[#allocation2] sm:$0xff] %vm660, %v642
        %749 = vst [vmem:[#allocation1] ss:$4 sm:$0xff] %v471
        %v750 = vld.sshfl [vmem:[#allocation1] sm:$0xff pattern:$0x73625140]
        %s752 = scalar_lea.vmem [#allocation1], 32
        %753 = vst [vmem:[%s752] ss:$4 sm:$0xff] %v472
        %v754 = vld.sshfl [vmem:[#allocation1 + $0x20] sm:$0xff pattern:$0x73625140]
        %756 = vst [vmem:[#allocation1] ss:$4 sm:$0xff] %v473
        %v757 = vld.sshfl [vmem:[#allocation1] sm:$0xff pattern:$0x73625140]
        %759 = vst [vmem:[%s752] ss:$4 sm:$0xff] %v474
        %v760 = vld.sshfl [vmem:[#allocation1 + $0x20] sm:$0xff pattern:$0x73625140]
        %762 = vst [vmem:[#allocation1] ss:$4 sm:$0xff] %v475
        %v763 = vld.sshfl [vmem:[#allocation1] sm:$0xff pattern:$0x73625140]
        %765 = vst [vmem:[%s752] ss:$4 sm:$0xff] %v476
        %v766 = vld.sshfl [vmem:[#allocation1 + $0x20] sm:$0xff pattern:$0x73625140]
        %768 = vst [vmem:[#allocation1] ss:$4 sm:$0xff] %v477
        %v769 = vld.sshfl [vmem:[#allocation1] sm:$0xff pattern:$0x73625140]
        %771 = vst [vmem:[%s752] ss:$4 sm:$0xff] %v478
        %v772 = vld.sshfl [vmem:[#allocation1 + $0x20] sm:$0xff pattern:$0x73625140]
        %v774 = vunpack.c.l.b16 %v750
        %v775 = vunpack.c.l.b16 %v754
        %v776 = vunpack.c.l.b16 %v757
        %v777 = vunpack.c.l.b16 %v760
        %v778 = vunpack.c.l.b16 %v763
        %v779 = vunpack.c.l.b16 %v766
        %v780 = vunpack.c.l.b16 %v769
        %v781 = vunpack.c.l.b16 %v772
        %v782 = vrot.slane %v774, 1
        %v783 = vsel %vm541, %v775, %v782
        %v784 = vrot.slane %v776, 7
        %v785 = vsel %vm544, %v784, %v783
        %v786 = vrot.slane %v777, 6
        %v787 = vsel %vm547, %v786, %v785
        %v788 = vrot.slane %v778, 5
        %v789 = vsel %vm550, %v788, %v787
        %v790 = vrot.slane %v779, 4
        %v791 = vsel %vm553, %v790, %v789
        %v792 = vrot.slane %v780, 3
        %v793 = vsel %vm556, %v792, %v791
        %v794 = vrot.slane %v781, 2
        %v795 = vsel %vm559, %v794, %v793
        %v796 = vpack.c.b16 %v795, %v795
        %797 = vst [vmem:[#allocation1] ss:$4 sm:$0xff] %v479
        %v798 = vld.sshfl [vmem:[#allocation1] sm:$0xff pattern:$0x73625140]
        %s800 = scalar_lea.vmem [#allocation1], 32
        %801 = vst [vmem:[%s800] ss:$4 sm:$0xff] %v480
        %v802 = vld.sshfl [vmem:[#allocation1 + $0x20] sm:$0xff pattern:$0x73625140]
        %804 = vst [vmem:[#allocation1] ss:$4 sm:$0xff] %v481
        %v805 = vld.sshfl [vmem:[#allocation1] sm:$0xff pattern:$0x73625140]
        %807 = vst [vmem:[%s800] ss:$4 sm:$0xff] %v482
        %v808 = vld.sshfl [vmem:[#allocation1 + $0x20] sm:$0xff pattern:$0x73625140]
        %810 = vst [vmem:[#allocation1] ss:$4 sm:$0xff] %v483
        %v811 = vld.sshfl [vmem:[#allocation1] sm:$0xff pattern:$0x73625140]
        %813 = vst [vmem:[%s800] ss:$4 sm:$0xff] %v484
        %v814 = vld.sshfl [vmem:[#allocation1 + $0x20] sm:$0xff pattern:$0x73625140]
        %816 = vst [vmem:[#allocation1] ss:$4 sm:$0xff] %v485
        %v817 = vld.sshfl [vmem:[#allocation1] sm:$0xff pattern:$0x73625140]
        %819 = vst [vmem:[%s800] ss:$4 sm:$0xff] %v486
        %v820 = vld.sshfl [vmem:[#allocation1 + $0x20] sm:$0xff pattern:$0x73625140]
        %v822 = vunpack.c.l.b16 %v798
        %v823 = vunpack.c.l.b16 %v802
        %v824 = vunpack.c.l.b16 %v805
        %v825 = vunpack.c.l.b16 %v808
        %v826 = vunpack.c.l.b16 %v811
        %v827 = vunpack.c.l.b16 %v814
        %v828 = vunpack.c.l.b16 %v817
        %v829 = vunpack.c.l.b16 %v820
        %v830 = vrot.slane %v822, 1
        %v831 = vsel %vm541, %v823, %v830
        %v832 = vrot.slane %v824, 7
        %v833 = vsel %vm544, %v832, %v831
        %v834 = vrot.slane %v825, 6
        %v835 = vsel %vm547, %v834, %v833
        %v836 = vrot.slane %v826, 5
        %v837 = vsel %vm550, %v836, %v835
        %v838 = vrot.slane %v827, 4
        %v839 = vsel %vm553, %v838, %v837
        %v840 = vrot.slane %v828, 3
        %v841 = vsel %vm556, %v840, %v839
        %v842 = vrot.slane %v829, 2
        %v843 = vsel %vm559, %v842, %v841
        %v844 = vpack.c.b16 %v843, %v843
        %v846 = vsel %vm618, %v796, 0
        %v849 = vsel %vm618, %v844, 0
        %851 = vmatpush.bf16.xpose.msra.mxu0 0
        %852 = vmatpush.bf16.xpose.msra.mxu0 0
        %853 = vmatpush.bf16.xpose.msra.mxu0 0
        %854 = vmatpush.bf16.xpose.msra.mxu0 0
        %855 = vmatpush.bf16.xpose.msra.mxu0 0
        %856 = vmatpush.bf16.xpose.msra.mxu0 0
        %857 = vmatpush.bf16.xpose.msra.mxu0 0
        %858 = vmatpush.bf16.xpose.msra.mxu0 %v849
        %859 = vmatmul.bf16.gmra.mxu0 %v846
        %v860 = vpop.f32.mrf.mxu0
        %v861 = vadd.f32 %v497, %v860
        %v862 = vpop.f32.mrf.mxu0
        %863 = vdwg.mxu0
        %v864 = vld [vmem:[#allocation2] sm:$0xff]
        %v865 = vsel %vm618, %v861, -inf
        %866 = vmax.xlane.f32.xlu0 %v865
        %v867 = vpop.xlane.xlu0 %866
        %v868 = vmax.f32 %v864, %v867
        %v869 = vsub.f32 %v864, %v868
        %v870 = vmul.f32 %v869, 1.442695
        %v871 = vpow.pop %v870
        %873 = vset.pattern.permute.xlu0 1
        %874 = vperm.xlu0 %873, %v868
        %v875 = vpop.permute.xlu0 %874
        %v877 = vsub.f32 %v861, %v875
        %v878 = vmul.f32 %v877, 1.442695
        %v879 = vpow.pop %v878
        %v880 = vld [vmem:[#allocation3] sm:$0xff]
        %v881 = vmul.f32 %v871, %v880
        %v882 = vsel %vm618, %v879, 0.0
        %883 = vadd.xlane.f32.xlu0 %v882
        %v884 = vpop.xlane.xlu0 %883
        %v885 = vadd.f32 %v881, %v884
        %vm886 = vcmask 15368
        %887 = vst.msk [vmem:[#allocation3] sm:$0xff] %vm886, %v885
        %v888 = vpack.c.bf16 %v879, %v879
        %889 = vst [vmem:[#allocation1] ss:$4 sm:$0xff] %v487
        %v890 = vld.sshfl [vmem:[#allocation1] sm:$0xff pattern:$0x73625140]
        %s892 = scalar_lea.vmem [#allocation1], 32
        %893 = vst [vmem:[%s892] ss:$4 sm:$0xff] %v488
        %v894 = vld.sshfl [vmem:[#allocation1 + $0x20] sm:$0xff pattern:$0x73625140]
        %896 = vst [vmem:[#allocation1] ss:$4 sm:$0xff] %v489
        %v897 = vld.sshfl [vmem:[#allocation1] sm:$0xff pattern:$0x73625140]
        %899 = vst [vmem:[%s892] ss:$4 sm:$0xff] %v490
        %v900 = vld.sshfl [vmem:[#allocation1 + $0x20] sm:$0xff pattern:$0x73625140]
        %902 = vst [vmem:[#allocation1] ss:$4 sm:$0xff] %v491
        %v903 = vld.sshfl [vmem:[#allocation1] sm:$0xff pattern:$0x73625140]
        %905 = vst [vmem:[%s892] ss:$4 sm:$0xff] %v492
        %v906 = vld.sshfl [vmem:[#allocation1 + $0x20] sm:$0xff pattern:$0x73625140]
        %908 = vst [vmem:[#allocation1] ss:$4 sm:$0xff] %v493
        %v909 = vld.sshfl [vmem:[#allocation1] sm:$0xff pattern:$0x73625140]
        %911 = vst [vmem:[%s892] ss:$4 sm:$0xff] %v494
        %v912 = vld.sshfl [vmem:[#allocation1 + $0x20] sm:$0xff pattern:$0x73625140]
        %v914 = vunpack.c.l.b16 %v890
        %v915 = vunpack.c.l.b16 %v894
        %v916 = vunpack.c.l.b16 %v897
        %v917 = vunpack.c.l.b16 %v900
        %v918 = vunpack.c.l.b16 %v903
        %v919 = vunpack.c.l.b16 %v906
        %v920 = vunpack.c.l.b16 %v909
        %v921 = vunpack.c.l.b16 %v912
        %v922 = vrot.slane %v914, 1
        %v923 = vsel %vm541, %v915, %v922
        %v924 = vrot.slane %v916, 7
        %v925 = vsel %vm544, %v924, %v923
        %v926 = vrot.slane %v917, 6
        %v927 = vsel %vm547, %v926, %v925
        %v928 = vrot.slane %v918, 5
        %v929 = vsel %vm550, %v928, %v927
        %v930 = vrot.slane %v919, 4
        %v931 = vsel %vm553, %v930, %v929
        %v932 = vrot.slane %v920, 3
        %v933 = vsel %vm556, %v932, %v931
        %v934 = vrot.slane %v921, 2
        %v935 = vsel %vm559, %v934, %v933
        %v936 = vpack.c.b16 %v935, %v935
        %v938 = vsel %vm618, %v888, 0
        %v941 = vsel %vm722, %v936, 0
        %943 = vmatpush.bf16.msra.mxu0 0
        %944 = vmatpush.bf16.msra.mxu0 0
        %945 = vmatpush.bf16.msra.mxu0 0
        %946 = vmatpush.bf16.msra.mxu0 0
        %947 = vmatpush.bf16.msra.mxu0 0
        %948 = vmatpush.bf16.msra.mxu0 0
        %949 = vmatpush.bf16.msra.mxu0 0
        %950 = vmatpush.bf16.msra.mxu0 %v941
        %951 = vmatmul.bf16.gmra.mxu0 %v938
        %v952 = vpop.f32.mrf.mxu0
        %v953 = vadd.f32 0.0, %v952
        %v954 = vpop.f32.mrf.mxu0
        %955 = vdwg.mxu0
        %v956 = vld [vmem:[#allocation4] sm:$0xff]
        %958 = vset.pattern.permute.xlu0 1
        %959 = vperm.xlu0 %958, %v871
        %v960 = vpop.permute.xlu0 %959
        %v962 = vmul.f32 %v960, %v956
        %964 = vrot.lane.b32.xlu0 %v953, 8
        %v965 = vpop.permute.xlu0 %964
        %v967 = vadd.f32 %v962, %v965
        %vm968 = vcmask 130112
        %969 = vst.msk [vmem:[#allocation4] sm:$0xff] %vm968, %v967
        %970 = vst.msk [vmem:[#allocation2] sm:$0xff] %vm886, %v868
        %971 = vst [vmem:[#allocation1] ss:$4 sm:$0xff] %v471
        %v972 = vld.sshfl [vmem:[#allocation1] sm:$0xff pattern:$0x73625140]
        %s974 = scalar_lea.vmem [#allocation1], 32
        %975 = vst [vmem:[%s974] ss:$4 sm:$0xff] %v472
        %v976 = vld.sshfl [vmem:[#allocation1 + $0x20] sm:$0xff pattern:$0x73625140]
        %978 = vst [vmem:[#allocation1] ss:$4 sm:$0xff] %v473
        %v979 = vld.sshfl [vmem:[#allocation1] sm:$0xff pattern:$0x73625140]
        %981 = vst [vmem:[%s974] ss:$4 sm:$0xff] %v474
        %v982 = vld.sshfl [vmem:[#allocation1 + $0x20] sm:$0xff pattern:$0x73625140]
        %984 = vst [vmem:[#allocation1] ss:$4 sm:$0xff] %v475
        %v985 = vld.sshfl [vmem:[#allocation1] sm:$0xff pattern:$0x73625140]
        %987 = vst [vmem:[%s974] ss:$4 sm:$0xff] %v476
        %v988 = vld.sshfl [vmem:[#allocation1 + $0x20] sm:$0xff pattern:$0x73625140]
        %990 = vst [vmem:[#allocation1] ss:$4 sm:$0xff] %v477
        %v991 = vld.sshfl [vmem:[#allocation1] sm:$0xff pattern:$0x73625140]
        %993 = vst [vmem:[%s974] ss:$4 sm:$0xff] %v478
        %v994 = vld.sshfl [vmem:[#allocation1 + $0x20] sm:$0xff pattern:$0x73625140]
        %v996 = vunpack.c.l.b16 %v972
        %v997 = vunpack.c.l.b16 %v976
        %v998 = vunpack.c.l.b16 %v979
        %v999 = vunpack.c.l.b16 %v982
        %v1000 = vunpack.c.l.b16 %v985
        %v1001 = vunpack.c.l.b16 %v988
        %v1002 = vunpack.c.l.b16 %v991
        %v1003 = vunpack.c.l.b16 %v994
        %v1004 = vrot.slane %v996, 2
        %v1005 = vrot.slane %v997, 1
        %v1006 = vsel %vm541, %v1005, %v1004
        %v1007 = vsel %vm544, %v998, %v1006
        %v1008 = vrot.slane %v999, 7
        %v1009 = vsel %vm547, %v1008, %v1007
        %v1010 = vrot.slane %v1000, 6
        %v1011 = vsel %vm550, %v1010, %v1009
        %v1012 = vrot.slane %v1001, 5
        %v1013 = vsel %vm553, %v1012, %v1011
        %v1014 = vrot.slane %v1002, 4
        %v1015 = vsel %vm556, %v1014, %v1013
        %v1016 = vrot.slane %v1003, 3
        %v1017 = vsel %vm559, %v1016, %v1015
        %v1018 = vpack.c.b16 %v1017, %v1017
        %1019 = vst [vmem:[#allocation1] ss:$4 sm:$0xff] %v479
        %v1020 = vld.sshfl [vmem:[#allocation1] sm:$0xff pattern:$0x73625140]
        %s1022 = scalar_lea.vmem [#allocation1], 32
        %1023 = vst [vmem:[%s1022] ss:$4 sm:$0xff] %v480
        %v1024 = vld.sshfl [vmem:[#allocation1 + $0x20] sm:$0xff pattern:$0x73625140]
        %1026 = vst [vmem:[#allocation1] ss:$4 sm:$0xff] %v481
        %v1027 = vld.sshfl [vmem:[#allocation1] sm:$0xff pattern:$0x73625140]
        %1029 = vst [vmem:[%s1022] ss:$4 sm:$0xff] %v482
        %v1030 = vld.sshfl [vmem:[#allocation1 + $0x20] sm:$0xff pattern:$0x73625140]
        %1032 = vst [vmem:[#allocation1] ss:$4 sm:$0xff] %v483
        %v1033 = vld.sshfl [vmem:[#allocation1] sm:$0xff pattern:$0x73625140]
        %1035 = vst [vmem:[%s1022] ss:$4 sm:$0xff] %v484
        %v1036 = vld.sshfl [vmem:[#allocation1 + $0x20] sm:$0xff pattern:$0x73625140]
        %1038 = vst [vmem:[#allocation1] ss:$4 sm:$0xff] %v485
        %v1039 = vld.sshfl [vmem:[#allocation1] sm:$0xff pattern:$0x73625140]
        %1041 = vst [vmem:[%s1022] ss:$4 sm:$0xff] %v486
        %v1042 = vld.sshfl [vmem:[#allocation1 + $0x20] sm:$0xff pattern:$0x73625140]
        %v1044 = vunpack.c.l.b16 %v1020
        %v1045 = vunpack.c.l.b16 %v1024
        %v1046 = vunpack.c.l.b16 %v1027
        %v1047 = vunpack.c.l.b16 %v1030
        %v1048 = vunpack.c.l.b16 %v1033
        %v1049 = vunpack.c.l.b16 %v1036
        %v1050 = vunpack.c.l.b16 %v1039
        %v1051 = vunpack.c.l.b16 %v1042
        %v1052 = vrot.slane %v1044, 2
        %v1053 = vrot.slane %v1045, 1
        %v1054 = vsel %vm541, %v1053, %v1052
        %v1055 = vsel %vm544, %v1046, %v1054
        %v1056 = vrot.slane %v1047, 7
        %v1057 = vsel %vm547, %v1056, %v1055
        %v1058 = vrot.slane %v1048, 6
        %v1059 = vsel %vm550, %v1058, %v1057
        %v1060 = vrot.slane %v1049, 5
        %v1061 = vsel %vm553, %v1060, %v1059
        %v1062 = vrot.slane %v1050, 4
        %v1063 = vsel %vm556, %v1062, %v1061
        %v1064 = vrot.slane %v1051, 3
        %v1065 = vsel %vm559, %v1064, %v1063
        %v1066 = vpack.c.b16 %v1065, %v1065
        %v1068 = vsel %vm618, %v1018, 0
        %v1071 = vsel %vm618, %v1066, 0
        %1073 = vmatpush.bf16.xpose.msra.mxu0 0
        %1074 = vmatpush.bf16.xpose.msra.mxu0 0
        %1075 = vmatpush.bf16.xpose.msra.mxu0 0
        %1076 = vmatpush.bf16.xpose.msra.mxu0 0
        %1077 = vmatpush.bf16.xpose.msra.mxu0 0
        %1078 = vmatpush.bf16.xpose.msra.mxu0 0
        %1079 = vmatpush.bf16.xpose.msra.mxu0 0
        %1080 = vmatpush.bf16.xpose.msra.mxu0 %v1071
        %1081 = vmatmul.bf16.gmra.mxu0 %v1068
        %v1082 = vpop.f32.mrf.mxu0
        %v1083 = vadd.f32 %v497, %v1082
        %v1084 = vpop.f32.mrf.mxu0
        %1085 = vdwg.mxu0
        %v1086 = vld [vmem:[#allocation2] sm:$0xff]
        %v1087 = vsel %vm618, %v1083, -inf
        %1088 = vmax.xlane.f32.xlu0 %v1087
        %v1089 = vpop.xlane.xlu0 %1088
        %v1090 = vmax.f32 %v1086, %v1089
        %v1091 = vsub.f32 %v1086, %v1090
        %v1092 = vmul.f32 %v1091, 1.442695
        %v1093 = vpow.pop %v1092
        %1095 = vset.pattern.permute.xlu0 2
        %1096 = vperm.xlu0 %1095, %v1090
        %v1097 = vpop.permute.xlu0 %1096
        %v1099 = vsub.f32 %v1083, %v1097
        %v1100 = vmul.f32 %v1099, 1.442695
        %v1101 = vpow.pop %v1100
        %v1102 = vld [vmem:[#allocation3] sm:$0xff]
        %v1103 = vmul.f32 %v1093, %v1102
        %v1104 = vsel %vm618, %v1101, 0.0
        %1105 = vadd.xlane.f32.xlu0 %v1104
        %v1106 = vpop.xlane.xlu0 %1105
        %v1107 = vadd.f32 %v1103, %v1106
        %vm1108 = vcmask 23568
        %1109 = vst.msk [vmem:[#allocation3] sm:$0xff] %vm1108, %v1107
        %v1110 = vpack.c.bf16 %v1101, %v1101
        %1111 = vst [vmem:[#allocation1] ss:$4 sm:$0xff] %v487
        %v1112 = vld.sshfl [vmem:[#allocation1] sm:$0xff pattern:$0x73625140]
        %s1114 = scalar_lea.vmem [#allocation1], 32
        %1115 = vst [vmem:[%s1114] ss:$4 sm:$0xff] %v488
        %v1116 = vld.sshfl [vmem:[#allocation1 + $0x20] sm:$0xff pattern:$0x73625140]
        %1118 = vst [vmem:[#allocation1] ss:$4 sm:$0xff] %v489
        %v1119 = vld.sshfl [vmem:[#allocation1] sm:$0xff pattern:$0x73625140]
        %1121 = vst [vmem:[%s1114] ss:$4 sm:$0xff] %v490
        %v1122 = vld.sshfl [vmem:[#allocation1 + $0x20] sm:$0xff pattern:$0x73625140]
        %1124 = vst [vmem:[#allocation1] ss:$4 sm:$0xff] %v491
        %v1125 = vld.sshfl [vmem:[#allocation1] sm:$0xff pattern:$0x73625140]
        %1127 = vst [vmem:[%s1114] ss:$4 sm:$0xff] %v492
        %v1128 = vld.sshfl [vmem:[#allocation1 + $0x20] sm:$0xff pattern:$0x73625140]
        %1130 = vst [vmem:[#allocation1] ss:$4 sm:$0xff] %v493
        %v1131 = vld.sshfl [vmem:[#allocation1] sm:$0xff pattern:$0x73625140]
        %1133 = vst [vmem:[%s1114] ss:$4 sm:$0xff] %v494
        %v1134 = vld.sshfl [vmem:[#allocation1 + $0x20] sm:$0xff pattern:$0x73625140]
        %v1136 = vunpack.c.l.b16 %v1112
        %v1137 = vunpack.c.l.b16 %v1116
        %v1138 = vunpack.c.l.b16 %v1119
        %v1139 = vunpack.c.l.b16 %v1122
        %v1140 = vunpack.c.l.b16 %v1125
        %v1141 = vunpack.c.l.b16 %v1128
        %v1142 = vunpack.c.l.b16 %v1131
        %v1143 = vunpack.c.l.b16 %v1134
        %v1144 = vrot.slane %v1136, 2
        %v1145 = vrot.slane %v1137, 1
        %v1146 = vsel %vm541, %v1145, %v1144
        %v1147 = vsel %vm544, %v1138, %v1146
        %v1148 = vrot.slane %v1139, 7
        %v1149 = vsel %vm547, %v1148, %v1147
        %v1150 = vrot.slane %v1140, 6
        %v1151 = vsel %vm550, %v1150, %v1149
        %v1152 = vrot.slane %v1141, 5
        %v1153 = vsel %vm553, %v1152, %v1151
        %v1154 = vrot.slane %v1142, 4
        %v1155 = vsel %vm556, %v1154, %v1153
        %v1156 = vrot.slane %v1143, 3
        %v1157 = vsel %vm559, %v1156, %v1155
        %v1158 = vpack.c.b16 %v1157, %v1157
        %v1160 = vsel %vm618, %v1110, 0
        %v1163 = vsel %vm722, %v1158, 0
        %1165 = vmatpush.bf16.msra.mxu0 0
        %1166 = vmatpush.bf16.msra.mxu0 0
        %1167 = vmatpush.bf16.msra.mxu0 0
        %1168 = vmatpush.bf16.msra.mxu0 0
        %1169 = vmatpush.bf16.msra.mxu0 0
        %1170 = vmatpush.bf16.msra.mxu0 0
        %1171 = vmatpush.bf16.msra.mxu0 0
        %1172 = vmatpush.bf16.msra.mxu0 %v1163
        %1173 = vmatmul.bf16.gmra.mxu0 %v1160
        %v1174 = vpop.f32.mrf.mxu0
        %v1175 = vadd.f32 0.0, %v1174
        %v1176 = vpop.f32.mrf.mxu0
        %1177 = vdwg.mxu0
        %v1178 = vld [vmem:[#allocation4] sm:$0xff]
        %1180 = vset.pattern.permute.xlu0 2
        %1181 = vperm.xlu0 %1180, %v1093
        %v1182 = vpop.permute.xlu0 %1181
        %v1184 = vmul.f32 %v1182, %v1178
        %1186 = vrot.lane.b32.xlu0 %v1175, 16
        %v1187 = vpop.permute.xlu0 %1186
        %v1189 = vadd.f32 %v1184, %v1187
        %vm1190 = vcmask 195712
        %1191 = vst.msk [vmem:[#allocation4] sm:$0xff] %vm1190, %v1189
        %1192 = vst.msk [vmem:[#allocation2] sm:$0xff] %vm1108, %v1090
        %1193 = vst [vmem:[#allocation1] ss:$4 sm:$0xff] %v471
        %v1194 = vld.sshfl [vmem:[#allocation1] sm:$0xff pattern:$0x73625140]
        %s1196 = scalar_lea.vmem [#allocation1], 32
        %1197 = vst [vmem:[%s1196] ss:$4 sm:$0xff] %v472
        %v1198 = vld.sshfl [vmem:[#allocation1 + $0x20] sm:$0xff pattern:$0x73625140]
        %1200 = vst [vmem:[#allocation1] ss:$4 sm:$0xff] %v473
        %v1201 = vld.sshfl [vmem:[#allocation1] sm:$0xff pattern:$0x73625140]
        %1203 = vst [vmem:[%s1196] ss:$4 sm:$0xff] %v474
        %v1204 = vld.sshfl [vmem:[#allocation1 + $0x20] sm:$0xff pattern:$0x73625140]
        %1206 = vst [vmem:[#allocation1] ss:$4 sm:$0xff] %v475
        %v1207 = vld.sshfl [vmem:[#allocation1] sm:$0xff pattern:$0x73625140]
        %1209 = vst [vmem:[%s1196] ss:$4 sm:$0xff] %v476
        %v1210 = vld.sshfl [vmem:[#allocation1 + $0x20] sm:$0xff pattern:$0x73625140]
        %1212 = vst [vmem:[#allocation1] ss:$4 sm:$0xff] %v477
        %v1213 = vld.sshfl [vmem:[#allocation1] sm:$0xff pattern:$0x73625140]
        %1215 = vst [vmem:[%s1196] ss:$4 sm:$0xff] %v478
        %v1216 = vld.sshfl [vmem:[#allocation1 + $0x20] sm:$0xff pattern:$0x73625140]
        %v1218 = vunpack.c.l.b16 %v1194
        %v1219 = vunpack.c.l.b16 %v1198
        %v1220 = vunpack.c.l.b16 %v1201
        %v1221 = vunpack.c.l.b16 %v1204
        %v1222 = vunpack.c.l.b16 %v1207
        %v1223 = vunpack.c.l.b16 %v1210
        %v1224 = vunpack.c.l.b16 %v1213
        %v1225 = vunpack.c.l.b16 %v1216
        %v1226 = vrot.slane %v1218, 3
        %v1227 = vrot.slane %v1219, 2
        %v1228 = vsel %vm541, %v1227, %v1226
        %v1229 = vrot.slane %v1220, 1
        %v1230 = vsel %vm544, %v1229, %v1228
        %v1231 = vsel %vm547, %v1221, %v1230
        %v1232 = vrot.slane %v1222, 7
        %v1233 = vsel %vm550, %v1232, %v1231
        %v1234 = vrot.slane %v1223, 6
        %v1235 = vsel %vm553, %v1234, %v1233
        %v1236 = vrot.slane %v1224, 5
        %v1237 = vsel %vm556, %v1236, %v1235
        %v1238 = vrot.slane %v1225, 4
        %v1239 = vsel %vm559, %v1238, %v1237
        %v1240 = vpack.c.b16 %v1239, %v1239
        %1241 = vst [vmem:[#allocation1] ss:$4 sm:$0xff] %v479
        %v1242 = vld.sshfl [vmem:[#allocation1] sm:$0xff pattern:$0x73625140]
        %s1244 = scalar_lea.vmem [#allocation1], 32
        %1245 = vst [vmem:[%s1244] ss:$4 sm:$0xff] %v480
        %v1246 = vld.sshfl [vmem:[#allocation1 + $0x20] sm:$0xff pattern:$0x73625140]
        %1248 = vst [vmem:[#allocation1] ss:$4 sm:$0xff] %v481
        %v1249 = vld.sshfl [vmem:[#allocation1] sm:$0xff pattern:$0x73625140]
        %1251 = vst [vmem:[%s1244] ss:$4 sm:$0xff] %v482
        %v1252 = vld.sshfl [vmem:[#allocation1 + $0x20] sm:$0xff pattern:$0x73625140]
        %1254 = vst [vmem:[#allocation1] ss:$4 sm:$0xff] %v483
        %v1255 = vld.sshfl [vmem:[#allocation1] sm:$0xff pattern:$0x73625140]
        %1257 = vst [vmem:[%s1244] ss:$4 sm:$0xff] %v484
        %v1258 = vld.sshfl [vmem:[#allocation1 + $0x20] sm:$0xff pattern:$0x73625140]
        %1260 = vst [vmem:[#allocation1] ss:$4 sm:$0xff] %v485
        %v1261 = vld.sshfl [vmem:[#allocation1] sm:$0xff pattern:$0x73625140]
        %1263 = vst [vmem:[%s1244] ss:$4 sm:$0xff] %v486
        %v1264 = vld.sshfl [vmem:[#allocation1 + $0x20] sm:$0xff pattern:$0x73625140]
        %v1266 = vunpack.c.l.b16 %v1242
        %v1267 = vunpack.c.l.b16 %v1246
        %v1268 = vunpack.c.l.b16 %v1249
        %v1269 = vunpack.c.l.b16 %v1252
        %v1270 = vunpack.c.l.b16 %v1255
        %v1271 = vunpack.c.l.b16 %v1258
        %v1272 = vunpack.c.l.b16 %v1261
        %v1273 = vunpack.c.l.b16 %v1264
        %v1274 = vrot.slane %v1266, 3
        %v1275 = vrot.slane %v1267, 2
        %v1276 = vsel %vm541, %v1275, %v1274
        %v1277 = vrot.slane %v1268, 1
        %v1278 = vsel %vm544, %v1277, %v1276
        %v1279 = vsel %vm547, %v1269, %v1278
        %v1280 = vrot.slane %v1270, 7
        %v1281 = vsel %vm550, %v1280, %v1279
        %v1282 = vrot.slane %v1271, 6
        %v1283 = vsel %vm553, %v1282, %v1281
        %v1284 = vrot.slane %v1272, 5
        %v1285 = vsel %vm556, %v1284, %v1283
        %v1286 = vrot.slane %v1273, 4
        %v1287 = vsel %vm559, %v1286, %v1285
        %v1288 = vpack.c.b16 %v1287, %v1287
        %v1290 = vsel %vm618, %v1240, 0
        %v1293 = vsel %vm618, %v1288, 0
        %1295 = vmatpush.bf16.xpose.msra.mxu0 0
        %1296 = vmatpush.bf16.xpose.msra.mxu0 0
        %1297 = vmatpush.bf16.xpose.msra.mxu0 0
        %1298 = vmatpush.bf16.xpose.msra.mxu0 0
        %1299 = vmatpush.bf16.xpose.msra.mxu0 0
        %1300 = vmatpush.bf16.xpose.msra.mxu0 0
        %1301 = vmatpush.bf16.xpose.msra.mxu0 0
        %1302 = vmatpush.bf16.xpose.msra.mxu0 %v1293
        %1303 = vmatmul.bf16.gmra.mxu0 %v1290
        %v1304 = vpop.f32.mrf.mxu0
        %v1305 = vadd.f32 %v497, %v1304
        %v1306 = vpop.f32.mrf.mxu0
        %1307 = vdwg.mxu0
        %v1308 = vld [vmem:[#allocation2] sm:$0xff]
        %v1309 = vsel %vm618, %v1305, -inf
        %1310 = vmax.xlane.f32.xlu0 %v1309
        %v1311 = vpop.xlane.xlu0 %1310
        %v1312 = vmax.f32 %v1308, %v1311
        %v1313 = vsub.f32 %v1308, %v1312
        %v1314 = vmul.f32 %v1313, 1.442695
        %v1315 = vpow.pop %v1314
        %1317 = vset.pattern.permute.xlu0 3
        %1318 = vperm.xlu0 %1317, %v1312
        %v1319 = vpop.permute.xlu0 %1318
        %v1321 = vsub.f32 %v1305, %v1319
        %v1322 = vmul.f32 %v1321, 1.442695
        %v1323 = vpow.pop %v1322
        %v1324 = vld [vmem:[#allocation3] sm:$0xff]
        %v1325 = vmul.f32 %v1315, %v1324
        %v1326 = vsel %vm618, %v1323, 0.0
        %1327 = vadd.xlane.f32.xlu0 %v1326
        %v1328 = vpop.xlane.xlu0 %1327
        %v1329 = vadd.f32 %v1325, %v1328
        %vm1330 = vcmask 31768
        %1331 = vst.msk [vmem:[#allocation3] sm:$0xff] %vm1330, %v1329
        %v1332 = vpack.c.bf16 %v1323, %v1323
        %1333 = vst [vmem:[#allocation1] ss:$4 sm:$0xff] %v487
        %v1334 = vld.sshfl [vmem:[#allocation1] sm:$0xff pattern:$0x73625140]
        %s1336 = scalar_lea.vmem [#allocation1], 32
        %1337 = vst [vmem:[%s1336] ss:$4 sm:$0xff] %v488
        %v1338 = vld.sshfl [vmem:[#allocation1 + $0x20] sm:$0xff pattern:$0x73625140]
        %1340 = vst [vmem:[#allocation1] ss:$4 sm:$0xff] %v489
        %v1341 = vld.sshfl [vmem:[#allocation1] sm:$0xff pattern:$0x73625140]
        %1343 = vst [vmem:[%s1336] ss:$4 sm:$0xff] %v490
        %v1344 = vld.sshfl [vmem:[#allocation1 + $0x20] sm:$0xff pattern:$0x73625140]
        %1346 = vst [vmem:[#allocation1] ss:$4 sm:$0xff] %v491
        %v1347 = vld.sshfl [vmem:[#allocation1] sm:$0xff pattern:$0x73625140]
        %1349 = vst [vmem:[%s1336] ss:$4 sm:$0xff] %v492
        %v1350 = vld.sshfl [vmem:[#allocation1 + $0x20] sm:$0xff pattern:$0x73625140]
        %1352 = vst [vmem:[#allocation1] ss:$4 sm:$0xff] %v493
        %v1353 = vld.sshfl [vmem:[#allocation1] sm:$0xff pattern:$0x73625140]
        %1355 = vst [vmem:[%s1336] ss:$4 sm:$0xff] %v494
        %v1356 = vld.sshfl [vmem:[#allocation1 + $0x20] sm:$0xff pattern:$0x73625140]
        %v1358 = vunpack.c.l.b16 %v1334
        %v1359 = vunpack.c.l.b16 %v1338
        %v1360 = vunpack.c.l.b16 %v1341
        %v1361 = vunpack.c.l.b16 %v1344
        %v1362 = vunpack.c.l.b16 %v1347
        %v1363 = vunpack.c.l.b16 %v1350
        %v1364 = vunpack.c.l.b16 %v1353
        %v1365 = vunpack.c.l.b16 %v1356
        %v1366 = vrot.slane %v1358, 3
        %v1367 = vrot.slane %v1359, 2
        %v1368 = vsel %vm541, %v1367, %v1366
        %v1369 = vrot.slane %v1360, 1
        %v1370 = vsel %vm544, %v1369, %v1368
        %v1371 = vsel %vm547, %v1361, %v1370
        %v1372 = vrot.slane %v1362, 7
        %v1373 = vsel %vm550, %v1372, %v1371
        %v1374 = vrot.slane %v1363, 6
        %v1375 = vsel %vm553, %v1374, %v1373
        %v1376 = vrot.slane %v1364, 5
        %v1377 = vsel %vm556, %v1376, %v1375
        %v1378 = vrot.slane %v1365, 4
        %v1379 = vsel %vm559, %v1378, %v1377
        %v1380 = vpack.c.b16 %v1379, %v1379
        %v1382 = vsel %vm618, %v1332, 0
        %v1385 = vsel %vm722, %v1380, 0
        %1387 = vmatpush.bf16.msra.mxu0 0
        %1388 = vmatpush.bf16.msra.mxu0 0
        %1389 = vmatpush.bf16.msra.mxu0 0
        %1390 = vmatpush.bf16.msra.mxu0 0
        %1391 = vmatpush.bf16.msra.mxu0 0
        %1392 = vmatpush.bf16.msra.mxu0 0
        %1393 = vmatpush.bf16.msra.mxu0 0
        %1394 = vmatpush.bf16.msra.mxu0 %v1385
        %1395 = vmatmul.bf16.gmra.mxu0 %v1382
        %v1396 = vpop.f32.mrf.mxu0
        %v1397 = vadd.f32 0.0, %v1396
        %v1398 = vpop.f32.mrf.mxu0
        %1399 = vdwg.mxu0
        %v1400 = vld [vmem:[#allocation4] sm:$0xff]
        %1402 = vset.pattern.permute.xlu0 3
        %1403 = vperm.xlu0 %1402, %v1315
        %v1404 = vpop.permute.xlu0 %1403
        %v1406 = vmul.f32 %v1404, %v1400
        %1408 = vrot.lane.b32.xlu0 %v1397, 24
        %v1409 = vpop.permute.xlu0 %1408
        %v1411 = vadd.f32 %v1406, %v1409
        %vm1412 = vcmask 261312
        %1413 = vst.msk [vmem:[#allocation4] sm:$0xff] %vm1412, %v1411
        %1414 = vst.msk [vmem:[#allocation2] sm:$0xff] %vm1330, %v1312
        // Predicated region
        $region123: #{run.22} parent=109 // pred_check
          %p1415 = pneg %p462
        $region124: #{run.22} parent=109 // pred_check_branch
          %1417 = sbr.rel (%p1415) target = $region126
        $region125: #{run.22} parent=109 // pred_region
          %v1418 = vld [vmem:[#allocation3] sm:$0xff]
          %v1419 = vrcp.pop %v1418
          %v1420 = vmul.f32 %v1418, %v1419
          %v1421 = vsub.f32 1.0, %v1420
          %v1422 = vmul.f32 %v1419, %v1421
          %v1423 = vadd.f32 %v1419, %v1422
          %vm1424 = vweird.f32 %v1418
          %vm1425 = vweird.f32 %v1419
          %vm1426 = vmor %vm1424, %vm1425
          %v1427 = vsel %vm1426, %v1419, %v1423
          %v1428 = vand.u32 2147483647, %v1418
          %vm1429 = vcmp.eq.f32.partialorder %v1428, 8.507059e+37
          %v1430 = vand.u32 %v1418, 2147483648
          %v1431 = vor.u32 1.1754944e-38, %v1430
          %v1432 = vsel %vm1429, %v1431, %v1427
          %v1433 = vld [vmem:[#allocation4] sm:$0xff]
          %1435 = vset.pattern.permute.xlu0 0
          %1436 = vperm.xlu0 %1435, %v1432
          %v1437 = vpop.permute.xlu0 %1436
          %v1439 = vmul.f32 %v1433, %v1437
          %v1440 = vpack.c.bf16 %v1439, %v1439
          %vm1441 = vcmask 60416
          %1442 = vst.msk [vmem:[%s460] sm:$0xf] %vm1441, %v1440
          %v1443 = vld [vmem:[#allocation3] sm:$0xff]
          %v1444 = vrcp.pop %v1443
          %v1445 = vmul.f32 %v1443, %v1444
          %v1446 = vsub.f32 1.0, %v1445
          %v1447 = vmul.f32 %v1444, %v1446
          %v1448 = vadd.f32 %v1444, %v1447
          %vm1449 = vweird.f32 %v1443
          %vm1450 = vweird.f32 %v1444
          %vm1451 = vmor %vm1449, %vm1450
          %v1452 = vsel %vm1451, %v1444, %v1448
          %v1453 = vand.u32 2147483647, %v1443
          %vm1454 = vcmp.eq.f32.partialorder %v1453, 8.507059e+37
          %v1455 = vand.u32 %v1443, 2147483648
          %v1456 = vor.u32 1.1754944e-38, %v1455
          %v1457 = vsel %vm1454, %v1456, %v1452
          %v1458 = vld [vmem:[#allocation4] sm:$0xff]
          %1460 = vset.pattern.permute.xlu0 1
          %1461 = vperm.xlu0 %1460, %v1457
          %v1462 = vpop.permute.xlu0 %1461
          %v1464 = vmul.f32 %v1458, %v1462
          %v1465 = vpack.c.bf16 %v1464, %v1464
          %vm1466 = vcmask 126016
          %1467 = vst.msk [vmem:[%s460] sm:$0xf] %vm1466, %v1465
          %v1468 = vld [vmem:[#allocation3] sm:$0xff]
          %v1469 = vrcp.pop %v1468
          %v1470 = vmul.f32 %v1468, %v1469
          %v1471 = vsub.f32 1.0, %v1470
          %v1472 = vmul.f32 %v1469, %v1471
          %v1473 = vadd.f32 %v1469, %v1472
          %vm1474 = vweird.f32 %v1468
          %vm1475 = vweird.f32 %v1469
          %vm1476 = vmor %vm1474, %vm1475
          %v1477 = vsel %vm1476, %v1469, %v1473
          %v1478 = vand.u32 2147483647, %v1468
          %vm1479 = vcmp.eq.f32.partialorder %v1478, 8.507059e+37
          %v1480 = vand.u32 %v1468, 2147483648
          %v1481 = vor.u32 1.1754944e-38, %v1480
          %v1482 = vsel %vm1479, %v1481, %v1477
          %v1483 = vld [vmem:[#allocation4] sm:$0xff]
          %1485 = vset.pattern.permute.xlu0 2
          %1486 = vperm.xlu0 %1485, %v1482
          %v1487 = vpop.permute.xlu0 %1486
          %v1489 = vmul.f32 %v1483, %v1487
          %v1490 = vpack.c.bf16 %v1489, %v1489
          %vm1491 = vcmask 191616
          %1492 = vst.msk [vmem:[%s460] sm:$0xf] %vm1491, %v1490
          %v1493 = vld [vmem:[#allocation3] sm:$0xff]
          %v1494 = vrcp.pop %v1493
          %v1495 = vmul.f32 %v1493, %v1494
          %v1496 = vsub.f32 1.0, %v1495
          %v1497 = vmul.f32 %v1494, %v1496
          %v1498 = vadd.f32 %v1494, %v1497
          %vm1499 = vweird.f32 %v1493
          %vm1500 = vweird.f32 %v1494
          %vm1501 = vmor %vm1499, %vm1500
          %v1502 = vsel %vm1501, %v1494, %v1498
          %v1503 = vand.u32 2147483647, %v1493
          %vm1504 = vcmp.eq.f32.partialorder %v1503, 8.507059e+37
          %v1505 = vand.u32 %v1493, 2147483648
          %v1506 = vor.u32 1.1754944e-38, %v1505
          %v1507 = vsel %vm1504, %v1506, %v1502
          %v1508 = vld [vmem:[#allocation4] sm:$0xff]
          %1510 = vset.pattern.permute.xlu0 3
          %1511 = vperm.xlu0 %1510, %v1507
          %v1512 = vpop.permute.xlu0 %1511
          %v1514 = vmul.f32 %v1508, %v1512
          %v1515 = vpack.c.bf16 %v1514, %v1514
          %vm1516 = vcmask 257216
          %1517 = vst.msk [vmem:[%s460] sm:$0xf] %vm1516, %v1515
        $region126: #{run.22} parent=109 // pred_fallthru
          _
        %p1518 = scmp.lt.s32.totalorder %s20, 1
        %s1519 = scalar_select %p1518, %s20, 1
        %p1520 = scmp.lt.s32.totalorder %s21, 0
        %s1521 = scalar_select %p1520, %s21, 0
        %s1522 = sadd.s32 %s1521, %s1519
        %s1523 = smul.addr %s1522, 4
        %s1524 = scalar_lea.vmem %s4, %s1523
        // Predicated region
        $region127: #{run.22} parent=109 // pred_check
          %p1525 = pneg %p166
        $region128: #{run.22} parent=109 // pred_check_branch
          %1527 = sbr.rel (%p1525) target = $region130
        $region129: #{run.22} parent=109 // pred_region
          _
        $region130: #{run.22} parent=109 // pred_fallthru
          _
      $region110: #{run.22} parent=5 // pred_fallthru
        _
      %p1528 = scmp.le.s32.totalorder 2, %s10
      // Predicated region
      $region131: #{run.22} parent=5 // pred_check
        %p1529 = pneg %p1528
      $region132: #{run.22} parent=5 // pred_check_branch
        %1531 = sbr.rel (%p1529) target = $region134
      $region133: #{run.22} parent=5 // pred_region
        %s1532 = ssub.s32 %s10, 2
        // Predicated region
        $region135: #{run.22} parent=133 // pred_check
          %p1533 = pneg %p172
        $region136: #{run.22} parent=133 // pred_check_branch
          %1535 = sbr.rel (%p1533) target = $region138
        $region137: #{run.22} parent=133 // pred_region
          %p1536 = scmp.lt.s32.totalorder %s23, 1
          %s1537 = scalar_select %p1536, %s23, 1
          %p1538 = scmp.lt.s32.totalorder %s24, 0
          %s1539 = scalar_select %p1538, %s24, 0
          %s1540 = sadd.s32 %s1539, %s1537
          %s1541 = smul.addr %s1540, 4
          %s1542 = scalar_lea.vmem %s4, %s1541
        $region138: #{run.22} parent=133 // pred_fallthru
          _
      $region134: #{run.22} parent=5 // pred_fallthru
        _
    $region6: #{run.22} parent=1 // loop_footer
      %s14 = sadd.s32 1, %s10
    $region7: #{run.22} parent=1 // loop_footer_branch
      %9 = sbr.rel target = $region3
    $region8: #{run.22} parent=1 // loop_exit
      _

</llo_original>
